<compile_context>
chip_gen: v7x
topology: tpu7x:2x2x1
jax: 0.10.0
libtpu: 0.0.40
codegen_flags: <defaults>
</compile_context>

<pallas_src>
import numpy as np

import jax
import jax.numpy as jnp
from jax.experimental import pallas as pl
from jax.experimental.pallas import tpu as pltpu


def _round_up(x, m):
    return ((x + m - 1) // m) * m


def _vmem_limit_bytes():
    # Tie the scoped-VMEM request to the chip (64 MiB on 128-MiB parts,
    # 32 MiB on v7x's 64-MiB-per-TC), with a conservative fallback.
    try:
        cap = int(pltpu.get_tpu_info().vmem_capacity_bytes)
    except Exception:
        cap = 64 * 1024 * 1024
    return int(min(cap // 2, 64 * 1024 * 1024))


# ---------------------------------------------------------------------------
# Trace-time weight re-layout (tiny scatters, run once under jit).
# ---------------------------------------------------------------------------
def _build_conv1_toeplitz(w1):
    # w1: (10, 1, 3, 3).  Input matrix row g holds image rows (2g, 2g+1) in
    # 56 lanes.  Output feature f = di*260 + dj*130 + pj*10 + c gives the
    # un-pooled conv value at (row 2*pi+di, col 2*pj+dj, channel c); weights
    # are split by whether the needed image row lives in matrix row pi (self)
    # or pi+1 (next).
    di, dj, pj, c, kh, kw = np.indices((2, 2, 13, 10, 3, 3)).reshape(6, -1)
    t = di + kh
    s = t // 2                                   # 0 -> self row, 1 -> next row
    lane = (t % 2) * 28 + (2 * pj + dj + kw)
    feat = di * 260 + dj * 130 + pj * 10 + c
    vals = w1[c, 0, kh, kw]
    out = jnp.zeros((2, 56, 520), w1.dtype)
    return out.at[s, lane, feat].add(vals)


def _build_conv2_toeplitz(w2):
    # w2: (20, 10, 5, 5).  h1 matrix rows are (sample, pooled row) with
    # 130 lanes = (col pj, channel c).  One weight slab per kh; output
    # feature f = dj*80 + qj*20 + m is the un-row-pooled conv2 value at
    # column 2*qj+dj, out-channel m.
    dj, qj, m, c, kh, kw = np.indices((2, 4, 20, 10, 5, 5)).reshape(6, -1)
    lane = (2 * qj + dj + kw) * 10 + c
    feat = dj * 80 + qj * 20 + m
    vals = w2[m, c, kh, kw]
    out = jnp.zeros((5, 130, 160), w2.dtype)
    return out.at[kh, lane, feat].add(vals)


def _build_fc1_weights(fc1_w):
    # fc1_w: (320, code_length), rows in PyTorch flatten order m*16+qi*4+qj.
    # Re-layout to (4, 80, H): per pooled row qi, input lane order (qj, m).
    qi, qj, m = np.indices((4, 4, 20)).reshape(3, -1)
    src = m * 16 + qi * 4 + qj
    dst = qj * 20 + m
    h = fc1_w.shape[1]
    out = jnp.zeros((4, 80, h), fc1_w.dtype)
    return out.at[qi, dst, :].set(fc1_w[src, :])


# ---------------------------------------------------------------------------
# The fused kernel: conv1+pool+relu, conv2+pool+relu, fc1+relu, fc2+logsoftmax
# ---------------------------------------------------------------------------
def _fused_kernel(x_ref, w1t_ref, b1c_ref, w2t_ref, b2c_ref,
                  w1q_ref, fb1_ref, w2f_ref, fb2_ref, z_ref, p_ref):
    rows = x_ref.shape[0]                 # TB * 14
    tb = rows // 14

    def shift_up(v, k):                   # v_out[r] = v[r + k] (wrap rows unused)
        if k == 0:
            return v
        return jnp.concatenate([v[k:], v[:k]], axis=0)

    x = x_ref[...]                                                # (TB*14, 56)

    # conv1 (3x3, 1->10) + 2x2 maxpool + bias + ReLU (bias commutes with max)
    y = jnp.dot(x, w1t_ref[0], preferred_element_type=jnp.float32)
    y = y + jnp.dot(shift_up(x, 1), w1t_ref[1],
                    preferred_element_type=jnp.float32)           # (TB*14, 520)
    y = jnp.maximum(y[:, :260], y[:, 260:])                       # pool row off
    y = jnp.maximum(y[:, :130], y[:, 130:])                       # pool col off
    h1 = jnp.maximum(y + b1c_ref[...], 0.0)                       # (TB*14, 130)

    # conv2 (5x5, 10->20); Dropout2d is an eval-mode identity.
    c2 = jnp.dot(h1, w2t_ref[0], preferred_element_type=jnp.float32)
    for kh in range(1, 5):
        c2 = c2 + jnp.dot(shift_up(h1, kh), w2t_ref[kh],
                          preferred_element_type=jnp.float32)     # (TB*14, 160)
    c2 = jnp.maximum(c2[:, :80], c2[:, 80:])                      # pool col off
    c2 = jnp.maximum(c2, shift_up(c2, 1))                         # pool row off
    feat = jnp.maximum(c2 + b2c_ref[...], 0.0)                    # (TB*14, 80)
    feat = feat.reshape(tb, 14, 80)       # valid pooled rows sit at index 2*qi

    # fc1 + ReLU
    acc = jnp.dot(feat[:, 0, :], w1q_ref[0], preferred_element_type=jnp.float32)
    for qi in range(1, 4):
        acc = acc + jnp.dot(feat[:, 2 * qi, :], w1q_ref[qi],
                            preferred_element_type=jnp.float32)
    z = jnp.maximum(acc + fb1_ref[...], 0.0)                      # (TB, H)
    z_ref[...] = z

    # TODO(synk): Dropout(0.2) is an eval-mode identity (no RNG mask applied).
    logits = jnp.dot(z, w2f_ref[...],
                     preferred_element_type=jnp.float32) + fb2_ref[...]
    mx = jnp.max(logits, axis=-1, keepdims=True)
    lse = mx + jnp.log(jnp.sum(jnp.exp(logits - mx), axis=-1, keepdims=True))
    p_ref[...] = logits - lse


# ---------------------------------------------------------------------------
# Full forward pass: (z, log_probs) = CNNFemnist(x)
# ---------------------------------------------------------------------------
def cnn_femnist_forward(x_nchw, params):
    N = x_nchw.shape[0]
    assert x_nchw.shape[1:] == (1, 28, 28), "fc1 in_features=320 requires 28x28"
    dt = jnp.float32
    x = x_nchw.reshape(N, 28, 28).astype(dt)

    vmem_limit = _vmem_limit_bytes()
    TB = 256 if vmem_limit >= 64 * 1024 * 1024 else 128
    TB = min(TB, _round_up(N, 8))
    N_pad = _round_up(N, TB)
    assert N_pad % TB == 0 and (TB * 14) % 8 == 0
    if N_pad != N:
        x = jnp.pad(x, ((0, N_pad - N), (0, 0), (0, 0)))
    # Two image rows per matrix row (free, row-major reshape in XLA).
    x14 = x.reshape(N_pad * 14, 56)

    w1t = _build_conv1_toeplitz(params["conv1_w"].astype(dt))     # (2, 56, 520)
    b1c = jnp.tile(params["conv1_b"].astype(dt), 13).reshape(1, 130)
    w2t = _build_conv2_toeplitz(params["conv2_w"].astype(dt))     # (5, 130, 160)
    b2c = jnp.tile(params["conv2_b"].astype(dt), 4).reshape(1, 80)
    w1q = _build_fc1_weights(params["fc1_w"].astype(dt))          # (4, 80, H)
    fb1 = params["fc1_b"].astype(dt).reshape(1, -1)
    w2f = params["fc2_w"].astype(dt)                              # (H, C)
    fb2 = params["fc2_b"].astype(dt).reshape(1, -1)
    H = w1q.shape[2]
    C = w2f.shape[1]

    z, p = pl.pallas_call(
        _fused_kernel,
        grid=(N_pad // TB,),
        in_specs=[
            pl.BlockSpec((TB * 14, 56), lambda i: (i, 0)),
            pl.BlockSpec((2, 56, 520), lambda i: (0, 0, 0)),      # resident
            pl.BlockSpec((1, 130), lambda i: (0, 0)),
            pl.BlockSpec((5, 130, 160), lambda i: (0, 0, 0)),
            pl.BlockSpec((1, 80), lambda i: (0, 0)),
            pl.BlockSpec((4, 80, H), lambda i: (0, 0, 0)),
            pl.BlockSpec((1, H), lambda i: (0, 0)),
            pl.BlockSpec((H, C), lambda i: (0, 0)),
            pl.BlockSpec((1, C), lambda i: (0, 0)),
        ],
        out_specs=(pl.BlockSpec((TB, H), lambda i: (i, 0)),
                   pl.BlockSpec((TB, C), lambda i: (i, 0))),
        out_shape=(jax.ShapeDtypeStruct((N_pad, H), jnp.float32),
                   jax.ShapeDtypeStruct((N_pad, C), jnp.float32)),
        compiler_params=pltpu.CompilerParams(
            dimension_semantics=("parallel",),
            vmem_limit_bytes=vmem_limit),
    )(x14, w1t, b1c, w2t, b2c, w1q, fb1, w2f, fb2)
    return z[:N], p[:N]


# ---------------------------------------------------------------------------
# Pure-JAX reference (matches the PyTorch module in eval mode)
# ---------------------------------------------------------------------------
def _reference_forward(x_nchw, params):
    hp = jax.lax.Precision.HIGHEST
    dn = ("NCHW", "OIHW", "NCHW")

    def pool2(v):
        return jax.lax.reduce_window(v, -jnp.inf, jax.lax.max,
                                     (1, 1, 2, 2), (1, 1, 2, 2), "VALID")

    h = jax.lax.conv_general_dilated(x_nchw, params["conv1_w"], (1, 1), "VALID",
                                     dimension_numbers=dn, precision=hp)
    h = h + params["conv1_b"][None, :, None, None]
    h = jax.nn.relu(pool2(h))
    h = jax.lax.conv_general_dilated(h, params["conv2_w"], (1, 1), "VALID",
                                     dimension_numbers=dn, precision=hp)
    h = h + params["conv2_b"][None, :, None, None]
    h = jax.nn.relu(pool2(h))
    h = h.reshape(h.shape[0], -1)
    z = jax.nn.relu(jnp.dot(h, params["fc1_w"], precision=hp) + params["fc1_b"])
    logits = jnp.dot(z, params["fc2_w"], precision=hp) + params["fc2_b"]
    return z, jax.nn.log_softmax(logits, axis=-1)


def init_params(key, code_length=50, num_classes=62):
    ks = jax.random.split(key, 8)

    def u(k, shape, fan_in):
        lim = 1.0 / jnp.sqrt(jnp.float32(fan_in))
        return jax.random.uniform(k, shape, jnp.float32, -lim, lim)

    return {
        "conv1_w": u(ks[0], (10, 1, 3, 3), 1 * 3 * 3),
        "conv1_b": u(ks[1], (10,), 1 * 3 * 3),
        "conv2_w": u(ks[2], (20, 10, 5, 5), 10 * 5 * 5),
        "conv2_b": u(ks[3], (20,), 10 * 5 * 5),
        # stored as (in_features, out_features); PyTorch stores the transpose
        "fc1_w": u(ks[4], (320, code_length), 320),
        "fc1_b": u(ks[5], (code_length,), 320),
        "fc2_w": u(ks[6], (code_length, num_classes), code_length),
        "fc2_b": u(ks[7], (num_classes,), code_length),
    }


if __name__ == "__main__":
    key = jax.random.PRNGKey(0)
    pkey, xkey = jax.random.split(key)
    params = init_params(pkey)
    # FEMNIST-style input: 28x28 is required by the fixed fc1 in_features=320
    x = jax.random.normal(xkey, (2, 1, 28, 28), jnp.float32)

    z, p = jax.jit(cnn_femnist_forward)(x, params)
    jax.block_until_ready((z, p))

    assert z.shape == (2, 50) and p.shape == (2, 62)
    assert bool(jnp.all(jnp.isfinite(z))) and bool(jnp.all(jnp.isfinite(p)))

    z_ref, p_ref = _reference_forward(x, params)
    err_z = float(jnp.max(jnp.abs(z - z_ref)))
    err_p = float(jnp.max(jnp.abs(p - p_ref)))
    assert err_z < 5e-2 and err_p < 5e-2, (err_z, err_p)
    print("KERNEL_OK")
</pallas_src>

<mosaic_0001>
module attributes {stable_mosaic.version = 11 : i64} {
  func.func private @main(%arg0: i32) attributes {dimension_semantics = [#tpu.dimension_semantics<core_parallel>], iteration_bounds = array<i64: 2>, tpu.core_type = #tpu.core_type<sc_scalar_subcore>, window_params = []} {
    return
  }
}

module attributes {stable_mosaic.version = 11 : i64} {
  func.func private @main(%arg0: i32) attributes {dimension_semantics = [#tpu.dimension_semantics<core_parallel>], iteration_bounds = array<i64: 2>, tpu.core_type = #tpu.core_type<sc_scalar_subcore>, window_params = []} {
    return
  }
}

module attributes {stable_mosaic.version = 11 : i64} {
  func.func @_fused_kernel(%arg0: i32, %arg1: memref<112x56xf32, #tpu.memory_space<vmem>>, %arg2: memref<2x56x520xf32, #tpu.memory_space<vmem>>, %arg3: memref<1x130xf32, #tpu.memory_space<vmem>>, %arg4: memref<5x130x160xf32, #tpu.memory_space<vmem>>, %arg5: memref<1x80xf32, #tpu.memory_space<vmem>>, %arg6: memref<4x80x50xf32, #tpu.memory_space<vmem>>, %arg7: memref<1x50xf32, #tpu.memory_space<vmem>>, %arg8: memref<50x62xf32, #tpu.memory_space<vmem>>, %arg9: memref<1x62xf32, #tpu.memory_space<vmem>>, %arg10: memref<8x50xf32, #tpu.memory_space<vmem>>, %arg11: memref<8x62xf32, #tpu.memory_space<vmem>>) attributes {dimension_semantics = [#tpu.dimension_semantics<parallel>], iteration_bounds = array<i64: 1>, scalar_prefetch = 0 : i64, scratch_operands = 0 : i64, tpu.core_type = #tpu.core_type<tc>, window_params = [{transform_indices = @transform_0, window_bounds = array<i64: 112, 56>}, {pipeline_mode = #tpu.pipeline_mode<synchronous>, transform_indices = @transform_1, window_bounds = array<i64: 2, 56, 520>}, {pipeline_mode = #tpu.pipeline_mode<synchronous>, transform_indices = @transform_2, window_bounds = array<i64: 1, 130>}, {pipeline_mode = #tpu.pipeline_mode<synchronous>, transform_indices = @transform_3, window_bounds = array<i64: 5, 130, 160>}, {pipeline_mode = #tpu.pipeline_mode<synchronous>, transform_indices = @transform_4, window_bounds = array<i64: 1, 80>}, {pipeline_mode = #tpu.pipeline_mode<synchronous>, transform_indices = @transform_5, window_bounds = array<i64: 4, 80, 50>}, {pipeline_mode = #tpu.pipeline_mode<synchronous>, transform_indices = @transform_6, window_bounds = array<i64: 1, 50>}, {pipeline_mode = #tpu.pipeline_mode<synchronous>, transform_indices = @transform_7, window_bounds = array<i64: 50, 62>}, {pipeline_mode = #tpu.pipeline_mode<synchronous>, transform_indices = @transform_8, window_bounds = array<i64: 1, 62>}, {transform_indices = @transform_9, window_bounds = array<i64: 8, 50>}, {transform_indices = @transform_10, window_bounds = array<i64: 8, 62>}]} {
    %c0 = arith.constant 0 : index
    %c0_0 = arith.constant 0 : index
    %0 = vector.load %arg1[%c0, %c0_0] : memref<112x56xf32, #tpu.memory_space<vmem>>, vector<112x56xf32>
    %c0_1 = arith.constant 0 : index
    %c0_2 = arith.constant 0 : index
    %c0_3 = arith.constant 0 : index
    %1 = vector.load %arg2[%c0_1, %c0_2, %c0_3] : memref<2x56x520xf32, #tpu.memory_space<vmem>>, vector<1x56x520xf32>
    %2 = vector.shape_cast %1 : vector<1x56x520xf32> to vector<56x520xf32>
    %cst = arith.constant dense<0.000000e+00> : vector<112x520xf32>
    %3 = tpu.matmul %0, %2, %cst {dimension_numbers = #tpu.dot_dimension_numbers<[1], [0], [0], [1], [0, 0, 1, 1], [], []>} : vector<112x56xf32>, vector<56x520xf32>, vector<112x520xf32> -> vector<112x520xf32>
    %4 = vector.extract_strided_slice %0 {offsets = [1, 0], sizes = [111, 56], strides = [1, 1]} : vector<112x56xf32> to vector<111x56xf32>
    %5 = vector.extract_strided_slice %0 {offsets = [0, 0], sizes = [1, 56], strides = [1, 1]} : vector<112x56xf32> to vector<1x56xf32>
    %6 = tpu.concatenate %4, %5 in 0 : vector<111x56xf32>, vector<1x56xf32> -> vector<112x56xf32>
    %c1 = arith.constant 1 : index
    %c0_4 = arith.constant 0 : index
    %c0_5 = arith.constant 0 : index
    %7 = vector.load %arg2[%c1, %c0_4, %c0_5] : memref<2x56x520xf32, #tpu.memory_space<vmem>>, vector<1x56x520xf32>
    %8 = vector.shape_cast %7 : vector<1x56x520xf32> to vector<56x520xf32>
    %cst_6 = arith.constant dense<0.000000e+00> : vector<112x520xf32>
    %9 = tpu.matmul %6, %8, %cst_6 {dimension_numbers = #tpu.dot_dimension_numbers<[1], [0], [0], [1], [0, 0, 1, 1], [], []>} : vector<112x56xf32>, vector<56x520xf32>, vector<112x520xf32> -> vector<112x520xf32>
    %10 = arith.addf %3, %9 : vector<112x520xf32>
    %11 = vector.extract_strided_slice %10 {offsets = [0, 0], sizes = [112, 260], strides = [1, 1]} : vector<112x520xf32> to vector<112x260xf32>
    %12 = vector.extract_strided_slice %10 {offsets = [0, 260], sizes = [112, 260], strides = [1, 1]} : vector<112x520xf32> to vector<112x260xf32>
    %13 = arith.maximumf %11, %12 : vector<112x260xf32>
    %14 = vector.extract_strided_slice %13 {offsets = [0, 0], sizes = [112, 130], strides = [1, 1]} : vector<112x260xf32> to vector<112x130xf32>
    %15 = vector.extract_strided_slice %13 {offsets = [0, 130], sizes = [112, 130], strides = [1, 1]} : vector<112x260xf32> to vector<112x130xf32>
    %16 = arith.maximumf %14, %15 : vector<112x130xf32>
    %c0_7 = arith.constant 0 : index
    %c0_8 = arith.constant 0 : index
    %17 = vector.load %arg3[%c0_7, %c0_8] : memref<1x130xf32, #tpu.memory_space<vmem>>, vector<1x130xf32>
    %18 = vector.broadcast %17 : vector<1x130xf32> to vector<112x130xf32>
    %19 = arith.addf %16, %18 : vector<112x130xf32>
    %cst_9 = arith.constant 0.000000e+00 : f32
    %20 = vector.broadcast %cst_9 : f32 to vector<112x130xf32>
    %21 = arith.maximumf %19, %20 : vector<112x130xf32>
    %c0_10 = arith.constant 0 : index
    %c0_11 = arith.constant 0 : index
    %c0_12 = arith.constant 0 : index
    %22 = vector.load %arg4[%c0_10, %c0_11, %c0_12] : memref<5x130x160xf32, #tpu.memory_space<vmem>>, vector<1x130x160xf32>
    %23 = vector.shape_cast %22 : vector<1x130x160xf32> to vector<130x160xf32>
    %cst_13 = arith.constant dense<0.000000e+00> : vector<112x160xf32>
    %24 = tpu.matmul %21, %23, %cst_13 {dimension_numbers = #tpu.dot_dimension_numbers<[1], [0], [0], [1], [0, 0, 1, 1], [], []>} : vector<112x130xf32>, vector<130x160xf32>, vector<112x160xf32> -> vector<112x160xf32>
    %25 = vector.extract_strided_slice %21 {offsets = [1, 0], sizes = [111, 130], strides = [1, 1]} : vector<112x130xf32> to vector<111x130xf32>
    %26 = vector.extract_strided_slice %21 {offsets = [0, 0], sizes = [1, 130], strides = [1, 1]} : vector<112x130xf32> to vector<1x130xf32>
    %27 = tpu.concatenate %25, %26 in 0 : vector<111x130xf32>, vector<1x130xf32> -> vector<112x130xf32>
    %c1_14 = arith.constant 1 : index
    %c0_15 = arith.constant 0 : index
    %c0_16 = arith.constant 0 : index
    %28 = vector.load %arg4[%c1_14, %c0_15, %c0_16] : memref<5x130x160xf32, #tpu.memory_space<vmem>>, vector<1x130x160xf32>
    %29 = vector.shape_cast %28 : vector<1x130x160xf32> to vector<130x160xf32>
    %cst_17 = arith.constant dense<0.000000e+00> : vector<112x160xf32>
    %30 = tpu.matmul %27, %29, %cst_17 {dimension_numbers = #tpu.dot_dimension_numbers<[1], [0], [0], [1], [0, 0, 1, 1], [], []>} : vector<112x130xf32>, vector<130x160xf32>, vector<112x160xf32> -> vector<112x160xf32>
    %31 = arith.addf %24, %30 : vector<112x160xf32>
    %32 = vector.extract_strided_slice %21 {offsets = [2, 0], sizes = [110, 130], strides = [1, 1]} : vector<112x130xf32> to vector<110x130xf32>
    %33 = vector.extract_strided_slice %21 {offsets = [0, 0], sizes = [2, 130], strides = [1, 1]} : vector<112x130xf32> to vector<2x130xf32>
    %34 = tpu.concatenate %32, %33 in 0 : vector<110x130xf32>, vector<2x130xf32> -> vector<112x130xf32>
    %c2 = arith.constant 2 : index
    %c0_18 = arith.constant 0 : index
    %c0_19 = arith.constant 0 : index
    %35 = vector.load %arg4[%c2, %c0_18, %c0_19] : memref<5x130x160xf32, #tpu.memory_space<vmem>>, vector<1x130x160xf32>
    %36 = vector.shape_cast %35 : vector<1x130x160xf32> to vector<130x160xf32>
    %cst_20 = arith.constant dense<0.000000e+00> : vector<112x160xf32>
    %37 = tpu.matmul %34, %36, %cst_20 {dimension_numbers = #tpu.dot_dimension_numbers<[1], [0], [0], [1], [0, 0, 1, 1], [], []>} : vector<112x130xf32>, vector<130x160xf32>, vector<112x160xf32> -> vector<112x160xf32>
    %38 = arith.addf %31, %37 : vector<112x160xf32>
    %39 = vector.extract_strided_slice %21 {offsets = [3, 0], sizes = [109, 130], strides = [1, 1]} : vector<112x130xf32> to vector<109x130xf32>
    %40 = vector.extract_strided_slice %21 {offsets = [0, 0], sizes = [3, 130], strides = [1, 1]} : vector<112x130xf32> to vector<3x130xf32>
    %41 = tpu.concatenate %39, %40 in 0 : vector<109x130xf32>, vector<3x130xf32> -> vector<112x130xf32>
    %c3 = arith.constant 3 : index
    %c0_21 = arith.constant 0 : index
    %c0_22 = arith.constant 0 : index
    %42 = vector.load %arg4[%c3, %c0_21, %c0_22] : memref<5x130x160xf32, #tpu.memory_space<vmem>>, vector<1x130x160xf32>
    %43 = vector.shape_cast %42 : vector<1x130x160xf32> to vector<130x160xf32>
    %cst_23 = arith.constant dense<0.000000e+00> : vector<112x160xf32>
    %44 = tpu.matmul %41, %43, %cst_23 {dimension_numbers = #tpu.dot_dimension_numbers<[1], [0], [0], [1], [0, 0, 1, 1], [], []>} : vector<112x130xf32>, vector<130x160xf32>, vector<112x160xf32> -> vector<112x160xf32>
    %45 = arith.addf %38, %44 : vector<112x160xf32>
    %46 = vector.extract_strided_slice %21 {offsets = [4, 0], sizes = [108, 130], strides = [1, 1]} : vector<112x130xf32> to vector<108x130xf32>
    %47 = vector.extract_strided_slice %21 {offsets = [0, 0], sizes = [4, 130], strides = [1, 1]} : vector<112x130xf32> to vector<4x130xf32>
    %48 = tpu.concatenate %46, %47 in 0 : vector<108x130xf32>, vector<4x130xf32> -> vector<112x130xf32>
    %c4 = arith.constant 4 : index
    %c0_24 = arith.constant 0 : index
    %c0_25 = arith.constant 0 : index
    %49 = vector.load %arg4[%c4, %c0_24, %c0_25] : memref<5x130x160xf32, #tpu.memory_space<vmem>>, vector<1x130x160xf32>
    %50 = vector.shape_cast %49 : vector<1x130x160xf32> to vector<130x160xf32>
    %cst_26 = arith.constant dense<0.000000e+00> : vector<112x160xf32>
    %51 = tpu.matmul %48, %50, %cst_26 {dimension_numbers = #tpu.dot_dimension_numbers<[1], [0], [0], [1], [0, 0, 1, 1], [], []>} : vector<112x130xf32>, vector<130x160xf32>, vector<112x160xf32> -> vector<112x160xf32>
    %52 = arith.addf %45, %51 : vector<112x160xf32>
    %53 = vector.extract_strided_slice %52 {offsets = [0, 0], sizes = [112, 80], strides = [1, 1]} : vector<112x160xf32> to vector<112x80xf32>
    %54 = vector.extract_strided_slice %52 {offsets = [0, 80], sizes = [112, 80], strides = [1, 1]} : vector<112x160xf32> to vector<112x80xf32>
    %55 = arith.maximumf %53, %54 : vector<112x80xf32>
    %56 = vector.extract_strided_slice %55 {offsets = [1, 0], sizes = [111, 80], strides = [1, 1]} : vector<112x80xf32> to vector<111x80xf32>
    %57 = vector.extract_strided_slice %55 {offsets = [0, 0], sizes = [1, 80], strides = [1, 1]} : vector<112x80xf32> to vector<1x80xf32>
    %58 = tpu.concatenate %56, %57 in 0 : vector<111x80xf32>, vector<1x80xf32> -> vector<112x80xf32>
    %59 = arith.maximumf %55, %58 : vector<112x80xf32>
    %c0_27 = arith.constant 0 : index
    %c0_28 = arith.constant 0 : index
    %60 = vector.load %arg5[%c0_27, %c0_28] : memref<1x80xf32, #tpu.memory_space<vmem>>, vector<1x80xf32>
    %61 = vector.broadcast %60 : vector<1x80xf32> to vector<112x80xf32>
    %62 = arith.addf %59, %61 : vector<112x80xf32>
    %cst_29 = arith.constant 0.000000e+00 : f32
    %63 = vector.broadcast %cst_29 : f32 to vector<112x80xf32>
    %64 = arith.maximumf %62, %63 : vector<112x80xf32>
    %65 = vector.shape_cast %64 : vector<112x80xf32> to vector<8x14x80xf32>
    %66 = vector.extract_strided_slice %65 {offsets = [0, 0, 0], sizes = [8, 1, 80], strides = [1, 1, 1]} : vector<8x14x80xf32> to vector<8x1x80xf32>
    %67 = vector.shape_cast %66 : vector<8x1x80xf32> to vector<8x80xf32>
    %c0_30 = arith.constant 0 : index
    %c0_31 = arith.constant 0 : index
    %c0_32 = arith.constant 0 : index
    %68 = vector.load %arg6[%c0_30, %c0_31, %c0_32] : memref<4x80x50xf32, #tpu.memory_space<vmem>>, vector<1x80x50xf32>
    %69 = vector.shape_cast %68 : vector<1x80x50xf32> to vector<80x50xf32>
    %cst_33 = arith.constant dense<0.000000e+00> : vector<8x50xf32>
    %70 = tpu.matmul %67, %69, %cst_33 {dimension_numbers = #tpu.dot_dimension_numbers<[1], [0], [0], [1], [0, 0, 1, 1], [], []>} : vector<8x80xf32>, vector<80x50xf32>, vector<8x50xf32> -> vector<8x50xf32>
    %71 = vector.extract_strided_slice %65 {offsets = [0, 2, 0], sizes = [8, 1, 80], strides = [1, 1, 1]} : vector<8x14x80xf32> to vector<8x1x80xf32>
    %72 = vector.shape_cast %71 : vector<8x1x80xf32> to vector<8x80xf32>
    %c1_34 = arith.constant 1 : index
    %c0_35 = arith.constant 0 : index
    %c0_36 = arith.constant 0 : index
    %73 = vector.load %arg6[%c1_34, %c0_35, %c0_36] : memref<4x80x50xf32, #tpu.memory_space<vmem>>, vector<1x80x50xf32>
    %74 = vector.shape_cast %73 : vector<1x80x50xf32> to vector<80x50xf32>
    %cst_37 = arith.constant dense<0.000000e+00> : vector<8x50xf32>
    %75 = tpu.matmul %72, %74, %cst_37 {dimension_numbers = #tpu.dot_dimension_numbers<[1], [0], [0], [1], [0, 0, 1, 1], [], []>} : vector<8x80xf32>, vector<80x50xf32>, vector<8x50xf32> -> vector<8x50xf32>
    %76 = arith.addf %70, %75 : vector<8x50xf32>
    %77 = vector.extract_strided_slice %65 {offsets = [0, 4, 0], sizes = [8, 1, 80], strides = [1, 1, 1]} : vector<8x14x80xf32> to vector<8x1x80xf32>
    %78 = vector.shape_cast %77 : vector<8x1x80xf32> to vector<8x80xf32>
    %c2_38 = arith.constant 2 : index
    %c0_39 = arith.constant 0 : index
    %c0_40 = arith.constant 0 : index
    %79 = vector.load %arg6[%c2_38, %c0_39, %c0_40] : memref<4x80x50xf32, #tpu.memory_space<vmem>>, vector<1x80x50xf32>
    %80 = vector.shape_cast %79 : vector<1x80x50xf32> to vector<80x50xf32>
    %cst_41 = arith.constant dense<0.000000e+00> : vector<8x50xf32>
    %81 = tpu.matmul %78, %80, %cst_41 {dimension_numbers = #tpu.dot_dimension_numbers<[1], [0], [0], [1], [0, 0, 1, 1], [], []>} : vector<8x80xf32>, vector<80x50xf32>, vector<8x50xf32> -> vector<8x50xf32>
    %82 = arith.addf %76, %81 : vector<8x50xf32>
    %83 = vector.extract_strided_slice %65 {offsets = [0, 6, 0], sizes = [8, 1, 80], strides = [1, 1, 1]} : vector<8x14x80xf32> to vector<8x1x80xf32>
    %84 = vector.shape_cast %83 : vector<8x1x80xf32> to vector<8x80xf32>
    %c3_42 = arith.constant 3 : index
    %c0_43 = arith.constant 0 : index
    %c0_44 = arith.constant 0 : index
    %85 = vector.load %arg6[%c3_42, %c0_43, %c0_44] : memref<4x80x50xf32, #tpu.memory_space<vmem>>, vector<1x80x50xf32>
    %86 = vector.shape_cast %85 : vector<1x80x50xf32> to vector<80x50xf32>
    %cst_45 = arith.constant dense<0.000000e+00> : vector<8x50xf32>
    %87 = tpu.matmul %84, %86, %cst_45 {dimension_numbers = #tpu.dot_dimension_numbers<[1], [0], [0], [1], [0, 0, 1, 1], [], []>} : vector<8x80xf32>, vector<80x50xf32>, vector<8x50xf32> -> vector<8x50xf32>
    %88 = arith.addf %82, %87 : vector<8x50xf32>
    %c0_46 = arith.constant 0 : index
    %c0_47 = arith.constant 0 : index
    %89 = vector.load %arg7[%c0_46, %c0_47] : memref<1x50xf32, #tpu.memory_space<vmem>>, vector<1x50xf32>
    %90 = vector.broadcast %89 : vector<1x50xf32> to vector<8x50xf32>
    %91 = arith.addf %88, %90 : vector<8x50xf32>
    %cst_48 = arith.constant 0.000000e+00 : f32
    %92 = vector.broadcast %cst_48 : f32 to vector<8x50xf32>
    %93 = arith.maximumf %91, %92 : vector<8x50xf32>
    %c0_49 = arith.constant 0 : index
    %c0_50 = arith.constant 0 : index
    %94 = vector.load %arg10[%c0_49, %c0_50] : memref<8x50xf32, #tpu.memory_space<vmem>>, vector<8x50xf32>
    tpu.vector_store %arg10[%c0_49, %c0_50], %93 {strides = array<i32>} : memref<8x50xf32, #tpu.memory_space<vmem>>, vector<8x50xf32>,
    %c0_51 = arith.constant 0 : index
    %c0_52 = arith.constant 0 : index
    %95 = vector.load %arg8[%c0_51, %c0_52] : memref<50x62xf32, #tpu.memory_space<vmem>>, vector<50x62xf32>
    %cst_53 = arith.constant dense<0.000000e+00> : vector<8x62xf32>
    %96 = tpu.matmul %93, %95, %cst_53 {dimension_numbers = #tpu.dot_dimension_numbers<[1], [0], [0], [1], [0, 0, 1, 1], [], []>} : vector<8x50xf32>, vector<50x62xf32>, vector<8x62xf32> -> vector<8x62xf32>
    %c0_54 = arith.constant 0 : index
    %c0_55 = arith.constant 0 : index
    %97 = vector.load %arg9[%c0_54, %c0_55] : memref<1x62xf32, #tpu.memory_space<vmem>>, vector<1x62xf32>
    %98 = vector.broadcast %97 : vector<1x62xf32> to vector<8x62xf32>
    %99 = arith.addf %96, %98 : vector<8x62xf32>
    %cst_56 = arith.constant dense<0xFF800000> : vector<8xf32>
    %100 = vector.multi_reduction <maximumf>, %99, %cst_56 [1] : vector<8x62xf32> to vector<8xf32>
    %101 = vector.shape_cast %100 : vector<8xf32> to vector<8x1xf32>
    %102 = vector.broadcast %101 : vector<8x1xf32> to vector<8x62xf32>
    %103 = arith.subf %99, %102 : vector<8x62xf32>
    %104 = math.exp %103 : vector<8x62xf32>
    %cst_57 = arith.constant dense<0.000000e+00> : vector<8xf32>
    %105 = vector.multi_reduction <add>, %104, %cst_57 [1] : vector<8x62xf32> to vector<8xf32>
    %106 = vector.shape_cast %105 : vector<8xf32> to vector<8x1xf32>
    %107 = math.log %106 : vector<8x1xf32>
    %108 = arith.addf %101, %107 : vector<8x1xf32>
    %109 = vector.broadcast %108 : vector<8x1xf32> to vector<8x62xf32>
    %110 = arith.subf %99, %109 : vector<8x62xf32>
    %c0_58 = arith.constant 0 : index
    %c0_59 = arith.constant 0 : index
    %111 = vector.load %arg11[%c0_58, %c0_59] : memref<8x62xf32, #tpu.memory_space<vmem>>, vector<8x62xf32>
    tpu.vector_store %arg11[%c0_58, %c0_59], %110 {strides = array<i32>} : memref<8x62xf32, #tpu.memory_space<vmem>>, vector<8x62xf32>,
    return
  }
  func.func @transform_0(%arg0: i32) -> (i32, i32) {
    %c0_i32 = arith.constant 0 : i32
    %c0_i32_0 = arith.constant 0 : i32
    return %arg0, %c0_i32 : i32, i32
  }
  func.func @transform_1(%arg0: i32) -> (i32, i32, i32) {
    %c0_i32 = arith.constant 0 : i32
    %c0_i32_0 = arith.constant 0 : i32
    %c0_i32_1 = arith.constant 0 : i32
    %c0_i32_2 = arith.constant 0 : i32
    return %c0_i32, %c0_i32_0, %c0_i32_1 : i32, i32, i32
  }
  func.func @transform_2(%arg0: i32) -> (i32, i32) {
    %c0_i32 = arith.constant 0 : i32
    %c0_i32_0 = arith.constant 0 : i32
    %c0_i32_1 = arith.constant 0 : i32
    return %c0_i32, %c0_i32_0 : i32, i32
  }
  func.func @transform_3(%arg0: i32) -> (i32, i32, i32) {
    %c0_i32 = arith.constant 0 : i32
    %c0_i32_0 = arith.constant 0 : i32
    %c0_i32_1 = arith.constant 0 : i32
    %c0_i32_2 = arith.constant 0 : i32
    return %c0_i32, %c0_i32_0, %c0_i32_1 : i32, i32, i32
  }
  func.func @transform_4(%arg0: i32) -> (i32, i32) {
    %c0_i32 = arith.constant 0 : i32
    %c0_i32_0 = arith.constant 0 : i32
    %c0_i32_1 = arith.constant 0 : i32
    return %c0_i32, %c0_i32_0 : i32, i32
  }
  func.func @transform_5(%arg0: i32) -> (i32, i32, i32) {
    %c0_i32 = arith.constant 0 : i32
    %c0_i32_0 = arith.constant 0 : i32
    %c0_i32_1 = arith.constant 0 : i32
    %c0_i32_2 = arith.constant 0 : i32
    return %c0_i32, %c0_i32_0, %c0_i32_1 : i32, i32, i32
  }
  func.func @transform_6(%arg0: i32) -> (i32, i32) {
    %c0_i32 = arith.constant 0 : i32
    %c0_i32_0 = arith.constant 0 : i32
    %c0_i32_1 = arith.constant 0 : i32
    return %c0_i32, %c0_i32_0 : i32, i32
  }
  func.func @transform_7(%arg0: i32) -> (i32, i32) {
    %c0_i32 = arith.constant 0 : i32
    %c0_i32_0 = arith.constant 0 : i32
    %c0_i32_1 = arith.constant 0 : i32
    return %c0_i32, %c0_i32_0 : i32, i32
  }
  func.func @transform_8(%arg0: i32) -> (i32, i32) {
    %c0_i32 = arith.constant 0 : i32
    %c0_i32_0 = arith.constant 0 : i32
    %c0_i32_1 = arith.constant 0 : i32
    return %c0_i32, %c0_i32_0 : i32, i32
  }
  func.func @transform_9(%arg0: i32) -> (i32, i32) {
    %c0_i32 = arith.constant 0 : i32
    %c0_i32_0 = arith.constant 0 : i32
    return %arg0, %c0_i32 : i32, i32
  }
  func.func @transform_10(%arg0: i32) -> (i32, i32) {
    %c0_i32 = arith.constant 0 : i32
    %c0_i32_0 = arith.constant 0 : i32
    return %arg0, %c0_i32 : i32, i32
  }
}

</mosaic_0001>

<llo_original>
// kernel: tile.13
$region0: #{tile.13}
  #allocation0 [shape = 's32[1]{0}', space=sflag, size = 0x4, scoped, tag = 'scoped memory for tile.13']
  %s0 = inlined_call_operand.vmem [shape: f32[10], index: 0, kind: input, shape index: {}]
  %s1 = inlined_call_operand.vmem [shape: f32[13,10], index: 1, kind: output, shape index: {}]
  // Predicated region
  $region2: #{tile.13} parent=0 // pred_check
    _
  $region3: #{tile.13} parent=0 // pred_check_branch
    %3 = sbr.rel (0) target = $region5
  $region4: #{tile.13} parent=0 // pred_region
    _
  $region5: #{tile.13} parent=0 // pred_fallthru
    _
  %v4 = vld [vmem:[%s0] ss:$0 sm:$0xff]
  %5 = vst [vmem:[%s1] sm:$0xff] %v4
  %s6 = scalar_lea.vmem %s1, 8
  %7 = vst [vmem:[%s6] sm:$0xff] %v4

// kernel: tile.14
$region0: #{tile.14}
  %s0 = inlined_call_operand.vmem [shape: f32[13,10], index: 0, kind: input, shape index: {}]
  %s1 = inlined_call_operand.hbm [shape: f32[1,130], index: 1, kind: output, shape index: {}]
  $region1: #{tile.14} parent=0
    #allocation0 [shape = 'u8[1024]{0}', space=vmem, size = 0x400, scoped, tag = 'operand span for operand 1']
    #allocation1 [shape = 's32[1]{0}', space=sflag, size = 0x4, scoped, tag = 'scoped memory for tile.14']
    #allocation2 [shape = 'u8[8192]{0}', space=vmem, size = 0x2000, scoped, tag = 'scoped mem for output reshape']
    %2 = vsyncpa [#allocation1], 0
    %v3 = vld [vmem:[%s0] sm:$0x1]
    %vm4 = vcmask 80896
    %5 = vst.msk [vmem:[#allocation2] sm:$0x1] %vm4, %v3
    %s6 = scalar_lea.vmem %s0, 12
    %v7 = vld [vmem:[%s6] sm:$0x1]
    %s8 = scalar_lea.vmem %s0, 12
    %v9 = vld [vmem:[%s8] sm:$0x1]
    %vm10 = vcmask 64512
    %v11 = vsel %vm10, %v9, %v7
    %12 = vrot.lane.b32.xlu0 %v11, 120
    %v13 = vpop.permute.xlu0 %12
    %vm14 = vcmask 15360
    %s15 = scalar_lea.vmem [#allocation2], 8
    %16 = vst.msk [vmem:[%s15] sm:$0x1] %vm14, %v13
    %vm17 = vcmask 1048512
    %18 = vst.msk [vmem:[#allocation2] sm:$0x1] %vm17, %v13
    %s19 = scalar_lea.vmem %s0, 11
    %v20 = vld [vmem:[%s19] sm:$0x1]
    %21 = vrot.lane.b32.xlu0 %v20, 110
    %v22 = vpop.permute.xlu0 %21
    %vm23 = vcmask 982896
    %24 = vst.msk [vmem:[#allocation2] sm:$0x1] %vm23, %v22
    %s25 = scalar_lea.vmem %s0, 10
    %v26 = vld [vmem:[%s25] sm:$0x1]
    %27 = vrot.lane.b32.xlu0 %v26, 100
    %v28 = vpop.permute.xlu0 %27
    %vm29 = vcmask 900896
    %30 = vst.msk [vmem:[#allocation2] sm:$0x1] %vm29, %v28
    %s31 = scalar_lea.vmem %s0, 9
    %v32 = vld [vmem:[%s31] sm:$0x1]
    %33 = vrot.lane.b32.xlu0 %v32, 90
    %v34 = vpop.permute.xlu0 %33
    %vm35 = vcmask 818896
    %36 = vst.msk [vmem:[#allocation2] sm:$0x1] %vm35, %v34
    %s37 = scalar_lea.vmem %s0, 8
    %v38 = vld [vmem:[%s37] sm:$0x1]
    %39 = vrot.lane.b32.xlu0 %v38, 80
    %v40 = vpop.permute.xlu0 %39
    %vm41 = vcmask 736896
    %42 = vst.msk [vmem:[#allocation2] sm:$0x1] %vm41, %v40
    %s43 = scalar_lea.vmem %s0, 7
    %v44 = vld [vmem:[%s43] sm:$0x1]
    %45 = vrot.lane.b32.xlu0 %v44, 70
    %v46 = vpop.permute.xlu0 %45
    %vm47 = vcmask 654896
    %48 = vst.msk [vmem:[#allocation2] sm:$0x1] %vm47, %v46
    %s49 = scalar_lea.vmem %s0, 6
    %v50 = vld [vmem:[%s49] sm:$0x1]
    %51 = vrot.lane.b32.xlu0 %v50, 60
    %v52 = vpop.permute.xlu0 %51
    %vm53 = vcmask 572896
    %54 = vst.msk [vmem:[#allocation2] sm:$0x1] %vm53, %v52
    %s55 = scalar_lea.vmem %s0, 5
    %v56 = vld [vmem:[%s55] sm:$0x1]
    %57 = vrot.lane.b32.xlu0 %v56, 50
    %v58 = vpop.permute.xlu0 %57
    %vm59 = vcmask 490896
    %60 = vst.msk [vmem:[#allocation2] sm:$0x1] %vm59, %v58
    %s61 = scalar_lea.vmem %s0, 4
    %v62 = vld [vmem:[%s61] sm:$0x1]
    %63 = vrot.lane.b32.xlu0 %v62, 40
    %v64 = vpop.permute.xlu0 %63
    %vm65 = vcmask 408896
    %66 = vst.msk [vmem:[#allocation2] sm:$0x1] %vm65, %v64
    %s67 = scalar_lea.vmem %s0, 3
    %v68 = vld [vmem:[%s67] sm:$0x1]
    %69 = vrot.lane.b32.xlu0 %v68, 30
    %v70 = vpop.permute.xlu0 %69
    %vm71 = vcmask 326896
    %72 = vst.msk [vmem:[#allocation2] sm:$0x1] %vm71, %v70
    %s73 = scalar_lea.vmem %s0, 2
    %v74 = vld [vmem:[%s73] sm:$0x1]
    %75 = vrot.lane.b32.xlu0 %v74, 20
    %v76 = vpop.permute.xlu0 %75
    %vm77 = vcmask 244896
    %78 = vst.msk [vmem:[#allocation2] sm:$0x1] %vm77, %v76
    %s79 = scalar_lea.vmem %s0, 1
    %v80 = vld [vmem:[%s79] sm:$0x1]
    %81 = vrot.lane.b32.xlu0 %v80, 10
    %v82 = vpop.permute.xlu0 %81
    %vm83 = vcmask 162896
    %84 = vst.msk [vmem:[#allocation2] sm:$0x1] %vm83, %v82
    %s86 = sshllo.u32 0, 1
    %v88 = vld [vmem:[#allocation2] sm:%s86]
    %s89 = sshllo.u32 0, 1
    %90 = vst [vmem:[#allocation0] sm:%s89] %v88
    %s91 = scalar_lea.vmem [#allocation2], 8
    %v92 = vld [vmem:[%s91] sm:%s86]
    %s93 = sshllo.u32 0, 1
    %s94 = scalar_lea.vmem [#allocation0], 1
    %95 = vst [vmem:[%s94] sm:%s93] %v92
    %s97 = ssub.s32 32, 32
    %98 = vsyncadd [#allocation1], %s97
    %s100 = sshll.u32 [#allocation0], 4
    %s101 = int_to_ptr.vmem [resolvable:$true] %s100
    %103 = dma.vmem_to_hbm [thread:$0]  %s101, 32, %s1, [#allocation1]
    %104 = dma.done [#allocation1], 32
    %105 = vsyncpa [#allocation1], 1

// kernel: tile.18
$region0: #{tile.18}
  #allocation0 [shape = 's32[1]{0}', space=sflag, size = 0x4, scoped, tag = 'scoped memory for tile.18']
  %s0 = inlined_call_operand.vmem [shape: f32[20], index: 0, kind: input, shape index: {}]
  %s1 = inlined_call_operand.vmem [shape: f32[4,20], index: 1, kind: output, shape index: {}]
  // Predicated region
  $region2: #{tile.18} parent=0 // pred_check
    _
  $region3: #{tile.18} parent=0 // pred_check_branch
    %3 = sbr.rel (0) target = $region5
  $region4: #{tile.18} parent=0 // pred_region
    _
  $region5: #{tile.18} parent=0 // pred_fallthru
    _
  %v4 = vld [vmem:[%s0] ss:$0 sm:$0xff]
  %5 = vst [vmem:[%s1] sm:$0xf] %v4

// kernel: tile.19
$region0: #{tile.19}
  %s0 = inlined_call_operand.vmem [shape: f32[4,20], index: 0, kind: input, shape index: {}]
  %s1 = inlined_call_operand.hbm [shape: f32[1,80], index: 1, kind: output, shape index: {}]
  $region1: #{tile.19} parent=0
    #allocation0 [shape = 'u8[512]{0}', space=vmem, size = 0x400, scoped, tag = 'operand span for operand 1']
    #allocation1 [shape = 's32[1]{0}', space=sflag, size = 0x4, scoped, tag = 'scoped memory for tile.19']
    #allocation2 [shape = 'u8[4096]{0}', space=vmem, size = 0x1000, scoped, tag = 'scoped mem for output reshape']
    #allocation3 [shape = 'u8[4096]{0}', space=vmem, size = 0x1000, scoped, tag = 'scoped mem for input reshape']
    %2 = vsyncpa [#allocation1], 0
    %s4 = sshllo.u32 0, 4
    %v5 = vld [vmem:[%s0] sm:%s4]
    %6 = vst [vmem:[#allocation3] sm:%s4] %v5
    %v7 = vld [vmem:[#allocation3] sm:$0x1]
    %vm8 = vcmask 162816
    %9 = vst.msk [vmem:[#allocation2] sm:$0x1] %vm8, %v7
    %s10 = scalar_lea.vmem [#allocation3], 3
    %v11 = vld [vmem:[%s10] sm:$0x1]
    %12 = vrot.lane.b32.xlu0 %v11, 60
    %v13 = vpop.permute.xlu0 %12
    %vm14 = vcmask 654816
    %15 = vst.msk [vmem:[#allocation2] sm:$0x1] %vm14, %v13
    %s16 = scalar_lea.vmem [#allocation3], 2
    %v17 = vld [vmem:[%s16] sm:$0x1]
    %18 = vrot.lane.b32.xlu0 %v17, 40
    %v19 = vpop.permute.xlu0 %18
    %vm20 = vcmask 490816
    %21 = vst.msk [vmem:[#allocation2] sm:$0x1] %vm20, %v19
    %s22 = scalar_lea.vmem [#allocation3], 1
    %v23 = vld [vmem:[%s22] sm:$0x1]
    %24 = vrot.lane.b32.xlu0 %v23, 20
    %v25 = vpop.permute.xlu0 %24
    %vm26 = vcmask 326816
    %27 = vst.msk [vmem:[#allocation2] sm:$0x1] %vm26, %v25
    %s29 = sshllo.u32 0, 1
    %v31 = vld [vmem:[#allocation2] sm:%s29]
    %s32 = sshllo.u32 0, 1
    %33 = vst [vmem:[#allocation0] sm:%s32] %v31
    %s35 = ssub.s32 16, 16
    %36 = vsyncadd [#allocation1], %s35
    %s38 = sshll.u32 [#allocation0], 4
    %s39 = int_to_ptr.vmem [resolvable:$true] %s38
    %41 = dma.vmem_to_hbm [thread:$0]  %s39, 16, %s1, [#allocation1]
    %42 = dma.done [#allocation1], 16
    %43 = vsyncpa [#allocation1], 1

// kernel: cnn_femnist_forward.1
$region0: #{cnn_femnist_forward.1}
  #allocation0 [shape = 'u32[]', space=smem, size = 0x4, offset = 0x4, fixed_abs, tag = 'smem constant byte address 0x4 - core index']
  #allocation1 [shape = 'u32[144,128]{1,0:T(1,128)}', space=vmem, size = 0x12000, scoped, tag = 'internal scratch']
  %s0 = inlined_call_operand.vmem [shape: f32[112,56], index: 0, kind: input, shape index: {}]
  %s1 = inlined_call_operand.vmem [shape: f32[2,56,520], index: 1, kind: input, shape index: {}]
  %s2 = inlined_call_operand.vmem [shape: f32[1,130], index: 2, kind: input, shape index: {}]
  %s3 = inlined_call_operand.vmem [shape: f32[5,130,160], index: 3, kind: input, shape index: {}]
  %s4 = inlined_call_operand.vmem [shape: f32[1,80], index: 4, kind: input, shape index: {}]
  %s5 = inlined_call_operand.vmem [shape: f32[4,80,50], index: 5, kind: input, shape index: {}]
  %s6 = inlined_call_operand.vmem [shape: f32[1,50], index: 6, kind: input, shape index: {}]
  %s7 = inlined_call_operand.vmem [shape: f32[50,62], index: 7, kind: input, shape index: {}]
  %s8 = inlined_call_operand.vmem [shape: f32[1,62], index: 8, kind: input, shape index: {}]
  %s9 = inlined_call_operand.vmem [shape: f32[8,50], index: 9, kind: output, shape index: {0}]
  %s10 = inlined_call_operand.vmem [shape: f32[8,62], index: 10, kind: output, shape index: {1}]
  %11 = xla_tuple %s9, %s10
  %s12 = sld [smem:[#allocation0]]
  $region54: #{cnn_femnist_forward.1} parent=0
    _
  %s14 = ssub.s32 1, %s12
  %s15 = scalar_select 0, %s14, %s12
  // Predicated region
  $region2: #{cnn_femnist_forward.1} parent=0 // pred_check
    _
  $region3: #{cnn_femnist_forward.1} parent=0 // pred_check_branch
    %17 = sbr.rel (0) target = $region5
  $region4: #{cnn_femnist_forward.1} parent=0 // pred_region
    _
  $region5: #{cnn_femnist_forward.1} parent=0 // pred_fallthru
    _
  // Predicated region
  $region6: #{cnn_femnist_forward.1} parent=0 // pred_check
    _
  $region7: #{cnn_femnist_forward.1} parent=0 // pred_check_branch
    %19 = sbr.rel (0) target = $region9
  $region8: #{cnn_femnist_forward.1} parent=0 // pred_region
    _
  $region9: #{cnn_femnist_forward.1} parent=0 // pred_fallthru
    _
  // Predicated region
  $region10: #{cnn_femnist_forward.1} parent=0 // pred_check
    _
  $region11: #{cnn_femnist_forward.1} parent=0 // pred_check_branch
    %21 = sbr.rel (0) target = $region13
  $region12: #{cnn_femnist_forward.1} parent=0 // pred_region
    _
  $region13: #{cnn_femnist_forward.1} parent=0 // pred_fallthru
    _
  // Predicated region
  $region14: #{cnn_femnist_forward.1} parent=0 // pred_check
    _
  $region15: #{cnn_femnist_forward.1} parent=0 // pred_check_branch
    %23 = sbr.rel (0) target = $region17
  $region16: #{cnn_femnist_forward.1} parent=0 // pred_region
    _
  $region17: #{cnn_femnist_forward.1} parent=0 // pred_fallthru
    _
  // Predicated region
  $region18: #{cnn_femnist_forward.1} parent=0 // pred_check
    _
  $region19: #{cnn_femnist_forward.1} parent=0 // pred_check_branch
    %25 = sbr.rel (0) target = $region21
  $region20: #{cnn_femnist_forward.1} parent=0 // pred_region
    _
  $region21: #{cnn_femnist_forward.1} parent=0 // pred_fallthru
    _
  // Predicated region
  $region22: #{cnn_femnist_forward.1} parent=0 // pred_check
    _
  $region23: #{cnn_femnist_forward.1} parent=0 // pred_check_branch
    %27 = sbr.rel (0) target = $region25
  $region24: #{cnn_femnist_forward.1} parent=0 // pred_region
    _
  $region25: #{cnn_femnist_forward.1} parent=0 // pred_fallthru
    _
  // Predicated region
  $region26: #{cnn_femnist_forward.1} parent=0 // pred_check
    _
  $region27: #{cnn_femnist_forward.1} parent=0 // pred_check_branch
    %29 = sbr.rel (0) target = $region29
  $region28: #{cnn_femnist_forward.1} parent=0 // pred_region
    _
  $region29: #{cnn_femnist_forward.1} parent=0 // pred_fallthru
    _
  // Predicated region
  $region30: #{cnn_femnist_forward.1} parent=0 // pred_check
    _
  $region31: #{cnn_femnist_forward.1} parent=0 // pred_check_branch
    %31 = sbr.rel (0) target = $region33
  $region32: #{cnn_femnist_forward.1} parent=0 // pred_region
    _
  $region33: #{cnn_femnist_forward.1} parent=0 // pred_fallthru
    _
  // Predicated region
  $region34: #{cnn_femnist_forward.1} parent=0 // pred_check
    _
  $region35: #{cnn_femnist_forward.1} parent=0 // pred_check_branch
    %33 = sbr.rel (0) target = $region37
  $region36: #{cnn_femnist_forward.1} parent=0 // pred_region
    _
  $region37: #{cnn_femnist_forward.1} parent=0 // pred_fallthru
    _
  %v34 = vld [vmem:[%s0] sm:$0xff]
  %v35 = vld [vmem:[%s0 + $0x8] sm:$0xff]
  %v36 = vld [vmem:[%s0 + $0x10] sm:$0xff]
  %v37 = vld [vmem:[%s0 + $0x18] sm:$0xff]
  %v38 = vld [vmem:[%s0 + $0x20] sm:$0xff]
  %v39 = vld [vmem:[%s0 + $0x28] sm:$0xff]
  %v40 = vld [vmem:[%s0 + $0x30] sm:$0xff]
  %v41 = vld [vmem:[%s0 + $0x38] sm:$0xff]
  %v42 = vld [vmem:[%s0 + $0x40] sm:$0xff]
  %v43 = vld [vmem:[%s0 + $0x48] sm:$0xff]
  %v44 = vld [vmem:[%s0 + $0x50] sm:$0xff]
  %v45 = vld [vmem:[%s0 + $0x58] sm:$0xff]
  %v46 = vld [vmem:[%s0 + $0x60] sm:$0xff]
  %v47 = vld [vmem:[%s0 + $0x68] sm:$0xff]
  %v48 = vld [vmem:[%s1] sm:$0xff]
  %v49 = vld [vmem:[%s1 + $0x8] sm:$0xff]
  %v50 = vld [vmem:[%s1 + $0x10] sm:$0xff]
  %v51 = vld [vmem:[%s1 + $0x18] sm:$0xff]
  %v52 = vld [vmem:[%s1 + $0x20] sm:$0xff]
  %v53 = vld [vmem:[%s1 + $0x28] sm:$0xff]
  %v54 = vld [vmem:[%s1 + $0x30] sm:$0xff]
  %v55 = vld [vmem:[%s1 + $0x38] sm:$0xff]
  %v56 = vld [vmem:[%s1 + $0x40] sm:$0xff]
  %v57 = vld [vmem:[%s1 + $0x48] sm:$0xff]
  %v58 = vld [vmem:[%s1 + $0x50] sm:$0xff]
  %v59 = vld [vmem:[%s1 + $0x58] sm:$0xff]
  %v60 = vld [vmem:[%s1 + $0x60] sm:$0xff]
  %v61 = vld [vmem:[%s1 + $0x68] sm:$0xff]
  %v62 = vld [vmem:[%s1 + $0x70] sm:$0xff]
  %v63 = vld [vmem:[%s1 + $0x78] sm:$0xff]
  %v64 = vld [vmem:[%s1 + $0x80] sm:$0xff]
  %v65 = vld [vmem:[%s1 + $0x88] sm:$0xff]
  %v66 = vld [vmem:[%s1 + $0x90] sm:$0xff]
  %v67 = vld [vmem:[%s1 + $0x98] sm:$0xff]
  %v68 = vld [vmem:[%s1 + $0xa0] sm:$0xff]
  %v69 = vld [vmem:[%s1 + $0xa8] sm:$0xff]
  %v70 = vld [vmem:[%s1 + $0xb0] sm:$0xff]
  %v71 = vld [vmem:[%s1 + $0xb8] sm:$0xff]
  %v72 = vld [vmem:[%s1 + $0xc0] sm:$0xff]
  %v73 = vld [vmem:[%s1 + $0xc8] sm:$0xff]
  %v74 = vld [vmem:[%s1 + $0xd0] sm:$0xff]
  %v75 = vld [vmem:[%s1 + $0xd8] sm:$0xff]
  %v76 = vld [vmem:[%s1 + $0xe0] sm:$0xff]
  %v77 = vld [vmem:[%s1 + $0xe8] sm:$0xff]
  %v78 = vld [vmem:[%s1 + $0xf0] sm:$0xff]
  %v79 = vld [vmem:[%s1 + $0xf8] sm:$0xff]
  %v80 = vld [vmem:[%s1 + $0x100] sm:$0xff]
  %v81 = vld [vmem:[%s1 + $0x108] sm:$0xff]
  %v82 = vld [vmem:[%s1 + $0x110] sm:$0xff]
  %vm97 = vcmask 1046528
  %v98 = vrot.slane %v34, 1
  %v99 = vrot.slane %v35, 1
  %v100 = vsel %vm97, %v98, %v99
  %v101 = vrot.slane %v36, 1
  %v102 = vsel %vm97, %v99, %v101
  %v103 = vrot.slane %v37, 1
  %v104 = vsel %vm97, %v101, %v103
  %v105 = vrot.slane %v38, 1
  %v106 = vsel %vm97, %v103, %v105
  %v107 = vrot.slane %v39, 1
  %v108 = vsel %vm97, %v105, %v107
  %v109 = vrot.slane %v40, 1
  %v110 = vsel %vm97, %v107, %v109
  %v111 = vrot.slane %v41, 1
  %v112 = vsel %vm97, %v109, %v111
  %v113 = vrot.slane %v42, 1
  %v114 = vsel %vm97, %v111, %v113
  %v115 = vrot.slane %v43, 1
  %v116 = vsel %vm97, %v113, %v115
  %v117 = vrot.slane %v44, 1
  %v118 = vsel %vm97, %v115, %v117
  %v119 = vrot.slane %v45, 1
  %v120 = vsel %vm97, %v117, %v119
  %v121 = vrot.slane %v46, 1
  %v122 = vsel %vm97, %v119, %v121
  %v123 = vrot.slane %v47, 1
  %v124 = vsel %vm97, %v121, %v123
  %v127 = vsel %vm97, %v123, %v98
  %s128 = scalar_lea.vmem %s1, 280
  %v129 = vld [vmem:[%s128] sm:$0xff]
  %v130 = vld [vmem:[%s128 + $0x8] sm:$0xff]
  %v131 = vld [vmem:[%s128 + $0x10] sm:$0xff]
  %v132 = vld [vmem:[%s128 + $0x18] sm:$0xff]
  %v133 = vld [vmem:[%s128 + $0x20] sm:$0xff]
  %v134 = vld [vmem:[%s128 + $0x28] sm:$0xff]
  %v135 = vld [vmem:[%s128 + $0x30] sm:$0xff]
  %v136 = vld [vmem:[%s128 + $0x38] sm:$0xff]
  %v137 = vld [vmem:[%s128 + $0x40] sm:$0xff]
  %v138 = vld [vmem:[%s128 + $0x48] sm:$0xff]
  %v139 = vld [vmem:[%s128 + $0x50] sm:$0xff]
  %v140 = vld [vmem:[%s128 + $0x58] sm:$0xff]
  %v141 = vld [vmem:[%s128 + $0x60] sm:$0xff]
  %v142 = vld [vmem:[%s128 + $0x68] sm:$0xff]
  %v143 = vld [vmem:[%s128 + $0x70] sm:$0xff]
  %v144 = vld [vmem:[%s128 + $0x78] sm:$0xff]
  %v145 = vld [vmem:[%s128 + $0x80] sm:$0xff]
  %v146 = vld [vmem:[%s128 + $0x88] sm:$0xff]
  %v147 = vld [vmem:[%s128 + $0x90] sm:$0xff]
  %v148 = vld [vmem:[%s128 + $0x98] sm:$0xff]
  %v149 = vld [vmem:[%s128 + $0xa0] sm:$0xff]
  %v150 = vld [vmem:[%s128 + $0xa8] sm:$0xff]
  %v151 = vld [vmem:[%s128 + $0xb0] sm:$0xff]
  %v152 = vld [vmem:[%s128 + $0xb8] sm:$0xff]
  %v153 = vld [vmem:[%s128 + $0xc0] sm:$0xff]
  %v154 = vld [vmem:[%s128 + $0xc8] sm:$0xff]
  %v155 = vld [vmem:[%s128 + $0xd0] sm:$0xff]
  %v156 = vld [vmem:[%s128 + $0xd8] sm:$0xff]
  %v157 = vld [vmem:[%s128 + $0xe0] sm:$0xff]
  %v158 = vld [vmem:[%s128 + $0xe8] sm:$0xff]
  %v159 = vld [vmem:[%s128 + $0xf0] sm:$0xff]
  %v160 = vld [vmem:[%s128 + $0xf8] sm:$0xff]
  %v161 = vld [vmem:[%s128 + $0x100] sm:$0xff]
  %v162 = vld [vmem:[%s128 + $0x108] sm:$0xff]
  %v163 = vld [vmem:[%s128 + $0x110] sm:$0xff]
  %vm164 = vcmask 457728
  %v165 = vsel %vm164, %v100, 0
  %v167 = vsel %vm164, %v102, 0
  %v169 = vsel %vm164, %v104, 0
  %v171 = vsel %vm164, %v106, 0
  %v173 = vsel %vm164, %v108, 0
  %v175 = vsel %vm164, %v110, 0
  %v177 = vsel %vm164, %v112, 0
  %v179 = vsel %vm164, %v114, 0
  %v181 = vsel %vm164, %v116, 0
  %v183 = vsel %vm164, %v118, 0
  %v185 = vsel %vm164, %v120, 0
  %v187 = vsel %vm164, %v122, 0
  %v189 = vsel %vm164, %v124, 0
  %v192 = vsel %vm164, %v127, 0
  %194 = vmatprep.subr.mxu0 %v130
  %195 = vmatpush1.msra.mxu0 %v129
  %196 = vmatprep.subr.mxu0 %v135
  %197 = vmatpush1.msra.mxu0 %v134
  %198 = vmatprep.subr.mxu0 %v140
  %199 = vmatpush1.msra.mxu0 %v139
  %200 = vmatprep.subr.mxu0 %v145
  %201 = vmatpush1.msra.mxu0 %v144
  %202 = vmatprep.subr.mxu0 %v150
  %203 = vmatpush1.msra.mxu0 %v149
  %204 = vmatprep.subr.mxu0 %v155
  %205 = vmatpush1.msra.mxu0 %v154
  %206 = vmatprep.subr.mxu0 %v160
  %207 = vmatpush1.msra.mxu0 %v159
  %208 = vmatprep.subr.mxu0 0.0
  %209 = vmatpush1.msra.mxu0 0.0
  %210 = vmatprep.subr.mxu0 0.0
  %211 = vmatpush1.msra.mxu0 0.0
  %212 = vmatprep.subr.mxu0 0.0
  %213 = vmatpush1.msra.mxu0 0.0
  %214 = vmatprep.subr.mxu0 0.0
  %215 = vmatpush1.msra.mxu0 0.0
  %216 = vmatprep.subr.mxu0 0.0
  %217 = vmatpush1.msra.mxu0 0.0
  %218 = vmatprep.subr.mxu0 0.0
  %219 = vmatpush1.msra.mxu0 0.0
  %220 = vmatprep.subr.mxu0 0.0
  %221 = vmatpush1.msra.mxu0 0.0
  %222 = vmatprep.subr.mxu0 0.0
  %223 = vmatpush1.msra.mxu0 0.0
  %224 = vmatprep.subr.mxu0 0.0
  %225 = vmatpush1.msra.mxu0 0.0
  %226 = vmatprep.subr.mxu0 0.0
  %227 = vmatpush1.msra.mxu0 0.0
  %228 = vmatprep.subr.mxu0 0.0
  %229 = vmatpush1.msra.mxu0 0.0
  %230 = vmatprep.subr.mxu0 0.0
  %231 = vmatpush1.msra.mxu0 0.0
  %232 = vmatprep.subr.mxu0 0.0
  %233 = vmatpush1.msra.mxu0 0.0
  %234 = vmatprep.subr.mxu0 0.0
  %235 = vmatpush1.msra.mxu0 0.0
  %236 = vmatprep.subr.mxu0 0.0
  %237 = vmatpush1.msra.mxu0 0.0
  %238 = vmatprep.subr.mxu0 0.0
  %239 = vmatpush1.msra.mxu0 0.0
  %240 = vmatprep.subr.mxu0 0.0
  %241 = vmatpush1.msra.mxu0 0.0
  %242 = vmatprep.subr.mxu0 0.0
  %243 = vmatpush1.msra.mxu0 0.0
  %244 = vmatprep.subr.mxu0 0.0
  %245 = vmatpush1.msra.mxu0 0.0
  %246 = vmatprep.subr.mxu0 0.0
  %247 = vmatpush1.msra.mxu0 0.0
  %248 = vmatprep.subr.mxu0 0.0
  %249 = vmatpush1.msra.mxu0 0.0
  %250 = vmatprep.subr.mxu0 0.0
  %251 = vmatpush1.msra.mxu0 0.0
  %252 = vmatprep.subr.mxu0 0.0
  %253 = vmatpush1.msra.mxu0 0.0
  %254 = vmatprep.subr.mxu0 0.0
  %255 = vmatpush1.msra.mxu0 0.0
  %256 = vmatprep.subr.mxu0 0.0
  %257 = vmatpush1.msra.mxu0 0.0
  %258 = vmatprep.mubr.f32.mxu0 0.0
  %259 = vmatmul.mubr.f32.gmra.mrb[0].mxu0 %v165
  %v260 = vpop.f32.mrb[0].mxu0
  %v261 = vadd.f32 0.0, %v260
  %v262 = vpop.f32.mrb[0].mxu0
  %v263 = vadd.f32 0.0, %v262
  %264 = vmatprep.mubr.f32.mxu0 0.0
  %265 = vmatmul.mubr.f32.gmra.mrb[0].mxu0 %v167
  %v266 = vpop.f32.mrb[0].mxu0
  %v267 = vadd.f32 0.0, %v266
  %v268 = vpop.f32.mrb[0].mxu0
  %v269 = vadd.f32 0.0, %v268
  %270 = vmatprep.mubr.f32.mxu0 0.0
  %271 = vmatmul.mubr.f32.gmra.mrb[0].mxu0 %v169
  %v272 = vpop.f32.mrb[0].mxu0
  %v273 = vadd.f32 0.0, %v272
  %v274 = vpop.f32.mrb[0].mxu0
  %v275 = vadd.f32 0.0, %v274
  %276 = vmatprep.mubr.f32.mxu0 0.0
  %277 = vmatmul.mubr.f32.gmra.mrb[0].mxu0 %v171
  %v278 = vpop.f32.mrb[0].mxu0
  %v279 = vadd.f32 0.0, %v278
  %v280 = vpop.f32.mrb[0].mxu0
  %v281 = vadd.f32 0.0, %v280
  %282 = vmatprep.mubr.f32.mxu0 0.0
  %283 = vmatmul.mubr.f32.gmra.mrb[0].mxu0 %v173
  %v284 = vpop.f32.mrb[0].mxu0
  %v285 = vadd.f32 0.0, %v284
  %v286 = vpop.f32.mrb[0].mxu0
  %v287 = vadd.f32 0.0, %v286
  %288 = vmatprep.mubr.f32.mxu0 0.0
  %289 = vmatmul.mubr.f32.gmra.mrb[0].mxu0 %v175
  %v290 = vpop.f32.mrb[0].mxu0
  %v291 = vadd.f32 0.0, %v290
  %v292 = vpop.f32.mrb[0].mxu0
  %v293 = vadd.f32 0.0, %v292
  %294 = vmatprep.mubr.f32.mxu0 0.0
  %295 = vmatmul.mubr.f32.gmra.mrb[0].mxu0 %v177
  %v296 = vpop.f32.mrb[0].mxu0
  %v297 = vadd.f32 0.0, %v296
  %v298 = vpop.f32.mrb[0].mxu0
  %v299 = vadd.f32 0.0, %v298
  %300 = vmatprep.mubr.f32.mxu0 0.0
  %301 = vmatmul.mubr.f32.gmra.mrb[0].mxu0 %v179
  %v302 = vpop.f32.mrb[0].mxu0
  %v303 = vadd.f32 0.0, %v302
  %v304 = vpop.f32.mrb[0].mxu0
  %v305 = vadd.f32 0.0, %v304
  %306 = vmatprep.mubr.f32.mxu0 0.0
  %307 = vmatmul.mubr.f32.gmra.mrb[0].mxu0 %v181
  %v308 = vpop.f32.mrb[0].mxu0
  %v309 = vadd.f32 0.0, %v308
  %v310 = vpop.f32.mrb[0].mxu0
  %v311 = vadd.f32 0.0, %v310
  %312 = vmatprep.mubr.f32.mxu0 0.0
  %313 = vmatmul.mubr.f32.gmra.mrb[0].mxu0 %v183
  %v314 = vpop.f32.mrb[0].mxu0
  %v315 = vadd.f32 0.0, %v314
  %v316 = vpop.f32.mrb[0].mxu0
  %v317 = vadd.f32 0.0, %v316
  %318 = vmatprep.mubr.f32.mxu0 0.0
  %319 = vmatmul.mubr.f32.gmra.mrb[0].mxu0 %v185
  %v320 = vpop.f32.mrb[0].mxu0
  %v321 = vadd.f32 0.0, %v320
  %v322 = vpop.f32.mrb[0].mxu0
  %v323 = vadd.f32 0.0, %v322
  %324 = vmatprep.mubr.f32.mxu0 0.0
  %325 = vmatmul.mubr.f32.gmra.mrb[0].mxu0 %v187
  %v326 = vpop.f32.mrb[0].mxu0
  %v327 = vadd.f32 0.0, %v326
  %v328 = vpop.f32.mrb[0].mxu0
  %v329 = vadd.f32 0.0, %v328
  %330 = vmatprep.mubr.f32.mxu0 0.0
  %331 = vmatmul.mubr.f32.gmra.mrb[0].mxu0 %v189
  %v332 = vpop.f32.mrb[0].mxu0
  %v333 = vadd.f32 0.0, %v332
  %v334 = vpop.f32.mrb[0].mxu0
  %v335 = vadd.f32 0.0, %v334
  %336 = vmatprep.mubr.f32.mxu0 0.0
  %337 = vmatmul.mubr.f32.gmra.mrb[0].mxu0 %v192
  %v338 = vpop.f32.mrb[0].mxu0
  %v339 = vadd.f32 0.0, %v338
  %v340 = vpop.f32.mrb[0].mxu0
  %v341 = vadd.f32 0.0, %v340
  %342 = vdwg.mxu0
  %343 = vmatprep.subr.mxu0 %v132
  %344 = vmatpush1.msra.mxu0 %v131
  %345 = vmatprep.subr.mxu0 %v137
  %346 = vmatpush1.msra.mxu0 %v136
  %347 = vmatprep.subr.mxu0 %v142
  %348 = vmatpush1.msra.mxu0 %v141
  %349 = vmatprep.subr.mxu0 %v147
  %350 = vmatpush1.msra.mxu0 %v146
  %351 = vmatprep.subr.mxu0 %v152
  %352 = vmatpush1.msra.mxu0 %v151
  %353 = vmatprep.subr.mxu0 %v157
  %354 = vmatpush1.msra.mxu0 %v156
  %355 = vmatprep.subr.mxu0 %v162
  %356 = vmatpush1.msra.mxu0 %v161
  %357 = vmatprep.subr.mxu0 0.0
  %358 = vmatpush1.msra.mxu0 0.0
  %359 = vmatprep.subr.mxu0 0.0
  %360 = vmatpush1.msra.mxu0 0.0
  %361 = vmatprep.subr.mxu0 0.0
  %362 = vmatpush1.msra.mxu0 0.0
  %363 = vmatprep.subr.mxu0 0.0
  %364 = vmatpush1.msra.mxu0 0.0
  %365 = vmatprep.subr.mxu0 0.0
  %366 = vmatpush1.msra.mxu0 0.0
  %367 = vmatprep.subr.mxu0 0.0
  %368 = vmatpush1.msra.mxu0 0.0
  %369 = vmatprep.subr.mxu0 0.0
  %370 = vmatpush1.msra.mxu0 0.0
  %371 = vmatprep.subr.mxu0 0.0
  %372 = vmatpush1.msra.mxu0 0.0
  %373 = vmatprep.subr.mxu0 0.0
  %374 = vmatpush1.msra.mxu0 0.0
  %375 = vmatprep.subr.mxu0 0.0
  %376 = vmatpush1.msra.mxu0 0.0
  %377 = vmatprep.subr.mxu0 0.0
  %378 = vmatpush1.msra.mxu0 0.0
  %379 = vmatprep.subr.mxu0 0.0
  %380 = vmatpush1.msra.mxu0 0.0
  %381 = vmatprep.subr.mxu0 0.0
  %382 = vmatpush1.msra.mxu0 0.0
  %383 = vmatprep.subr.mxu0 0.0
  %384 = vmatpush1.msra.mxu0 0.0
  %385 = vmatprep.subr.mxu0 0.0
  %386 = vmatpush1.msra.mxu0 0.0
  %387 = vmatprep.subr.mxu0 0.0
  %388 = vmatpush1.msra.mxu0 0.0
  %389 = vmatprep.subr.mxu0 0.0
  %390 = vmatpush1.msra.mxu0 0.0
  %391 = vmatprep.subr.mxu0 0.0
  %392 = vmatpush1.msra.mxu0 0.0
  %393 = vmatprep.subr.mxu0 0.0
  %394 = vmatpush1.msra.mxu0 0.0
  %395 = vmatprep.subr.mxu0 0.0
  %396 = vmatpush1.msra.mxu0 0.0
  %397 = vmatprep.subr.mxu0 0.0
  %398 = vmatpush1.msra.mxu0 0.0
  %399 = vmatprep.subr.mxu0 0.0
  %400 = vmatpush1.msra.mxu0 0.0
  %401 = vmatprep.subr.mxu0 0.0
  %402 = vmatpush1.msra.mxu0 0.0
  %403 = vmatprep.subr.mxu0 0.0
  %404 = vmatpush1.msra.mxu0 0.0
  %405 = vmatprep.subr.mxu0 0.0
  %406 = vmatpush1.msra.mxu0 0.0
  %407 = vmatprep.mubr.f32.mxu0 0.0
  %408 = vmatmul.mubr.f32.gmra.mrb[0].mxu0 %v165
  %v409 = vpop.f32.mrb[0].mxu0
  %v410 = vadd.f32 0.0, %v409
  %v411 = vpop.f32.mrb[0].mxu0
  %v412 = vadd.f32 0.0, %v411
  %413 = vmatprep.mubr.f32.mxu0 0.0
  %414 = vmatmul.mubr.f32.gmra.mrb[0].mxu0 %v167
  %v415 = vpop.f32.mrb[0].mxu0
  %v416 = vadd.f32 0.0, %v415
  %v417 = vpop.f32.mrb[0].mxu0
  %v418 = vadd.f32 0.0, %v417
  %419 = vmatprep.mubr.f32.mxu0 0.0
  %420 = vmatmul.mubr.f32.gmra.mrb[0].mxu0 %v169
  %v421 = vpop.f32.mrb[0].mxu0
  %v422 = vadd.f32 0.0, %v421
  %v423 = vpop.f32.mrb[0].mxu0
  %v424 = vadd.f32 0.0, %v423
  %425 = vmatprep.mubr.f32.mxu0 0.0
  %426 = vmatmul.mubr.f32.gmra.mrb[0].mxu0 %v171
  %v427 = vpop.f32.mrb[0].mxu0
  %v428 = vadd.f32 0.0, %v427
  %v429 = vpop.f32.mrb[0].mxu0
  %v430 = vadd.f32 0.0, %v429
  %431 = vmatprep.mubr.f32.mxu0 0.0
  %432 = vmatmul.mubr.f32.gmra.mrb[0].mxu0 %v173
  %v433 = vpop.f32.mrb[0].mxu0
  %v434 = vadd.f32 0.0, %v433
  %v435 = vpop.f32.mrb[0].mxu0
  %v436 = vadd.f32 0.0, %v435
  %437 = vmatprep.mubr.f32.mxu0 0.0
  %438 = vmatmul.mubr.f32.gmra.mrb[0].mxu0 %v175
  %v439 = vpop.f32.mrb[0].mxu0
  %v440 = vadd.f32 0.0, %v439
  %v441 = vpop.f32.mrb[0].mxu0
  %v442 = vadd.f32 0.0, %v441
  %443 = vmatprep.mubr.f32.mxu0 0.0
  %444 = vmatmul.mubr.f32.gmra.mrb[0].mxu0 %v177
  %v445 = vpop.f32.mrb[0].mxu0
  %v446 = vadd.f32 0.0, %v445
  %v447 = vpop.f32.mrb[0].mxu0
  %v448 = vadd.f32 0.0, %v447
  %449 = vmatprep.mubr.f32.mxu0 0.0
  %450 = vmatmul.mubr.f32.gmra.mrb[0].mxu0 %v179
  %v451 = vpop.f32.mrb[0].mxu0
  %v452 = vadd.f32 0.0, %v451
  %v453 = vpop.f32.mrb[0].mxu0
  %v454 = vadd.f32 0.0, %v453
  %455 = vmatprep.mubr.f32.mxu0 0.0
  %456 = vmatmul.mubr.f32.gmra.mrb[0].mxu0 %v181
  %v457 = vpop.f32.mrb[0].mxu0
  %v458 = vadd.f32 0.0, %v457
  %v459 = vpop.f32.mrb[0].mxu0
  %v460 = vadd.f32 0.0, %v459
  %461 = vmatprep.mubr.f32.mxu0 0.0
  %462 = vmatmul.mubr.f32.gmra.mrb[0].mxu0 %v183
  %v463 = vpop.f32.mrb[0].mxu0
  %v464 = vadd.f32 0.0, %v463
  %v465 = vpop.f32.mrb[0].mxu0
  %v466 = vadd.f32 0.0, %v465
  %467 = vmatprep.mubr.f32.mxu0 0.0
  %468 = vmatmul.mubr.f32.gmra.mrb[0].mxu0 %v185
  %v469 = vpop.f32.mrb[0].mxu0
  %v470 = vadd.f32 0.0, %v469
  %v471 = vpop.f32.mrb[0].mxu0
  %v472 = vadd.f32 0.0, %v471
  %473 = vmatprep.mubr.f32.mxu0 0.0
  %474 = vmatmul.mubr.f32.gmra.mrb[0].mxu0 %v187
  %v475 = vpop.f32.mrb[0].mxu0
  %v476 = vadd.f32 0.0, %v475
  %v477 = vpop.f32.mrb[0].mxu0
  %v478 = vadd.f32 0.0, %v477
  %479 = vmatprep.mubr.f32.mxu0 0.0
  %480 = vmatmul.mubr.f32.gmra.mrb[0].mxu0 %v189
  %v481 = vpop.f32.mrb[0].mxu0
  %v482 = vadd.f32 0.0, %v481
  %v483 = vpop.f32.mrb[0].mxu0
  %v484 = vadd.f32 0.0, %v483
  %485 = vmatprep.mubr.f32.mxu0 0.0
  %486 = vmatmul.mubr.f32.gmra.mrb[0].mxu0 %v192
  %v487 = vpop.f32.mrb[0].mxu0
  %v488 = vadd.f32 0.0, %v487
  %v489 = vpop.f32.mrb[0].mxu0
  %v490 = vadd.f32 0.0, %v489
  %491 = vdwg.mxu0
  %492 = vmatprep.subr.mxu0 0.0
  %493 = vmatpush1.msra.mxu0 %v133
  %494 = vmatprep.subr.mxu0 0.0
  %495 = vmatpush1.msra.mxu0 %v138
  %496 = vmatprep.subr.mxu0 0.0
  %497 = vmatpush1.msra.mxu0 %v143
  %498 = vmatprep.subr.mxu0 0.0
  %499 = vmatpush1.msra.mxu0 %v148
  %500 = vmatprep.subr.mxu0 0.0
  %501 = vmatpush1.msra.mxu0 %v153
  %502 = vmatprep.subr.mxu0 0.0
  %503 = vmatpush1.msra.mxu0 %v158
  %504 = vmatprep.subr.mxu0 0.0
  %505 = vmatpush1.msra.mxu0 %v163
  %506 = vmatprep.subr.mxu0 0.0
  %507 = vmatpush1.msra.mxu0 0.0
  %508 = vmatprep.subr.mxu0 0.0
  %509 = vmatpush1.msra.mxu0 0.0
  %510 = vmatprep.subr.mxu0 0.0
  %511 = vmatpush1.msra.mxu0 0.0
  %512 = vmatprep.subr.mxu0 0.0
  %513 = vmatpush1.msra.mxu0 0.0
  %514 = vmatprep.subr.mxu0 0.0
  %515 = vmatpush1.msra.mxu0 0.0
  %516 = vmatprep.subr.mxu0 0.0
  %517 = vmatpush1.msra.mxu0 0.0
  %518 = vmatprep.subr.mxu0 0.0
  %519 = vmatpush1.msra.mxu0 0.0
  %520 = vmatprep.subr.mxu0 0.0
  %521 = vmatpush1.msra.mxu0 0.0
  %522 = vmatprep.subr.mxu0 0.0
  %523 = vmatpush1.msra.mxu0 0.0
  %524 = vmatprep.subr.mxu0 0.0
  %525 = vmatpush1.msra.mxu0 0.0
  %526 = vmatprep.subr.mxu0 0.0
  %527 = vmatpush1.msra.mxu0 0.0
  %528 = vmatprep.subr.mxu0 0.0
  %529 = vmatpush1.msra.mxu0 0.0
  %530 = vmatprep.subr.mxu0 0.0
  %531 = vmatpush1.msra.mxu0 0.0
  %532 = vmatprep.subr.mxu0 0.0
  %533 = vmatpush1.msra.mxu0 0.0
  %534 = vmatprep.subr.mxu0 0.0
  %535 = vmatpush1.msra.mxu0 0.0
  %536 = vmatprep.subr.mxu0 0.0
  %537 = vmatpush1.msra.mxu0 0.0
  %538 = vmatprep.subr.mxu0 0.0
  %539 = vmatpush1.msra.mxu0 0.0
  %540 = vmatprep.subr.mxu0 0.0
  %541 = vmatpush1.msra.mxu0 0.0
  %542 = vmatprep.subr.mxu0 0.0
  %543 = vmatpush1.msra.mxu0 0.0
  %544 = vmatprep.subr.mxu0 0.0
  %545 = vmatpush1.msra.mxu0 0.0
  %546 = vmatprep.subr.mxu0 0.0
  %547 = vmatpush1.msra.mxu0 0.0
  %548 = vmatprep.subr.mxu0 0.0
  %549 = vmatpush1.msra.mxu0 0.0
  %550 = vmatprep.subr.mxu0 0.0
  %551 = vmatpush1.msra.mxu0 0.0
  %552 = vmatprep.subr.mxu0 0.0
  %553 = vmatpush1.msra.mxu0 0.0
  %554 = vmatprep.subr.mxu0 0.0
  %555 = vmatpush1.msra.mxu0 0.0
  %556 = vmatprep.mubr.f32.mxu0 0.0
  %557 = vmatmul.mubr.f32.gmra.mrb[0].mxu0 %v165
  %v558 = vpop.f32.mrb[0].mxu0
  %v559 = vadd.f32 0.0, %v558
  %v560 = vpop.f32.mrb[0].mxu0
  %561 = vmatprep.mubr.f32.mxu0 0.0
  %562 = vmatmul.mubr.f32.gmra.mrb[0].mxu0 %v167
  %v563 = vpop.f32.mrb[0].mxu0
  %v564 = vadd.f32 0.0, %v563
  %v565 = vpop.f32.mrb[0].mxu0
  %566 = vmatprep.mubr.f32.mxu0 0.0
  %567 = vmatmul.mubr.f32.gmra.mrb[0].mxu0 %v169
  %v568 = vpop.f32.mrb[0].mxu0
  %v569 = vadd.f32 0.0, %v568
  %v570 = vpop.f32.mrb[0].mxu0
  %571 = vmatprep.mubr.f32.mxu0 0.0
  %572 = vmatmul.mubr.f32.gmra.mrb[0].mxu0 %v171
  %v573 = vpop.f32.mrb[0].mxu0
  %v574 = vadd.f32 0.0, %v573
  %v575 = vpop.f32.mrb[0].mxu0
  %576 = vmatprep.mubr.f32.mxu0 0.0
  %577 = vmatmul.mubr.f32.gmra.mrb[0].mxu0 %v173
  %v578 = vpop.f32.mrb[0].mxu0
  %v579 = vadd.f32 0.0, %v578
  %v580 = vpop.f32.mrb[0].mxu0
  %581 = vmatprep.mubr.f32.mxu0 0.0
  %582 = vmatmul.mubr.f32.gmra.mrb[0].mxu0 %v175
  %v583 = vpop.f32.mrb[0].mxu0
  %v584 = vadd.f32 0.0, %v583
  %v585 = vpop.f32.mrb[0].mxu0
  %586 = vmatprep.mubr.f32.mxu0 0.0
  %587 = vmatmul.mubr.f32.gmra.mrb[0].mxu0 %v177
  %v588 = vpop.f32.mrb[0].mxu0
  %v589 = vadd.f32 0.0, %v588
  %v590 = vpop.f32.mrb[0].mxu0
  %591 = vmatprep.mubr.f32.mxu0 0.0
  %592 = vmatmul.mubr.f32.gmra.mrb[0].mxu0 %v179
  %v593 = vpop.f32.mrb[0].mxu0
  %v594 = vadd.f32 0.0, %v593
  %v595 = vpop.f32.mrb[0].mxu0
  %596 = vmatprep.mubr.f32.mxu0 0.0
  %597 = vmatmul.mubr.f32.gmra.mrb[0].mxu0 %v181
  %v598 = vpop.f32.mrb[0].mxu0
  %v599 = vadd.f32 0.0, %v598
  %v600 = vpop.f32.mrb[0].mxu0
  %601 = vmatprep.mubr.f32.mxu0 0.0
  %602 = vmatmul.mubr.f32.gmra.mrb[0].mxu0 %v183
  %v603 = vpop.f32.mrb[0].mxu0
  %v604 = vadd.f32 0.0, %v603
  %v605 = vpop.f32.mrb[0].mxu0
  %606 = vmatprep.mubr.f32.mxu0 0.0
  %607 = vmatmul.mubr.f32.gmra.mrb[0].mxu0 %v185
  %v608 = vpop.f32.mrb[0].mxu0
  %v609 = vadd.f32 0.0, %v608
  %v610 = vpop.f32.mrb[0].mxu0
  %611 = vmatprep.mubr.f32.mxu0 0.0
  %612 = vmatmul.mubr.f32.gmra.mrb[0].mxu0 %v187
  %v613 = vpop.f32.mrb[0].mxu0
  %v614 = vadd.f32 0.0, %v613
  %v615 = vpop.f32.mrb[0].mxu0
  %616 = vmatprep.mubr.f32.mxu0 0.0
  %617 = vmatmul.mubr.f32.gmra.mrb[0].mxu0 %v189
  %v618 = vpop.f32.mrb[0].mxu0
  %v619 = vadd.f32 0.0, %v618
  %v620 = vpop.f32.mrb[0].mxu0
  %621 = vmatprep.mubr.f32.mxu0 0.0
  %622 = vmatmul.mubr.f32.gmra.mrb[0].mxu0 %v192
  %v623 = vpop.f32.mrb[0].mxu0
  %v624 = vadd.f32 0.0, %v623
  %v625 = vpop.f32.mrb[0].mxu0
  %626 = vdwg.mxu0
  %v627 = vsel %vm164, %v34, 0
  %v629 = vsel %vm164, %v35, 0
  %v631 = vsel %vm164, %v36, 0
  %v633 = vsel %vm164, %v37, 0
  %v635 = vsel %vm164, %v38, 0
  %v637 = vsel %vm164, %v39, 0
  %v639 = vsel %vm164, %v40, 0
  %v641 = vsel %vm164, %v41, 0
  %v643 = vsel %vm164, %v42, 0
  %v645 = vsel %vm164, %v43, 0
  %v647 = vsel %vm164, %v44, 0
  %v649 = vsel %vm164, %v45, 0
  %v651 = vsel %vm164, %v46, 0
  %v653 = vsel %vm164, %v47, 0
  %655 = vmatprep.subr.mxu0 %v49
  %656 = vmatpush1.msra.mxu0 %v48
  %657 = vmatprep.subr.mxu0 %v54
  %658 = vmatpush1.msra.mxu0 %v53
  %659 = vmatprep.subr.mxu0 %v59
  %660 = vmatpush1.msra.mxu0 %v58
  %661 = vmatprep.subr.mxu0 %v64
  %662 = vmatpush1.msra.mxu0 %v63
  %663 = vmatprep.subr.mxu0 %v69
  %664 = vmatpush1.msra.mxu0 %v68
  %665 = vmatprep.subr.mxu0 %v74
  %666 = vmatpush1.msra.mxu0 %v73
  %667 = vmatprep.subr.mxu0 %v79
  %668 = vmatpush1.msra.mxu0 %v78
  %669 = vmatprep.subr.mxu0 0.0
  %670 = vmatpush1.msra.mxu0 0.0
  %671 = vmatprep.subr.mxu0 0.0
  %672 = vmatpush1.msra.mxu0 0.0
  %673 = vmatprep.subr.mxu0 0.0
  %674 = vmatpush1.msra.mxu0 0.0
  %675 = vmatprep.subr.mxu0 0.0
  %676 = vmatpush1.msra.mxu0 0.0
  %677 = vmatprep.subr.mxu0 0.0
  %678 = vmatpush1.msra.mxu0 0.0
  %679 = vmatprep.subr.mxu0 0.0
  %680 = vmatpush1.msra.mxu0 0.0
  %681 = vmatprep.subr.mxu0 0.0
  %682 = vmatpush1.msra.mxu0 0.0
  %683 = vmatprep.subr.mxu0 0.0
  %684 = vmatpush1.msra.mxu0 0.0
  %685 = vmatprep.subr.mxu0 0.0
  %686 = vmatpush1.msra.mxu0 0.0
  %687 = vmatprep.subr.mxu0 0.0
  %688 = vmatpush1.msra.mxu0 0.0
  %689 = vmatprep.subr.mxu0 0.0
  %690 = vmatpush1.msra.mxu0 0.0
  %691 = vmatprep.subr.mxu0 0.0
  %692 = vmatpush1.msra.mxu0 0.0
  %693 = vmatprep.subr.mxu0 0.0
  %694 = vmatpush1.msra.mxu0 0.0
  %695 = vmatprep.subr.mxu0 0.0
  %696 = vmatpush1.msra.mxu0 0.0
  %697 = vmatprep.subr.mxu0 0.0
  %698 = vmatpush1.msra.mxu0 0.0
  %699 = vmatprep.subr.mxu0 0.0
  %700 = vmatpush1.msra.mxu0 0.0
  %701 = vmatprep.subr.mxu0 0.0
  %702 = vmatpush1.msra.mxu0 0.0
  %703 = vmatprep.subr.mxu0 0.0
  %704 = vmatpush1.msra.mxu0 0.0
  %705 = vmatprep.subr.mxu0 0.0
  %706 = vmatpush1.msra.mxu0 0.0
  %707 = vmatprep.subr.mxu0 0.0
  %708 = vmatpush1.msra.mxu0 0.0
  %709 = vmatprep.subr.mxu0 0.0
  %710 = vmatpush1.msra.mxu0 0.0
  %711 = vmatprep.subr.mxu0 0.0
  %712 = vmatpush1.msra.mxu0 0.0
  %713 = vmatprep.subr.mxu0 0.0
  %714 = vmatpush1.msra.mxu0 0.0
  %715 = vmatprep.subr.mxu0 0.0
  %716 = vmatpush1.msra.mxu0 0.0
  %717 = vmatprep.subr.mxu0 0.0
  %718 = vmatpush1.msra.mxu0 0.0
  %719 = vmatprep.mubr.f32.mxu0 0.0
  %720 = vmatmul.mubr.f32.gmra.mrb[0].mxu0 %v627
  %v721 = vpop.f32.mrb[0].mxu0
  %v722 = vadd.f32 %v261, %v721
  %v723 = vpop.f32.mrb[0].mxu0
  %v724 = vadd.f32 %v263, %v723
  %725 = vmatprep.mubr.f32.mxu0 0.0
  %726 = vmatmul.mubr.f32.gmra.mrb[0].mxu0 %v629
  %v727 = vpop.f32.mrb[0].mxu0
  %v728 = vadd.f32 %v267, %v727
  %v729 = vpop.f32.mrb[0].mxu0
  %v730 = vadd.f32 %v269, %v729
  %731 = vmatprep.mubr.f32.mxu0 0.0
  %732 = vmatmul.mubr.f32.gmra.mrb[0].mxu0 %v631
  %v733 = vpop.f32.mrb[0].mxu0
  %v734 = vadd.f32 %v273, %v733
  %v735 = vpop.f32.mrb[0].mxu0
  %v736 = vadd.f32 %v275, %v735
  %737 = vmatprep.mubr.f32.mxu0 0.0
  %738 = vmatmul.mubr.f32.gmra.mrb[0].mxu0 %v633
  %v739 = vpop.f32.mrb[0].mxu0
  %v740 = vadd.f32 %v279, %v739
  %v741 = vpop.f32.mrb[0].mxu0
  %v742 = vadd.f32 %v281, %v741
  %743 = vmatprep.mubr.f32.mxu0 0.0
  %744 = vmatmul.mubr.f32.gmra.mrb[0].mxu0 %v635
  %v745 = vpop.f32.mrb[0].mxu0
  %v746 = vadd.f32 %v285, %v745
  %v747 = vpop.f32.mrb[0].mxu0
  %v748 = vadd.f32 %v287, %v747
  %749 = vmatprep.mubr.f32.mxu0 0.0
  %750 = vmatmul.mubr.f32.gmra.mrb[0].mxu0 %v637
  %v751 = vpop.f32.mrb[0].mxu0
  %v752 = vadd.f32 %v291, %v751
  %v753 = vpop.f32.mrb[0].mxu0
  %v754 = vadd.f32 %v293, %v753
  %755 = vmatprep.mubr.f32.mxu0 0.0
  %756 = vmatmul.mubr.f32.gmra.mrb[0].mxu0 %v639
  %v757 = vpop.f32.mrb[0].mxu0
  %v758 = vadd.f32 %v297, %v757
  %v759 = vpop.f32.mrb[0].mxu0
  %v760 = vadd.f32 %v299, %v759
  %761 = vmatprep.mubr.f32.mxu0 0.0
  %762 = vmatmul.mubr.f32.gmra.mrb[0].mxu0 %v641
  %v763 = vpop.f32.mrb[0].mxu0
  %v764 = vadd.f32 %v303, %v763
  %v765 = vpop.f32.mrb[0].mxu0
  %v766 = vadd.f32 %v305, %v765
  %767 = vmatprep.mubr.f32.mxu0 0.0
  %768 = vmatmul.mubr.f32.gmra.mrb[0].mxu0 %v643
  %v769 = vpop.f32.mrb[0].mxu0
  %v770 = vadd.f32 %v309, %v769
  %v771 = vpop.f32.mrb[0].mxu0
  %v772 = vadd.f32 %v311, %v771
  %773 = vmatprep.mubr.f32.mxu0 0.0
  %774 = vmatmul.mubr.f32.gmra.mrb[0].mxu0 %v645
  %v775 = vpop.f32.mrb[0].mxu0
  %v776 = vadd.f32 %v315, %v775
  %v777 = vpop.f32.mrb[0].mxu0
  %v778 = vadd.f32 %v317, %v777
  %779 = vmatprep.mubr.f32.mxu0 0.0
  %780 = vmatmul.mubr.f32.gmra.mrb[0].mxu0 %v647
  %v781 = vpop.f32.mrb[0].mxu0
  %v782 = vadd.f32 %v321, %v781
  %v783 = vpop.f32.mrb[0].mxu0
  %v784 = vadd.f32 %v323, %v783
  %785 = vmatprep.mubr.f32.mxu0 0.0
  %786 = vmatmul.mubr.f32.gmra.mrb[0].mxu0 %v649
  %v787 = vpop.f32.mrb[0].mxu0
  %v788 = vadd.f32 %v327, %v787
  %v789 = vpop.f32.mrb[0].mxu0
  %v790 = vadd.f32 %v329, %v789
  %791 = vmatprep.mubr.f32.mxu0 0.0
  %792 = vmatmul.mubr.f32.gmra.mrb[0].mxu0 %v651
  %v793 = vpop.f32.mrb[0].mxu0
  %v794 = vadd.f32 %v333, %v793
  %v795 = vpop.f32.mrb[0].mxu0
  %v796 = vadd.f32 %v335, %v795
  %797 = vmatprep.mubr.f32.mxu0 0.0
  %798 = vmatmul.mubr.f32.gmra.mrb[0].mxu0 %v653
  %v799 = vpop.f32.mrb[0].mxu0
  %v800 = vadd.f32 %v339, %v799
  %v801 = vpop.f32.mrb[0].mxu0
  %v802 = vadd.f32 %v341, %v801
  %803 = vdwg.mxu0
  %804 = vmatprep.subr.mxu0 %v51
  %805 = vmatpush1.msra.mxu0 %v50
  %806 = vmatprep.subr.mxu0 %v56
  %807 = vmatpush1.msra.mxu0 %v55
  %808 = vmatprep.subr.mxu0 %v61
  %809 = vmatpush1.msra.mxu0 %v60
  %810 = vmatprep.subr.mxu0 %v66
  %811 = vmatpush1.msra.mxu0 %v65
  %812 = vmatprep.subr.mxu0 %v71
  %813 = vmatpush1.msra.mxu0 %v70
  %814 = vmatprep.subr.mxu0 %v76
  %815 = vmatpush1.msra.mxu0 %v75
  %816 = vmatprep.subr.mxu0 %v81
  %817 = vmatpush1.msra.mxu0 %v80
  %818 = vmatprep.subr.mxu0 0.0
  %819 = vmatpush1.msra.mxu0 0.0
  %820 = vmatprep.subr.mxu0 0.0
  %821 = vmatpush1.msra.mxu0 0.0
  %822 = vmatprep.subr.mxu0 0.0
  %823 = vmatpush1.msra.mxu0 0.0
  %824 = vmatprep.subr.mxu0 0.0
  %825 = vmatpush1.msra.mxu0 0.0
  %826 = vmatprep.subr.mxu0 0.0
  %827 = vmatpush1.msra.mxu0 0.0
  %828 = vmatprep.subr.mxu0 0.0
  %829 = vmatpush1.msra.mxu0 0.0
  %830 = vmatprep.subr.mxu0 0.0
  %831 = vmatpush1.msra.mxu0 0.0
  %832 = vmatprep.subr.mxu0 0.0
  %833 = vmatpush1.msra.mxu0 0.0
  %834 = vmatprep.subr.mxu0 0.0
  %835 = vmatpush1.msra.mxu0 0.0
  %836 = vmatprep.subr.mxu0 0.0
  %837 = vmatpush1.msra.mxu0 0.0
  %838 = vmatprep.subr.mxu0 0.0
  %839 = vmatpush1.msra.mxu0 0.0
  %840 = vmatprep.subr.mxu0 0.0
  %841 = vmatpush1.msra.mxu0 0.0
  %842 = vmatprep.subr.mxu0 0.0
  %843 = vmatpush1.msra.mxu0 0.0
  %844 = vmatprep.subr.mxu0 0.0
  %845 = vmatpush1.msra.mxu0 0.0
  %846 = vmatprep.subr.mxu0 0.0
  %847 = vmatpush1.msra.mxu0 0.0
  %848 = vmatprep.subr.mxu0 0.0
  %849 = vmatpush1.msra.mxu0 0.0
  %850 = vmatprep.subr.mxu0 0.0
  %851 = vmatpush1.msra.mxu0 0.0
  %852 = vmatprep.subr.mxu0 0.0
  %853 = vmatpush1.msra.mxu0 0.0
  %854 = vmatprep.subr.mxu0 0.0
  %855 = vmatpush1.msra.mxu0 0.0
  %856 = vmatprep.subr.mxu0 0.0
  %857 = vmatpush1.msra.mxu0 0.0
  %858 = vmatprep.subr.mxu0 0.0
  %859 = vmatpush1.msra.mxu0 0.0
  %860 = vmatprep.subr.mxu0 0.0
  %861 = vmatpush1.msra.mxu0 0.0
  %862 = vmatprep.subr.mxu0 0.0
  %863 = vmatpush1.msra.mxu0 0.0
  %864 = vmatprep.subr.mxu0 0.0
  %865 = vmatpush1.msra.mxu0 0.0
  %866 = vmatprep.subr.mxu0 0.0
  %867 = vmatpush1.msra.mxu0 0.0
  %868 = vmatprep.mubr.f32.mxu0 0.0
  %869 = vmatmul.mubr.f32.gmra.mrb[0].mxu0 %v627
  %v870 = vpop.f32.mrb[0].mxu0
  %v871 = vadd.f32 %v410, %v870
  %v872 = vpop.f32.mrb[0].mxu0
  %v873 = vadd.f32 %v412, %v872
  %874 = vmatprep.mubr.f32.mxu0 0.0
  %875 = vmatmul.mubr.f32.gmra.mrb[0].mxu0 %v629
  %v876 = vpop.f32.mrb[0].mxu0
  %v877 = vadd.f32 %v416, %v876
  %v878 = vpop.f32.mrb[0].mxu0
  %v879 = vadd.f32 %v418, %v878
  %880 = vmatprep.mubr.f32.mxu0 0.0
  %881 = vmatmul.mubr.f32.gmra.mrb[0].mxu0 %v631
  %v882 = vpop.f32.mrb[0].mxu0
  %v883 = vadd.f32 %v422, %v882
  %v884 = vpop.f32.mrb[0].mxu0
  %v885 = vadd.f32 %v424, %v884
  %886 = vmatprep.mubr.f32.mxu0 0.0
  %887 = vmatmul.mubr.f32.gmra.mrb[0].mxu0 %v633
  %v888 = vpop.f32.mrb[0].mxu0
  %v889 = vadd.f32 %v428, %v888
  %v890 = vpop.f32.mrb[0].mxu0
  %v891 = vadd.f32 %v430, %v890
  %892 = vmatprep.mubr.f32.mxu0 0.0
  %893 = vmatmul.mubr.f32.gmra.mrb[0].mxu0 %v635
  %v894 = vpop.f32.mrb[0].mxu0
  %v895 = vadd.f32 %v434, %v894
  %v896 = vpop.f32.mrb[0].mxu0
  %v897 = vadd.f32 %v436, %v896
  %898 = vmatprep.mubr.f32.mxu0 0.0
  %899 = vmatmul.mubr.f32.gmra.mrb[0].mxu0 %v637
  %v900 = vpop.f32.mrb[0].mxu0
  %v901 = vadd.f32 %v440, %v900
  %v902 = vpop.f32.mrb[0].mxu0
  %v903 = vadd.f32 %v442, %v902
  %904 = vmatprep.mubr.f32.mxu0 0.0
  %905 = vmatmul.mubr.f32.gmra.mrb[0].mxu0 %v639
  %v906 = vpop.f32.mrb[0].mxu0
  %v907 = vadd.f32 %v446, %v906
  %v908 = vpop.f32.mrb[0].mxu0
  %v909 = vadd.f32 %v448, %v908
  %910 = vmatprep.mubr.f32.mxu0 0.0
  %911 = vmatmul.mubr.f32.gmra.mrb[0].mxu0 %v641
  %v912 = vpop.f32.mrb[0].mxu0
  %v913 = vadd.f32 %v452, %v912
  %v914 = vpop.f32.mrb[0].mxu0
  %v915 = vadd.f32 %v454, %v914
  %916 = vmatprep.mubr.f32.mxu0 0.0
  %917 = vmatmul.mubr.f32.gmra.mrb[0].mxu0 %v643
  %v918 = vpop.f32.mrb[0].mxu0
  %v919 = vadd.f32 %v458, %v918
  %v920 = vpop.f32.mrb[0].mxu0
  %v921 = vadd.f32 %v460, %v920
  %922 = vmatprep.mubr.f32.mxu0 0.0
  %923 = vmatmul.mubr.f32.gmra.mrb[0].mxu0 %v645
  %v924 = vpop.f32.mrb[0].mxu0
  %v925 = vadd.f32 %v464, %v924
  %v926 = vpop.f32.mrb[0].mxu0
  %v927 = vadd.f32 %v466, %v926
  %928 = vmatprep.mubr.f32.mxu0 0.0
  %929 = vmatmul.mubr.f32.gmra.mrb[0].mxu0 %v647
  %v930 = vpop.f32.mrb[0].mxu0
  %v931 = vadd.f32 %v470, %v930
  %v932 = vpop.f32.mrb[0].mxu0
  %v933 = vadd.f32 %v472, %v932
  %934 = vmatprep.mubr.f32.mxu0 0.0
  %935 = vmatmul.mubr.f32.gmra.mrb[0].mxu0 %v649
  %v936 = vpop.f32.mrb[0].mxu0
  %v937 = vadd.f32 %v476, %v936
  %v938 = vpop.f32.mrb[0].mxu0
  %v939 = vadd.f32 %v478, %v938
  %940 = vmatprep.mubr.f32.mxu0 0.0
  %941 = vmatmul.mubr.f32.gmra.mrb[0].mxu0 %v651
  %v942 = vpop.f32.mrb[0].mxu0
  %v943 = vadd.f32 %v482, %v942
  %v944 = vpop.f32.mrb[0].mxu0
  %v945 = vadd.f32 %v484, %v944
  %946 = vmatprep.mubr.f32.mxu0 0.0
  %947 = vmatmul.mubr.f32.gmra.mrb[0].mxu0 %v653
  %v948 = vpop.f32.mrb[0].mxu0
  %v949 = vadd.f32 %v488, %v948
  %v950 = vpop.f32.mrb[0].mxu0
  %v951 = vadd.f32 %v490, %v950
  %952 = vdwg.mxu0
  %953 = vmatprep.subr.mxu0 0.0
  %954 = vmatpush1.msra.mxu0 %v52
  %955 = vmatprep.subr.mxu0 0.0
  %956 = vmatpush1.msra.mxu0 %v57
  %957 = vmatprep.subr.mxu0 0.0
  %958 = vmatpush1.msra.mxu0 %v62
  %959 = vmatprep.subr.mxu0 0.0
  %960 = vmatpush1.msra.mxu0 %v67
  %961 = vmatprep.subr.mxu0 0.0
  %962 = vmatpush1.msra.mxu0 %v72
  %963 = vmatprep.subr.mxu0 0.0
  %964 = vmatpush1.msra.mxu0 %v77
  %965 = vmatprep.subr.mxu0 0.0
  %966 = vmatpush1.msra.mxu0 %v82
  %967 = vmatprep.subr.mxu0 0.0
  %968 = vmatpush1.msra.mxu0 0.0
  %969 = vmatprep.subr.mxu0 0.0
  %970 = vmatpush1.msra.mxu0 0.0
  %971 = vmatprep.subr.mxu0 0.0
  %972 = vmatpush1.msra.mxu0 0.0
  %973 = vmatprep.subr.mxu0 0.0
  %974 = vmatpush1.msra.mxu0 0.0
  %975 = vmatprep.subr.mxu0 0.0
  %976 = vmatpush1.msra.mxu0 0.0
  %977 = vmatprep.subr.mxu0 0.0
  %978 = vmatpush1.msra.mxu0 0.0
  %979 = vmatprep.subr.mxu0 0.0
  %980 = vmatpush1.msra.mxu0 0.0
  %981 = vmatprep.subr.mxu0 0.0
  %982 = vmatpush1.msra.mxu0 0.0
  %983 = vmatprep.subr.mxu0 0.0
  %984 = vmatpush1.msra.mxu0 0.0
  %985 = vmatprep.subr.mxu0 0.0
  %986 = vmatpush1.msra.mxu0 0.0
  %987 = vmatprep.subr.mxu0 0.0
  %988 = vmatpush1.msra.mxu0 0.0
  %989 = vmatprep.subr.mxu0 0.0
  %990 = vmatpush1.msra.mxu0 0.0
  %991 = vmatprep.subr.mxu0 0.0
  %992 = vmatpush1.msra.mxu0 0.0
  %993 = vmatprep.subr.mxu0 0.0
  %994 = vmatpush1.msra.mxu0 0.0
  %995 = vmatprep.subr.mxu0 0.0
  %996 = vmatpush1.msra.mxu0 0.0
  %997 = vmatprep.subr.mxu0 0.0
  %998 = vmatpush1.msra.mxu0 0.0
  %999 = vmatprep.subr.mxu0 0.0
  %1000 = vmatpush1.msra.mxu0 0.0
  %1001 = vmatprep.subr.mxu0 0.0
  %1002 = vmatpush1.msra.mxu0 0.0
  %1003 = vmatprep.subr.mxu0 0.0
  %1004 = vmatpush1.msra.mxu0 0.0
  %1005 = vmatprep.subr.mxu0 0.0
  %1006 = vmatpush1.msra.mxu0 0.0
  %1007 = vmatprep.subr.mxu0 0.0
  %1008 = vmatpush1.msra.mxu0 0.0
  %1009 = vmatprep.subr.mxu0 0.0
  %1010 = vmatpush1.msra.mxu0 0.0
  %1011 = vmatprep.subr.mxu0 0.0
  %1012 = vmatpush1.msra.mxu0 0.0
  %1013 = vmatprep.subr.mxu0 0.0
  %1014 = vmatpush1.msra.mxu0 0.0
  %1015 = vmatprep.subr.mxu0 0.0
  %1016 = vmatpush1.msra.mxu0 0.0
  %1017 = vmatprep.mubr.f32.mxu0 0.0
  %1018 = vmatmul.mubr.f32.gmra.mrb[0].mxu0 %v627
  %v1019 = vpop.f32.mrb[0].mxu0
  %v1020 = vadd.f32 %v559, %v1019
  %v1021 = vpop.f32.mrb[0].mxu0
  %1022 = vmatprep.mubr.f32.mxu0 0.0
  %1023 = vmatmul.mubr.f32.gmra.mrb[0].mxu0 %v629
  %v1024 = vpop.f32.mrb[0].mxu0
  %v1025 = vadd.f32 %v564, %v1024
  %v1026 = vpop.f32.mrb[0].mxu0
  %1027 = vmatprep.mubr.f32.mxu0 0.0
  %1028 = vmatmul.mubr.f32.gmra.mrb[0].mxu0 %v631
  %v1029 = vpop.f32.mrb[0].mxu0
  %v1030 = vadd.f32 %v569, %v1029
  %v1031 = vpop.f32.mrb[0].mxu0
  %1032 = vmatprep.mubr.f32.mxu0 0.0
  %1033 = vmatmul.mubr.f32.gmra.mrb[0].mxu0 %v633
  %v1034 = vpop.f32.mrb[0].mxu0
  %v1035 = vadd.f32 %v574, %v1034
  %v1036 = vpop.f32.mrb[0].mxu0
  %1037 = vmatprep.mubr.f32.mxu0 0.0
  %1038 = vmatmul.mubr.f32.gmra.mrb[0].mxu0 %v635
  %v1039 = vpop.f32.mrb[0].mxu0
  %v1040 = vadd.f32 %v579, %v1039
  %v1041 = vpop.f32.mrb[0].mxu0
  %1042 = vmatprep.mubr.f32.mxu0 0.0
  %1043 = vmatmul.mubr.f32.gmra.mrb[0].mxu0 %v637
  %v1044 = vpop.f32.mrb[0].mxu0
  %v1045 = vadd.f32 %v584, %v1044
  %v1046 = vpop.f32.mrb[0].mxu0
  %1047 = vmatprep.mubr.f32.mxu0 0.0
  %1048 = vmatmul.mubr.f32.gmra.mrb[0].mxu0 %v639
  %v1049 = vpop.f32.mrb[0].mxu0
  %v1050 = vadd.f32 %v589, %v1049
  %v1051 = vpop.f32.mrb[0].mxu0
  %1052 = vmatprep.mubr.f32.mxu0 0.0
  %1053 = vmatmul.mubr.f32.gmra.mrb[0].mxu0 %v641
  %v1054 = vpop.f32.mrb[0].mxu0
  %v1055 = vadd.f32 %v594, %v1054
  %v1056 = vpop.f32.mrb[0].mxu0
  %1057 = vmatprep.mubr.f32.mxu0 0.0
  %1058 = vmatmul.mubr.f32.gmra.mrb[0].mxu0 %v643
  %v1059 = vpop.f32.mrb[0].mxu0
  %v1060 = vadd.f32 %v599, %v1059
  %v1061 = vpop.f32.mrb[0].mxu0
  %1062 = vmatprep.mubr.f32.mxu0 0.0
  %1063 = vmatmul.mubr.f32.gmra.mrb[0].mxu0 %v645
  %v1064 = vpop.f32.mrb[0].mxu0
  %v1065 = vadd.f32 %v604, %v1064
  %v1066 = vpop.f32.mrb[0].mxu0
  %1067 = vmatprep.mubr.f32.mxu0 0.0
  %1068 = vmatmul.mubr.f32.gmra.mrb[0].mxu0 %v647
  %v1069 = vpop.f32.mrb[0].mxu0
  %v1070 = vadd.f32 %v609, %v1069
  %v1071 = vpop.f32.mrb[0].mxu0
  %1072 = vmatprep.mubr.f32.mxu0 0.0
  %1073 = vmatmul.mubr.f32.gmra.mrb[0].mxu0 %v649
  %v1074 = vpop.f32.mrb[0].mxu0
  %v1075 = vadd.f32 %v614, %v1074
  %v1076 = vpop.f32.mrb[0].mxu0
  %1077 = vmatprep.mubr.f32.mxu0 0.0
  %1078 = vmatmul.mubr.f32.gmra.mrb[0].mxu0 %v651
  %v1079 = vpop.f32.mrb[0].mxu0
  %v1080 = vadd.f32 %v619, %v1079
  %v1081 = vpop.f32.mrb[0].mxu0
  %1082 = vmatprep.mubr.f32.mxu0 0.0
  %1083 = vmatmul.mubr.f32.gmra.mrb[0].mxu0 %v653
  %v1084 = vpop.f32.mrb[0].mxu0
  %v1085 = vadd.f32 %v624, %v1084
  %v1086 = vpop.f32.mrb[0].mxu0
  %1087 = vdwg.mxu0
  %1130 = vrot.lane.b32.xlu0 %v871, 124
  %v1131 = vpop.permute.xlu0 %1130
  %1132 = vrot.lane.b32.xlu0 %v873, 124
  %v1133 = vpop.permute.xlu0 %1132
  %1134 = vrot.lane.b32.xlu0 %v1020, 124
  %v1135 = vpop.permute.xlu0 %1134
  %1136 = vrot.lane.b32.xlu0 %v877, 124
  %v1137 = vpop.permute.xlu0 %1136
  %1138 = vrot.lane.b32.xlu0 %v879, 124
  %v1139 = vpop.permute.xlu0 %1138
  %1140 = vrot.lane.b32.xlu0 %v1025, 124
  %v1141 = vpop.permute.xlu0 %1140
  %1142 = vrot.lane.b32.xlu0 %v883, 124
  %v1143 = vpop.permute.xlu0 %1142
  %1144 = vrot.lane.b32.xlu0 %v885, 124
  %v1145 = vpop.permute.xlu0 %1144
  %1146 = vrot.lane.b32.xlu0 %v1030, 124
  %v1147 = vpop.permute.xlu0 %1146
  %1148 = vrot.lane.b32.xlu0 %v889, 124
  %v1149 = vpop.permute.xlu0 %1148
  %1150 = vrot.lane.b32.xlu0 %v891, 124
  %v1151 = vpop.permute.xlu0 %1150
  %1152 = vrot.lane.b32.xlu0 %v1035, 124
  %v1153 = vpop.permute.xlu0 %1152
  %1154 = vrot.lane.b32.xlu0 %v895, 124
  %v1155 = vpop.permute.xlu0 %1154
  %1156 = vrot.lane.b32.xlu0 %v897, 124
  %v1157 = vpop.permute.xlu0 %1156
  %1158 = vrot.lane.b32.xlu0 %v1040, 124
  %v1159 = vpop.permute.xlu0 %1158
  %1160 = vrot.lane.b32.xlu0 %v901, 124
  %v1161 = vpop.permute.xlu0 %1160
  %1162 = vrot.lane.b32.xlu0 %v903, 124
  %v1163 = vpop.permute.xlu0 %1162
  %1164 = vrot.lane.b32.xlu0 %v1045, 124
  %v1165 = vpop.permute.xlu0 %1164
  %1166 = vrot.lane.b32.xlu0 %v907, 124
  %v1167 = vpop.permute.xlu0 %1166
  %1168 = vrot.lane.b32.xlu0 %v909, 124
  %v1169 = vpop.permute.xlu0 %1168
  %1170 = vrot.lane.b32.xlu0 %v1050, 124
  %v1171 = vpop.permute.xlu0 %1170
  %1172 = vrot.lane.b32.xlu0 %v913, 124
  %v1173 = vpop.permute.xlu0 %1172
  %1174 = vrot.lane.b32.xlu0 %v915, 124
  %v1175 = vpop.permute.xlu0 %1174
  %1176 = vrot.lane.b32.xlu0 %v1055, 124
  %v1177 = vpop.permute.xlu0 %1176
  %1178 = vrot.lane.b32.xlu0 %v919, 124
  %v1179 = vpop.permute.xlu0 %1178
  %1180 = vrot.lane.b32.xlu0 %v921, 124
  %v1181 = vpop.permute.xlu0 %1180
  %1182 = vrot.lane.b32.xlu0 %v1060, 124
  %v1183 = vpop.permute.xlu0 %1182
  %1184 = vrot.lane.b32.xlu0 %v925, 124
  %v1185 = vpop.permute.xlu0 %1184
  %1186 = vrot.lane.b32.xlu0 %v927, 124
  %v1187 = vpop.permute.xlu0 %1186
  %1188 = vrot.lane.b32.xlu0 %v1065, 124
  %v1189 = vpop.permute.xlu0 %1188
  %1190 = vrot.lane.b32.xlu0 %v931, 124
  %v1191 = vpop.permute.xlu0 %1190
  %1192 = vrot.lane.b32.xlu0 %v933, 124
  %v1193 = vpop.permute.xlu0 %1192
  %1194 = vrot.lane.b32.xlu0 %v1070, 124
  %v1195 = vpop.permute.xlu0 %1194
  %1196 = vrot.lane.b32.xlu0 %v937, 124
  %v1197 = vpop.permute.xlu0 %1196
  %1198 = vrot.lane.b32.xlu0 %v939, 124
  %v1199 = vpop.permute.xlu0 %1198
  %1200 = vrot.lane.b32.xlu0 %v1075, 124
  %v1201 = vpop.permute.xlu0 %1200
  %1202 = vrot.lane.b32.xlu0 %v943, 124
  %v1203 = vpop.permute.xlu0 %1202
  %1204 = vrot.lane.b32.xlu0 %v945, 124
  %v1205 = vpop.permute.xlu0 %1204
  %1206 = vrot.lane.b32.xlu0 %v1080, 124
  %v1207 = vpop.permute.xlu0 %1206
  %1208 = vrot.lane.b32.xlu0 %v949, 124
  %v1209 = vpop.permute.xlu0 %1208
  %1210 = vrot.lane.b32.xlu0 %v951, 124
  %v1211 = vpop.permute.xlu0 %1210
  %1212 = vrot.lane.b32.xlu0 %v1085, 124
  %v1213 = vpop.permute.xlu0 %1212
  %vm1214 = vcmask 1014784
  %v1215 = vsel %vm1214, %v1131, %v1133
  %v1216 = vsel %vm1214, %v1133, %v1135
  %v1217 = vsel %vm1214, %v1137, %v1139
  %v1218 = vsel %vm1214, %v1139, %v1141
  %v1219 = vsel %vm1214, %v1143, %v1145
  %v1220 = vsel %vm1214, %v1145, %v1147
  %v1221 = vsel %vm1214, %v1149, %v1151
  %v1222 = vsel %vm1214, %v1151, %v1153
  %v1223 = vsel %vm1214, %v1155, %v1157
  %v1224 = vsel %vm1214, %v1157, %v1159
  %v1225 = vsel %vm1214, %v1161, %v1163
  %v1226 = vsel %vm1214, %v1163, %v1165
  %v1227 = vsel %vm1214, %v1167, %v1169
  %v1228 = vsel %vm1214, %v1169, %v1171
  %v1229 = vsel %vm1214, %v1173, %v1175
  %v1230 = vsel %vm1214, %v1175, %v1177
  %v1231 = vsel %vm1214, %v1179, %v1181
  %v1232 = vsel %vm1214, %v1181, %v1183
  %v1233 = vsel %vm1214, %v1185, %v1187
  %v1234 = vsel %vm1214, %v1187, %v1189
  %v1235 = vsel %vm1214, %v1191, %v1193
  %v1236 = vsel %vm1214, %v1193, %v1195
  %v1237 = vsel %vm1214, %v1197, %v1199
  %v1238 = vsel %vm1214, %v1199, %v1201
  %v1239 = vsel %vm1214, %v1203, %v1205
  %v1240 = vsel %vm1214, %v1205, %v1207
  %v1241 = vsel %vm1214, %v1209, %v1211
  %v1242 = vsel %vm1214, %v1211, %v1213
  %v1285 = vmax.f32 %v722, %v1215
  %v1286 = vmax.f32 %v724, %v1216
  %v1287 = vmax.f32 %v871, %v1135
  %v1288 = vmax.f32 %v728, %v1217
  %v1289 = vmax.f32 %v730, %v1218
  %v1290 = vmax.f32 %v877, %v1141
  %v1291 = vmax.f32 %v734, %v1219
  %v1292 = vmax.f32 %v736, %v1220
  %v1293 = vmax.f32 %v883, %v1147
  %v1294 = vmax.f32 %v740, %v1221
  %v1295 = vmax.f32 %v742, %v1222
  %v1296 = vmax.f32 %v889, %v1153
  %v1297 = vmax.f32 %v746, %v1223
  %v1298 = vmax.f32 %v748, %v1224
  %v1299 = vmax.f32 %v895, %v1159
  %v1300 = vmax.f32 %v752, %v1225
  %v1301 = vmax.f32 %v754, %v1226
  %v1302 = vmax.f32 %v901, %v1165
  %v1303 = vmax.f32 %v758, %v1227
  %v1304 = vmax.f32 %v760, %v1228
  %v1305 = vmax.f32 %v907, %v1171
  %v1306 = vmax.f32 %v764, %v1229
  %v1307 = vmax.f32 %v766, %v1230
  %v1308 = vmax.f32 %v913, %v1177
  %v1309 = vmax.f32 %v770, %v1231
  %v1310 = vmax.f32 %v772, %v1232
  %v1311 = vmax.f32 %v919, %v1183
  %v1312 = vmax.f32 %v776, %v1233
  %v1313 = vmax.f32 %v778, %v1234
  %v1314 = vmax.f32 %v925, %v1189
  %v1315 = vmax.f32 %v782, %v1235
  %v1316 = vmax.f32 %v784, %v1236
  %v1317 = vmax.f32 %v931, %v1195
  %v1318 = vmax.f32 %v788, %v1237
  %v1319 = vmax.f32 %v790, %v1238
  %v1320 = vmax.f32 %v937, %v1201
  %v1321 = vmax.f32 %v794, %v1239
  %v1322 = vmax.f32 %v796, %v1240
  %v1323 = vmax.f32 %v943, %v1207
  %v1324 = vmax.f32 %v800, %v1241
  %v1325 = vmax.f32 %v802, %v1242
  %v1326 = vmax.f32 %v949, %v1213
  %1355 = vrot.lane.b32.xlu0 %v1286, 126
  %v1356 = vpop.permute.xlu0 %1355
  %1357 = vrot.lane.b32.xlu0 %v1287, 126
  %v1358 = vpop.permute.xlu0 %1357
  %1359 = vrot.lane.b32.xlu0 %v1289, 126
  %v1360 = vpop.permute.xlu0 %1359
  %1361 = vrot.lane.b32.xlu0 %v1290, 126
  %v1362 = vpop.permute.xlu0 %1361
  %1363 = vrot.lane.b32.xlu0 %v1292, 126
  %v1364 = vpop.permute.xlu0 %1363
  %1365 = vrot.lane.b32.xlu0 %v1293, 126
  %v1366 = vpop.permute.xlu0 %1365
  %1367 = vrot.lane.b32.xlu0 %v1295, 126
  %v1368 = vpop.permute.xlu0 %1367
  %1369 = vrot.lane.b32.xlu0 %v1296, 126
  %v1370 = vpop.permute.xlu0 %1369
  %1371 = vrot.lane.b32.xlu0 %v1298, 126
  %v1372 = vpop.permute.xlu0 %1371
  %1373 = vrot.lane.b32.xlu0 %v1299, 126
  %v1374 = vpop.permute.xlu0 %1373
  %1375 = vrot.lane.b32.xlu0 %v1301, 126
  %v1376 = vpop.permute.xlu0 %1375
  %1377 = vrot.lane.b32.xlu0 %v1302, 126
  %v1378 = vpop.permute.xlu0 %1377
  %1379 = vrot.lane.b32.xlu0 %v1304, 126
  %v1380 = vpop.permute.xlu0 %1379
  %1381 = vrot.lane.b32.xlu0 %v1305, 126
  %v1382 = vpop.permute.xlu0 %1381
  %1383 = vrot.lane.b32.xlu0 %v1307, 126
  %v1384 = vpop.permute.xlu0 %1383
  %1385 = vrot.lane.b32.xlu0 %v1308, 126
  %v1386 = vpop.permute.xlu0 %1385
  %1387 = vrot.lane.b32.xlu0 %v1310, 126
  %v1388 = vpop.permute.xlu0 %1387
  %1389 = vrot.lane.b32.xlu0 %v1311, 126
  %v1390 = vpop.permute.xlu0 %1389
  %1391 = vrot.lane.b32.xlu0 %v1313, 126
  %v1392 = vpop.permute.xlu0 %1391
  %1393 = vrot.lane.b32.xlu0 %v1314, 126
  %v1394 = vpop.permute.xlu0 %1393
  %1395 = vrot.lane.b32.xlu0 %v1316, 126
  %v1396 = vpop.permute.xlu0 %1395
  %1397 = vrot.lane.b32.xlu0 %v1317, 126
  %v1398 = vpop.permute.xlu0 %1397
  %1399 = vrot.lane.b32.xlu0 %v1319, 126
  %v1400 = vpop.permute.xlu0 %1399
  %1401 = vrot.lane.b32.xlu0 %v1320, 126
  %v1402 = vpop.permute.xlu0 %1401
  %1403 = vrot.lane.b32.xlu0 %v1322, 126
  %v1404 = vpop.permute.xlu0 %1403
  %1405 = vrot.lane.b32.xlu0 %v1323, 126
  %v1406 = vpop.permute.xlu0 %1405
  %1407 = vrot.lane.b32.xlu0 %v1325, 126
  %v1408 = vpop.permute.xlu0 %1407
  %1409 = vrot.lane.b32.xlu0 %v1326, 126
  %v1410 = vpop.permute.xlu0 %1409
  %vm1411 = vcmask 1031168
  %v1412 = vsel %vm1411, %v1356, %v1358
  %v1413 = vsel %vm1411, %v1360, %v1362
  %v1414 = vsel %vm1411, %v1364, %v1366
  %v1415 = vsel %vm1411, %v1368, %v1370
  %v1416 = vsel %vm1411, %v1372, %v1374
  %v1417 = vsel %vm1411, %v1376, %v1378
  %v1418 = vsel %vm1411, %v1380, %v1382
  %v1419 = vsel %vm1411, %v1384, %v1386
  %v1420 = vsel %vm1411, %v1388, %v1390
  %v1421 = vsel %vm1411, %v1392, %v1394
  %v1422 = vsel %vm1411, %v1396, %v1398
  %v1423 = vsel %vm1411, %v1400, %v1402
  %v1424 = vsel %vm1411, %v1404, %v1406
  %v1425 = vsel %vm1411, %v1408, %v1410
  %v1454 = vmax.f32 %v1285, %v1412
  %v1455 = vmax.f32 %v1286, %v1358
  %v1456 = vmax.f32 %v1288, %v1413
  %v1457 = vmax.f32 %v1289, %v1362
  %v1458 = vmax.f32 %v1291, %v1414
  %v1459 = vmax.f32 %v1292, %v1366
  %v1460 = vmax.f32 %v1294, %v1415
  %v1461 = vmax.f32 %v1295, %v1370
  %v1462 = vmax.f32 %v1297, %v1416
  %v1463 = vmax.f32 %v1298, %v1374
  %v1464 = vmax.f32 %v1300, %v1417
  %v1465 = vmax.f32 %v1301, %v1378
  %v1466 = vmax.f32 %v1303, %v1418
  %v1467 = vmax.f32 %v1304, %v1382
  %v1468 = vmax.f32 %v1306, %v1419
  %v1469 = vmax.f32 %v1307, %v1386
  %v1470 = vmax.f32 %v1309, %v1420
  %v1471 = vmax.f32 %v1310, %v1390
  %v1472 = vmax.f32 %v1312, %v1421
  %v1473 = vmax.f32 %v1313, %v1394
  %v1474 = vmax.f32 %v1315, %v1422
  %v1475 = vmax.f32 %v1316, %v1398
  %v1476 = vmax.f32 %v1318, %v1423
  %v1477 = vmax.f32 %v1319, %v1402
  %v1478 = vmax.f32 %v1321, %v1424
  %v1479 = vmax.f32 %v1322, %v1406
  %v1480 = vmax.f32 %v1324, %v1425
  %v1481 = vmax.f32 %v1325, %v1410
  %v1482 = vld [vmem:[%s2] sm:$0x3]
  %v1484 = vlaneseq
  %v1485 = vshrl.u32 %v1484, 7
  %v1486 = vsub.s32 0, %v1485
  %v1487 = vrot.slane %v1482, %v1486
  %v1488 = vlaneseq
  %v1489 = vshrl.u32 %v1488, 7
  %v1490 = vsub.s32 1, %v1489
  %v1491 = vrot.slane %v1482, %v1490
  %v1494 = vadd.f32 %v1454, %v1487
  %v1495 = vadd.f32 %v1455, %v1491
  %v1496 = vadd.f32 %v1456, %v1487
  %v1497 = vadd.f32 %v1457, %v1491
  %v1498 = vadd.f32 %v1458, %v1487
  %v1499 = vadd.f32 %v1459, %v1491
  %v1500 = vadd.f32 %v1460, %v1487
  %v1501 = vadd.f32 %v1461, %v1491
  %v1502 = vadd.f32 %v1462, %v1487
  %v1503 = vadd.f32 %v1463, %v1491
  %v1504 = vadd.f32 %v1464, %v1487
  %v1505 = vadd.f32 %v1465, %v1491
  %v1506 = vadd.f32 %v1466, %v1487
  %v1507 = vadd.f32 %v1467, %v1491
  %v1508 = vadd.f32 %v1468, %v1487
  %v1509 = vadd.f32 %v1469, %v1491
  %v1510 = vadd.f32 %v1470, %v1487
  %v1511 = vadd.f32 %v1471, %v1491
  %v1512 = vadd.f32 %v1472, %v1487
  %v1513 = vadd.f32 %v1473, %v1491
  %v1514 = vadd.f32 %v1474, %v1487
  %v1515 = vadd.f32 %v1475, %v1491
  %v1516 = vadd.f32 %v1476, %v1487
  %v1517 = vadd.f32 %v1477, %v1491
  %v1518 = vadd.f32 %v1478, %v1487
  %v1519 = vadd.f32 %v1479, %v1491
  %v1520 = vadd.f32 %v1480, %v1487
  %v1521 = vadd.f32 %v1481, %v1491
  %v1522 = vmax.f32 %v1494, 0.0
  %v1523 = vmax.f32 %v1495, 0.0
  %v1524 = vmax.f32 %v1496, 0.0
  %v1525 = vmax.f32 %v1497, 0.0
  %v1526 = vmax.f32 %v1498, 0.0
  %v1527 = vmax.f32 %v1499, 0.0
  %v1528 = vmax.f32 %v1500, 0.0
  %v1529 = vmax.f32 %v1501, 0.0
  %v1530 = vmax.f32 %v1502, 0.0
  %v1531 = vmax.f32 %v1503, 0.0
  %v1532 = vmax.f32 %v1504, 0.0
  %v1533 = vmax.f32 %v1505, 0.0
  %v1534 = vmax.f32 %v1506, 0.0
  %v1535 = vmax.f32 %v1507, 0.0
  %v1536 = vmax.f32 %v1508, 0.0
  %v1537 = vmax.f32 %v1509, 0.0
  %v1538 = vmax.f32 %v1510, 0.0
  %v1539 = vmax.f32 %v1511, 0.0
  %v1540 = vmax.f32 %v1512, 0.0
  %v1541 = vmax.f32 %v1513, 0.0
  %v1542 = vmax.f32 %v1514, 0.0
  %v1543 = vmax.f32 %v1515, 0.0
  %v1544 = vmax.f32 %v1516, 0.0
  %v1545 = vmax.f32 %v1517, 0.0
  %v1546 = vmax.f32 %v1518, 0.0
  %v1547 = vmax.f32 %v1519, 0.0
  %v1548 = vmax.f32 %v1520, 0.0
  %v1549 = vmax.f32 %v1521, 0.0
  %v1550 = vld [vmem:[%s3] sm:$0xff]
  %v1551 = vld [vmem:[%s3 + $0x8] sm:$0xff]
  %v1552 = vld [vmem:[%s3 + $0x10] sm:$0xff]
  %v1553 = vld [vmem:[%s3 + $0x18] sm:$0xff]
  %v1554 = vld [vmem:[%s3 + $0x20] sm:$0xff]
  %v1555 = vld [vmem:[%s3 + $0x28] sm:$0xff]
  %v1556 = vld [vmem:[%s3 + $0x30] sm:$0xff]
  %v1557 = vld [vmem:[%s3 + $0x38] sm:$0xff]
  %v1558 = vld [vmem:[%s3 + $0x40] sm:$0xff]
  %v1559 = vld [vmem:[%s3 + $0x48] sm:$0xff]
  %v1560 = vld [vmem:[%s3 + $0x50] sm:$0xff]
  %v1561 = vld [vmem:[%s3 + $0x58] sm:$0xff]
  %v1562 = vld [vmem:[%s3 + $0x60] sm:$0xff]
  %v1563 = vld [vmem:[%s3 + $0x68] sm:$0xff]
  %v1564 = vld [vmem:[%s3 + $0x70] sm:$0xff]
  %v1565 = vld [vmem:[%s3 + $0x78] sm:$0xff]
  %v1566 = vld [vmem:[%s3 + $0x80] sm:$0xff]
  %v1567 = vld [vmem:[%s3 + $0x88] sm:$0xff]
  %v1568 = vld [vmem:[%s3 + $0x90] sm:$0xff]
  %v1569 = vld [vmem:[%s3 + $0x98] sm:$0xff]
  %v1570 = vld [vmem:[%s3 + $0xa0] sm:$0xff]
  %v1571 = vld [vmem:[%s3 + $0xa8] sm:$0xff]
  %v1572 = vld [vmem:[%s3 + $0xb0] sm:$0xff]
  %v1573 = vld [vmem:[%s3 + $0xb8] sm:$0xff]
  %v1574 = vld [vmem:[%s3 + $0xc0] sm:$0xff]
  %v1575 = vld [vmem:[%s3 + $0xc8] sm:$0xff]
  %v1576 = vld [vmem:[%s3 + $0xd0] sm:$0xff]
  %v1577 = vld [vmem:[%s3 + $0xd8] sm:$0xff]
  %v1578 = vld [vmem:[%s3 + $0xe0] sm:$0xff]
  %v1579 = vld [vmem:[%s3 + $0xe8] sm:$0xff]
  %v1580 = vld [vmem:[%s3 + $0xf0] sm:$0xff]
  %v1581 = vld [vmem:[%s3 + $0xf8] sm:$0xff]
  %v1582 = vld [vmem:[%s3 + $0x100] sm:$0x3]
  %v1583 = vld [vmem:[%s3 + $0x108] sm:$0x3]
  %v1612 = vrot.slane %v1522, 1
  %v1613 = vrot.slane %v1524, 1
  %v1614 = vsel %vm97, %v1612, %v1613
  %v1615 = vrot.slane %v1523, 1
  %v1616 = vrot.slane %v1525, 1
  %v1617 = vsel %vm97, %v1615, %v1616
  %v1618 = vrot.slane %v1526, 1
  %v1619 = vsel %vm97, %v1613, %v1618
  %v1620 = vrot.slane %v1527, 1
  %v1621 = vsel %vm97, %v1616, %v1620
  %v1622 = vrot.slane %v1528, 1
  %v1623 = vsel %vm97, %v1618, %v1622
  %v1624 = vrot.slane %v1529, 1
  %v1625 = vsel %vm97, %v1620, %v1624
  %v1626 = vrot.slane %v1530, 1
  %v1627 = vsel %vm97, %v1622, %v1626
  %v1628 = vrot.slane %v1531, 1
  %v1629 = vsel %vm97, %v1624, %v1628
  %v1630 = vrot.slane %v1532, 1
  %v1631 = vsel %vm97, %v1626, %v1630
  %v1632 = vrot.slane %v1533, 1
  %v1633 = vsel %vm97, %v1628, %v1632
  %v1634 = vrot.slane %v1534, 1
  %v1635 = vsel %vm97, %v1630, %v1634
  %v1636 = vrot.slane %v1535, 1
  %v1637 = vsel %vm97, %v1632, %v1636
  %v1638 = vrot.slane %v1536, 1
  %v1639 = vsel %vm97, %v1634, %v1638
  %v1640 = vrot.slane %v1537, 1
  %v1641 = vsel %vm97, %v1636, %v1640
  %v1642 = vrot.slane %v1538, 1
  %v1643 = vsel %vm97, %v1638, %v1642
  %v1644 = vrot.slane %v1539, 1
  %v1645 = vsel %vm97, %v1640, %v1644
  %v1646 = vrot.slane %v1540, 1
  %v1647 = vsel %vm97, %v1642, %v1646
  %v1648 = vrot.slane %v1541, 1
  %v1649 = vsel %vm97, %v1644, %v1648
  %v1650 = vrot.slane %v1542, 1
  %v1651 = vsel %vm97, %v1646, %v1650
  %v1652 = vrot.slane %v1543, 1
  %v1653 = vsel %vm97, %v1648, %v1652
  %v1654 = vrot.slane %v1544, 1
  %v1655 = vsel %vm97, %v1650, %v1654
  %v1656 = vrot.slane %v1545, 1
  %v1657 = vsel %vm97, %v1652, %v1656
  %v1658 = vrot.slane %v1546, 1
  %v1659 = vsel %vm97, %v1654, %v1658
  %v1660 = vrot.slane %v1547, 1
  %v1661 = vsel %vm97, %v1656, %v1660
  %v1662 = vrot.slane %v1548, 1
  %v1663 = vsel %vm97, %v1658, %v1662
  %v1664 = vrot.slane %v1549, 1
  %v1665 = vsel %vm97, %v1660, %v1664
  %v1683 = vsel %vm97, %v1662, %v1612
  %v1684 = vsel %vm97, %v1664, %v1615
  %s1685 = scalar_lea.vmem %s3, 272
  %v1686 = vld [vmem:[%s1685] sm:$0xff]
  %v1687 = vld [vmem:[%s1685 + $0x8] sm:$0xff]
  %v1688 = vld [vmem:[%s1685 + $0x10] sm:$0xff]
  %v1689 = vld [vmem:[%s1685 + $0x18] sm:$0xff]
  %v1690 = vld [vmem:[%s1685 + $0x20] sm:$0xff]
  %v1691 = vld [vmem:[%s1685 + $0x28] sm:$0xff]
  %v1692 = vld [vmem:[%s1685 + $0x30] sm:$0xff]
  %v1693 = vld [vmem:[%s1685 + $0x38] sm:$0xff]
  %v1694 = vld [vmem:[%s1685 + $0x40] sm:$0xff]
  %v1695 = vld [vmem:[%s1685 + $0x48] sm:$0xff]
  %v1696 = vld [vmem:[%s1685 + $0x50] sm:$0xff]
  %v1697 = vld [vmem:[%s1685 + $0x58] sm:$0xff]
  %v1698 = vld [vmem:[%s1685 + $0x60] sm:$0xff]
  %v1699 = vld [vmem:[%s1685 + $0x68] sm:$0xff]
  %v1700 = vld [vmem:[%s1685 + $0x70] sm:$0xff]
  %v1701 = vld [vmem:[%s1685 + $0x78] sm:$0xff]
  %v1702 = vld [vmem:[%s1685 + $0x80] sm:$0xff]
  %v1703 = vld [vmem:[%s1685 + $0x88] sm:$0xff]
  %v1704 = vld [vmem:[%s1685 + $0x90] sm:$0xff]
  %v1705 = vld [vmem:[%s1685 + $0x98] sm:$0xff]
  %v1706 = vld [vmem:[%s1685 + $0xa0] sm:$0xff]
  %v1707 = vld [vmem:[%s1685 + $0xa8] sm:$0xff]
  %v1708 = vld [vmem:[%s1685 + $0xb0] sm:$0xff]
  %v1709 = vld [vmem:[%s1685 + $0xb8] sm:$0xff]
  %v1710 = vld [vmem:[%s1685 + $0xc0] sm:$0xff]
  %v1711 = vld [vmem:[%s1685 + $0xc8] sm:$0xff]
  %v1712 = vld [vmem:[%s1685 + $0xd0] sm:$0xff]
  %v1713 = vld [vmem:[%s1685 + $0xd8] sm:$0xff]
  %v1714 = vld [vmem:[%s1685 + $0xe0] sm:$0xff]
  %v1715 = vld [vmem:[%s1685 + $0xe8] sm:$0xff]
  %v1716 = vld [vmem:[%s1685 + $0xf0] sm:$0xff]
  %v1717 = vld [vmem:[%s1685 + $0xf8] sm:$0xff]
  %v1718 = vld [vmem:[%s1685 + $0x100] sm:$0x3]
  %v1719 = vld [vmem:[%s1685 + $0x108] sm:$0x3]
  %vm1720 = vcmask 15360
  %v1721 = vsel %vm1720, %v1617, 0
  %v1723 = vsel %vm1720, %v1621, 0
  %v1725 = vsel %vm1720, %v1625, 0
  %v1727 = vsel %vm1720, %v1629, 0
  %v1729 = vsel %vm1720, %v1633, 0
  %v1731 = vsel %vm1720, %v1637, 0
  %v1733 = vsel %vm1720, %v1641, 0
  %v1735 = vsel %vm1720, %v1645, 0
  %v1737 = vsel %vm1720, %v1649, 0
  %v1739 = vsel %vm1720, %v1653, 0
  %v1741 = vsel %vm1720, %v1657, 0
  %v1743 = vsel %vm1720, %v1661, 0
  %v1745 = vsel %vm1720, %v1665, 0
  %v1748 = vsel %vm1720, %v1684, 0
  %vm1750 = vcmask 1041408
  %v1752 = vsel %vm1750, %v1718, 0
  %v1755 = vsel %vm1750, %v1719, 0
  %1757 = vmatprep.subr.mxu0 %v1687
  %1758 = vmatpush1.msra.mxu0 %v1686
  %1759 = vmatprep.subr.mxu0 %v1689
  %1760 = vmatpush1.msra.mxu0 %v1688
  %1761 = vmatprep.subr.mxu0 %v1691
  %1762 = vmatpush1.msra.mxu0 %v1690
  %1763 = vmatprep.subr.mxu0 %v1693
  %1764 = vmatpush1.msra.mxu0 %v1692
  %1765 = vmatprep.subr.mxu0 %v1695
  %1766 = vmatpush1.msra.mxu0 %v1694
  %1767 = vmatprep.subr.mxu0 %v1697
  %1768 = vmatpush1.msra.mxu0 %v1696
  %1769 = vmatprep.subr.mxu0 %v1699
  %1770 = vmatpush1.msra.mxu0 %v1698
  %1771 = vmatprep.subr.mxu0 %v1701
  %1772 = vmatpush1.msra.mxu0 %v1700
  %1773 = vmatprep.subr.mxu0 %v1703
  %1774 = vmatpush1.msra.mxu0 %v1702
  %1775 = vmatprep.subr.mxu0 %v1705
  %1776 = vmatpush1.msra.mxu0 %v1704
  %1777 = vmatprep.subr.mxu0 %v1707
  %1778 = vmatpush1.msra.mxu0 %v1706
  %1779 = vmatprep.subr.mxu0 %v1709
  %1780 = vmatpush1.msra.mxu0 %v1708
  %1781 = vmatprep.subr.mxu0 %v1711
  %1782 = vmatpush1.msra.mxu0 %v1710
  %1783 = vmatprep.subr.mxu0 %v1713
  %1784 = vmatpush1.msra.mxu0 %v1712
  %1785 = vmatprep.subr.mxu0 %v1715
  %1786 = vmatpush1.msra.mxu0 %v1714
  %1787 = vmatprep.subr.mxu0 %v1717
  %1788 = vmatpush1.msra.mxu0 %v1716
  %1789 = vmatprep.subr.mxu0 %v1755
  %1790 = vmatpush1.msra.mxu0 %v1752
  %1791 = vmatprep.subr.mxu0 0.0
  %1792 = vmatpush1.msra.mxu0 0.0
  %1793 = vmatprep.subr.mxu0 0.0
  %1794 = vmatpush1.msra.mxu0 0.0
  %1795 = vmatprep.subr.mxu0 0.0
  %1796 = vmatpush1.msra.mxu0 0.0
  %1797 = vmatprep.subr.mxu0 0.0
  %1798 = vmatpush1.msra.mxu0 0.0
  %1799 = vmatprep.subr.mxu0 0.0
  %1800 = vmatpush1.msra.mxu0 0.0
  %1801 = vmatprep.subr.mxu0 0.0
  %1802 = vmatpush1.msra.mxu0 0.0
  %1803 = vmatprep.subr.mxu0 0.0
  %1804 = vmatpush1.msra.mxu0 0.0
  %1805 = vmatprep.subr.mxu0 0.0
  %1806 = vmatpush1.msra.mxu0 0.0
  %1807 = vmatprep.subr.mxu0 0.0
  %1808 = vmatpush1.msra.mxu0 0.0
  %1809 = vmatprep.subr.mxu0 0.0
  %1810 = vmatpush1.msra.mxu0 0.0
  %1811 = vmatprep.subr.mxu0 0.0
  %1812 = vmatpush1.msra.mxu0 0.0
  %1813 = vmatprep.subr.mxu0 0.0
  %1814 = vmatpush1.msra.mxu0 0.0
  %1815 = vmatprep.subr.mxu0 0.0
  %1816 = vmatpush1.msra.mxu0 0.0
  %1817 = vmatprep.subr.mxu0 0.0
  %1818 = vmatpush1.msra.mxu0 0.0
  %1819 = vmatprep.subr.mxu0 0.0
  %1820 = vmatpush1.msra.mxu0 0.0
  %1821 = vmatprep.mubr.f32.mxu0 %v1721
  %1822 = vmatmul.mubr.f32.gmra.mrb[0].mxu0 %v1614
  %v1823 = vpop.f32.mrb[0].mxu0
  %v1824 = vadd.f32 0.0, %v1823
  %v1825 = vpop.f32.mrb[0].mxu0
  %v1826 = vadd.f32 0.0, %v1825
  %1827 = vmatprep.mubr.f32.mxu0 %v1723
  %1828 = vmatmul.mubr.f32.gmra.mrb[0].mxu0 %v1619
  %v1829 = vpop.f32.mrb[0].mxu0
  %v1830 = vadd.f32 0.0, %v1829
  %v1831 = vpop.f32.mrb[0].mxu0
  %v1832 = vadd.f32 0.0, %v1831
  %1833 = vmatprep.mubr.f32.mxu0 %v1725
  %1834 = vmatmul.mubr.f32.gmra.mrb[0].mxu0 %v1623
  %v1835 = vpop.f32.mrb[0].mxu0
  %v1836 = vadd.f32 0.0, %v1835
  %v1837 = vpop.f32.mrb[0].mxu0
  %v1838 = vadd.f32 0.0, %v1837
  %1839 = vmatprep.mubr.f32.mxu0 %v1727
  %1840 = vmatmul.mubr.f32.gmra.mrb[0].mxu0 %v1627
  %v1841 = vpop.f32.mrb[0].mxu0
  %v1842 = vadd.f32 0.0, %v1841
  %v1843 = vpop.f32.mrb[0].mxu0
  %v1844 = vadd.f32 0.0, %v1843
  %1845 = vmatprep.mubr.f32.mxu0 %v1729
  %1846 = vmatmul.mubr.f32.gmra.mrb[0].mxu0 %v1631
  %v1847 = vpop.f32.mrb[0].mxu0
  %v1848 = vadd.f32 0.0, %v1847
  %v1849 = vpop.f32.mrb[0].mxu0
  %v1850 = vadd.f32 0.0, %v1849
  %1851 = vmatprep.mubr.f32.mxu0 %v1731
  %1852 = vmatmul.mubr.f32.gmra.mrb[0].mxu0 %v1635
  %v1853 = vpop.f32.mrb[0].mxu0
  %v1854 = vadd.f32 0.0, %v1853
  %v1855 = vpop.f32.mrb[0].mxu0
  %v1856 = vadd.f32 0.0, %v1855
  %1857 = vmatprep.mubr.f32.mxu0 %v1733
  %1858 = vmatmul.mubr.f32.gmra.mrb[0].mxu0 %v1639
  %v1859 = vpop.f32.mrb[0].mxu0
  %v1860 = vadd.f32 0.0, %v1859
  %v1861 = vpop.f32.mrb[0].mxu0
  %v1862 = vadd.f32 0.0, %v1861
  %1863 = vmatprep.mubr.f32.mxu0 %v1735
  %1864 = vmatmul.mubr.f32.gmra.mrb[0].mxu0 %v1643
  %v1865 = vpop.f32.mrb[0].mxu0
  %v1866 = vadd.f32 0.0, %v1865
  %v1867 = vpop.f32.mrb[0].mxu0
  %v1868 = vadd.f32 0.0, %v1867
  %1869 = vmatprep.mubr.f32.mxu0 %v1737
  %1870 = vmatmul.mubr.f32.gmra.mrb[0].mxu0 %v1647
  %v1871 = vpop.f32.mrb[0].mxu0
  %v1872 = vadd.f32 0.0, %v1871
  %v1873 = vpop.f32.mrb[0].mxu0
  %v1874 = vadd.f32 0.0, %v1873
  %1875 = vmatprep.mubr.f32.mxu0 %v1739
  %1876 = vmatmul.mubr.f32.gmra.mrb[0].mxu0 %v1651
  %v1877 = vpop.f32.mrb[0].mxu0
  %v1878 = vadd.f32 0.0, %v1877
  %v1879 = vpop.f32.mrb[0].mxu0
  %v1880 = vadd.f32 0.0, %v1879
  %1881 = vmatprep.mubr.f32.mxu0 %v1741
  %1882 = vmatmul.mubr.f32.gmra.mrb[0].mxu0 %v1655
  %v1883 = vpop.f32.mrb[0].mxu0
  %v1884 = vadd.f32 0.0, %v1883
  %v1885 = vpop.f32.mrb[0].mxu0
  %v1886 = vadd.f32 0.0, %v1885
  %1887 = vmatprep.mubr.f32.mxu0 %v1743
  %1888 = vmatmul.mubr.f32.gmra.mrb[0].mxu0 %v1659
  %v1889 = vpop.f32.mrb[0].mxu0
  %v1890 = vadd.f32 0.0, %v1889
  %v1891 = vpop.f32.mrb[0].mxu0
  %v1892 = vadd.f32 0.0, %v1891
  %1893 = vmatprep.mubr.f32.mxu0 %v1745
  %1894 = vmatmul.mubr.f32.gmra.mrb[0].mxu0 %v1663
  %v1895 = vpop.f32.mrb[0].mxu0
  %v1896 = vadd.f32 0.0, %v1895
  %v1897 = vpop.f32.mrb[0].mxu0
  %v1898 = vadd.f32 0.0, %v1897
  %1899 = vmatprep.mubr.f32.mxu0 %v1748
  %1900 = vmatmul.mubr.f32.gmra.mrb[0].mxu0 %v1683
  %v1901 = vpop.f32.mrb[0].mxu0
  %v1902 = vadd.f32 0.0, %v1901
  %v1903 = vpop.f32.mrb[0].mxu0
  %v1904 = vadd.f32 0.0, %v1903
  %1905 = vdwg.mxu0
  %v1906 = vsel %vm1720, %v1523, 0
  %v1908 = vsel %vm1720, %v1525, 0
  %v1910 = vsel %vm1720, %v1527, 0
  %v1912 = vsel %vm1720, %v1529, 0
  %v1914 = vsel %vm1720, %v1531, 0
  %v1916 = vsel %vm1720, %v1533, 0
  %v1918 = vsel %vm1720, %v1535, 0
  %v1920 = vsel %vm1720, %v1537, 0
  %v1922 = vsel %vm1720, %v1539, 0
  %v1924 = vsel %vm1720, %v1541, 0
  %v1926 = vsel %vm1720, %v1543, 0
  %v1928 = vsel %vm1720, %v1545, 0
  %v1930 = vsel %vm1720, %v1547, 0
  %v1932 = vsel %vm1720, %v1549, 0
  %v1935 = vsel %vm1750, %v1582, 0
  %v1938 = vsel %vm1750, %v1583, 0
  %1940 = vmatprep.subr.mxu0 %v1551
  %1941 = vmatpush1.msra.mxu0 %v1550
  %1942 = vmatprep.subr.mxu0 %v1553
  %1943 = vmatpush1.msra.mxu0 %v1552
  %1944 = vmatprep.subr.mxu0 %v1555
  %1945 = vmatpush1.msra.mxu0 %v1554
  %1946 = vmatprep.subr.mxu0 %v1557
  %1947 = vmatpush1.msra.mxu0 %v1556
  %1948 = vmatprep.subr.mxu0 %v1559
  %1949 = vmatpush1.msra.mxu0 %v1558
  %1950 = vmatprep.subr.mxu0 %v1561
  %1951 = vmatpush1.msra.mxu0 %v1560
  %1952 = vmatprep.subr.mxu0 %v1563
  %1953 = vmatpush1.msra.mxu0 %v1562
  %1954 = vmatprep.subr.mxu0 %v1565
  %1955 = vmatpush1.msra.mxu0 %v1564
  %1956 = vmatprep.subr.mxu0 %v1567
  %1957 = vmatpush1.msra.mxu0 %v1566
  %1958 = vmatprep.subr.mxu0 %v1569
  %1959 = vmatpush1.msra.mxu0 %v1568
  %1960 = vmatprep.subr.mxu0 %v1571
  %1961 = vmatpush1.msra.mxu0 %v1570
  %1962 = vmatprep.subr.mxu0 %v1573
  %1963 = vmatpush1.msra.mxu0 %v1572
  %1964 = vmatprep.subr.mxu0 %v1575
  %1965 = vmatpush1.msra.mxu0 %v1574
  %1966 = vmatprep.subr.mxu0 %v1577
  %1967 = vmatpush1.msra.mxu0 %v1576
  %1968 = vmatprep.subr.mxu0 %v1579
  %1969 = vmatpush1.msra.mxu0 %v1578
  %1970 = vmatprep.subr.mxu0 %v1581
  %1971 = vmatpush1.msra.mxu0 %v1580
  %1972 = vmatprep.subr.mxu0 %v1938
  %1973 = vmatpush1.msra.mxu0 %v1935
  %1974 = vmatprep.subr.mxu0 0.0
  %1975 = vmatpush1.msra.mxu0 0.0
  %1976 = vmatprep.subr.mxu0 0.0
  %1977 = vmatpush1.msra.mxu0 0.0
  %1978 = vmatprep.subr.mxu0 0.0
  %1979 = vmatpush1.msra.mxu0 0.0
  %1980 = vmatprep.subr.mxu0 0.0
  %1981 = vmatpush1.msra.mxu0 0.0
  %1982 = vmatprep.subr.mxu0 0.0
  %1983 = vmatpush1.msra.mxu0 0.0
  %1984 = vmatprep.subr.mxu0 0.0
  %1985 = vmatpush1.msra.mxu0 0.0
  %1986 = vmatprep.subr.mxu0 0.0
  %1987 = vmatpush1.msra.mxu0 0.0
  %1988 = vmatprep.subr.mxu0 0.0
  %1989 = vmatpush1.msra.mxu0 0.0
  %1990 = vmatprep.subr.mxu0 0.0
  %1991 = vmatpush1.msra.mxu0 0.0
  %1992 = vmatprep.subr.mxu0 0.0
  %1993 = vmatpush1.msra.mxu0 0.0
  %1994 = vmatprep.subr.mxu0 0.0
  %1995 = vmatpush1.msra.mxu0 0.0
  %1996 = vmatprep.subr.mxu0 0.0
  %1997 = vmatpush1.msra.mxu0 0.0
  %1998 = vmatprep.subr.mxu0 0.0
  %1999 = vmatpush1.msra.mxu0 0.0
  %2000 = vmatprep.subr.mxu0 0.0
  %2001 = vmatpush1.msra.mxu0 0.0
  %2002 = vmatprep.subr.mxu0 0.0
  %2003 = vmatpush1.msra.mxu0 0.0
  %2004 = vmatprep.mubr.f32.mxu0 %v1906
  %2005 = vmatmul.mubr.f32.gmra.mrb[0].mxu0 %v1522
  %v2006 = vpop.f32.mrb[0].mxu0
  %v2007 = vadd.f32 %v1824, %v2006
  %v2008 = vpop.f32.mrb[0].mxu0
  %v2009 = vadd.f32 %v1826, %v2008
  %2010 = vmatprep.mubr.f32.mxu0 %v1908
  %2011 = vmatmul.mubr.f32.gmra.mrb[0].mxu0 %v1524
  %v2012 = vpop.f32.mrb[0].mxu0
  %v2013 = vadd.f32 %v1830, %v2012
  %v2014 = vpop.f32.mrb[0].mxu0
  %v2015 = vadd.f32 %v1832, %v2014
  %2016 = vmatprep.mubr.f32.mxu0 %v1910
  %2017 = vmatmul.mubr.f32.gmra.mrb[0].mxu0 %v1526
  %v2018 = vpop.f32.mrb[0].mxu0
  %v2019 = vadd.f32 %v1836, %v2018
  %v2020 = vpop.f32.mrb[0].mxu0
  %v2021 = vadd.f32 %v1838, %v2020
  %2022 = vmatprep.mubr.f32.mxu0 %v1912
  %2023 = vmatmul.mubr.f32.gmra.mrb[0].mxu0 %v1528
  %v2024 = vpop.f32.mrb[0].mxu0
  %v2025 = vadd.f32 %v1842, %v2024
  %v2026 = vpop.f32.mrb[0].mxu0
  %v2027 = vadd.f32 %v1844, %v2026
  %2028 = vmatprep.mubr.f32.mxu0 %v1914
  %2029 = vmatmul.mubr.f32.gmra.mrb[0].mxu0 %v1530
  %v2030 = vpop.f32.mrb[0].mxu0
  %v2031 = vadd.f32 %v1848, %v2030
  %v2032 = vpop.f32.mrb[0].mxu0
  %v2033 = vadd.f32 %v1850, %v2032
  %2034 = vmatprep.mubr.f32.mxu0 %v1916
  %2035 = vmatmul.mubr.f32.gmra.mrb[0].mxu0 %v1532
  %v2036 = vpop.f32.mrb[0].mxu0
  %v2037 = vadd.f32 %v1854, %v2036
  %v2038 = vpop.f32.mrb[0].mxu0
  %v2039 = vadd.f32 %v1856, %v2038
  %2040 = vmatprep.mubr.f32.mxu0 %v1918
  %2041 = vmatmul.mubr.f32.gmra.mrb[0].mxu0 %v1534
  %v2042 = vpop.f32.mrb[0].mxu0
  %v2043 = vadd.f32 %v1860, %v2042
  %v2044 = vpop.f32.mrb[0].mxu0
  %v2045 = vadd.f32 %v1862, %v2044
  %2046 = vmatprep.mubr.f32.mxu0 %v1920
  %2047 = vmatmul.mubr.f32.gmra.mrb[0].mxu0 %v1536
  %v2048 = vpop.f32.mrb[0].mxu0
  %v2049 = vadd.f32 %v1866, %v2048
  %v2050 = vpop.f32.mrb[0].mxu0
  %v2051 = vadd.f32 %v1868, %v2050
  %2052 = vmatprep.mubr.f32.mxu0 %v1922
  %2053 = vmatmul.mubr.f32.gmra.mrb[0].mxu0 %v1538
  %v2054 = vpop.f32.mrb[0].mxu0
  %v2055 = vadd.f32 %v1872, %v2054
  %v2056 = vpop.f32.mrb[0].mxu0
  %v2057 = vadd.f32 %v1874, %v2056
  %2058 = vmatprep.mubr.f32.mxu0 %v1924
  %2059 = vmatmul.mubr.f32.gmra.mrb[0].mxu0 %v1540
  %v2060 = vpop.f32.mrb[0].mxu0
  %v2061 = vadd.f32 %v1878, %v2060
  %v2062 = vpop.f32.mrb[0].mxu0
  %v2063 = vadd.f32 %v1880, %v2062
  %2064 = vmatprep.mubr.f32.mxu0 %v1926
  %2065 = vmatmul.mubr.f32.gmra.mrb[0].mxu0 %v1542
  %v2066 = vpop.f32.mrb[0].mxu0
  %v2067 = vadd.f32 %v1884, %v2066
  %v2068 = vpop.f32.mrb[0].mxu0
  %v2069 = vadd.f32 %v1886, %v2068
  %2070 = vmatprep.mubr.f32.mxu0 %v1928
  %2071 = vmatmul.mubr.f32.gmra.mrb[0].mxu0 %v1544
  %v2072 = vpop.f32.mrb[0].mxu0
  %v2073 = vadd.f32 %v1890, %v2072
  %v2074 = vpop.f32.mrb[0].mxu0
  %v2075 = vadd.f32 %v1892, %v2074
  %2076 = vmatprep.mubr.f32.mxu0 %v1930
  %2077 = vmatmul.mubr.f32.gmra.mrb[0].mxu0 %v1546
  %v2078 = vpop.f32.mrb[0].mxu0
  %v2079 = vadd.f32 %v1896, %v2078
  %v2080 = vpop.f32.mrb[0].mxu0
  %v2081 = vadd.f32 %v1898, %v2080
  %2082 = vmatprep.mubr.f32.mxu0 %v1932
  %2083 = vmatmul.mubr.f32.gmra.mrb[0].mxu0 %v1548
  %v2084 = vpop.f32.mrb[0].mxu0
  %v2085 = vadd.f32 %v1902, %v2084
  %v2086 = vpop.f32.mrb[0].mxu0
  %v2087 = vadd.f32 %v1904, %v2086
  %2088 = vdwg.mxu0
  %vm2089 = vcmask 1045504
  %v2090 = vrot.slane %v1522, 2
  %v2091 = vrot.slane %v1524, 2
  %v2092 = vsel %vm2089, %v2090, %v2091
  %v2093 = vrot.slane %v1523, 2
  %v2094 = vrot.slane %v1525, 2
  %v2095 = vsel %vm2089, %v2093, %v2094
  %v2096 = vrot.slane %v1526, 2
  %v2097 = vsel %vm2089, %v2091, %v2096
  %v2098 = vrot.slane %v1527, 2
  %v2099 = vsel %vm2089, %v2094, %v2098
  %v2100 = vrot.slane %v1528, 2
  %v2101 = vsel %vm2089, %v2096, %v2100
  %v2102 = vrot.slane %v1529, 2
  %v2103 = vsel %vm2089, %v2098, %v2102
  %v2104 = vrot.slane %v1530, 2
  %v2105 = vsel %vm2089, %v2100, %v2104
  %v2106 = vrot.slane %v1531, 2
  %v2107 = vsel %vm2089, %v2102, %v2106
  %v2108 = vrot.slane %v1532, 2
  %v2109 = vsel %vm2089, %v2104, %v2108
  %v2110 = vrot.slane %v1533, 2
  %v2111 = vsel %vm2089, %v2106, %v2110
  %v2112 = vrot.slane %v1534, 2
  %v2113 = vsel %vm2089, %v2108, %v2112
  %v2114 = vrot.slane %v1535, 2
  %v2115 = vsel %vm2089, %v2110, %v2114
  %v2116 = vrot.slane %v1536, 2
  %v2117 = vsel %vm2089, %v2112, %v2116
  %v2118 = vrot.slane %v1537, 2
  %v2119 = vsel %vm2089, %v2114, %v2118
  %v2120 = vrot.slane %v1538, 2
  %v2121 = vsel %vm2089, %v2116, %v2120
  %v2122 = vrot.slane %v1539, 2
  %v2123 = vsel %vm2089, %v2118, %v2122
  %v2124 = vrot.slane %v1540, 2
  %v2125 = vsel %vm2089, %v2120, %v2124
  %v2126 = vrot.slane %v1541, 2
  %v2127 = vsel %vm2089, %v2122, %v2126
  %v2128 = vrot.slane %v1542, 2
  %v2129 = vsel %vm2089, %v2124, %v2128
  %v2130 = vrot.slane %v1543, 2
  %v2131 = vsel %vm2089, %v2126, %v2130
  %v2132 = vrot.slane %v1544, 2
  %v2133 = vsel %vm2089, %v2128, %v2132
  %v2134 = vrot.slane %v1545, 2
  %v2135 = vsel %vm2089, %v2130, %v2134
  %v2136 = vrot.slane %v1546, 2
  %v2137 = vsel %vm2089, %v2132, %v2136
  %v2138 = vrot.slane %v1547, 2
  %v2139 = vsel %vm2089, %v2134, %v2138
  %v2140 = vrot.slane %v1548, 2
  %v2141 = vsel %vm2089, %v2136, %v2140
  %v2142 = vrot.slane %v1549, 2
  %v2143 = vsel %vm2089, %v2138, %v2142
  %v2161 = vsel %vm2089, %v2140, %v2090
  %v2162 = vsel %vm2089, %v2142, %v2093
  %s2163 = scalar_lea.vmem %s3, 544
  %v2164 = vld [vmem:[%s2163] sm:$0xff]
  %v2165 = vld [vmem:[%s2163 + $0x8] sm:$0xff]
  %v2166 = vld [vmem:[%s2163 + $0x10] sm:$0xff]
  %v2167 = vld [vmem:[%s2163 + $0x18] sm:$0xff]
  %v2168 = vld [vmem:[%s2163 + $0x20] sm:$0xff]
  %v2169 = vld [vmem:[%s2163 + $0x28] sm:$0xff]
  %v2170 = vld [vmem:[%s2163 + $0x30] sm:$0xff]
  %v2171 = vld [vmem:[%s2163 + $0x38] sm:$0xff]
  %v2172 = vld [vmem:[%s2163 + $0x40] sm:$0xff]
  %v2173 = vld [vmem:[%s2163 + $0x48] sm:$0xff]
  %v2174 = vld [vmem:[%s2163 + $0x50] sm:$0xff]
  %v2175 = vld [vmem:[%s2163 + $0x58] sm:$0xff]
  %v2176 = vld [vmem:[%s2163 + $0x60] sm:$0xff]
  %v2177 = vld [vmem:[%s2163 + $0x68] sm:$0xff]
  %v2178 = vld [vmem:[%s2163 + $0x70] sm:$0xff]
  %v2179 = vld [vmem:[%s2163 + $0x78] sm:$0xff]
  %v2180 = vld [vmem:[%s2163 + $0x80] sm:$0xff]
  %v2181 = vld [vmem:[%s2163 + $0x88] sm:$0xff]
  %v2182 = vld [vmem:[%s2163 + $0x90] sm:$0xff]
  %v2183 = vld [vmem:[%s2163 + $0x98] sm:$0xff]
  %v2184 = vld [vmem:[%s2163 + $0xa0] sm:$0xff]
  %v2185 = vld [vmem:[%s2163 + $0xa8] sm:$0xff]
  %v2186 = vld [vmem:[%s2163 + $0xb0] sm:$0xff]
  %v2187 = vld [vmem:[%s2163 + $0xb8] sm:$0xff]
  %v2188 = vld [vmem:[%s2163 + $0xc0] sm:$0xff]
  %v2189 = vld [vmem:[%s2163 + $0xc8] sm:$0xff]
  %v2190 = vld [vmem:[%s2163 + $0xd0] sm:$0xff]
  %v2191 = vld [vmem:[%s2163 + $0xd8] sm:$0xff]
  %v2192 = vld [vmem:[%s2163 + $0xe0] sm:$0xff]
  %v2193 = vld [vmem:[%s2163 + $0xe8] sm:$0xff]
  %v2194 = vld [vmem:[%s2163 + $0xf0] sm:$0xff]
  %v2195 = vld [vmem:[%s2163 + $0xf8] sm:$0xff]
  %v2196 = vld [vmem:[%s2163 + $0x100] sm:$0x3]
  %v2197 = vld [vmem:[%s2163 + $0x108] sm:$0x3]
  %v2198 = vsel %vm1720, %v2095, 0
  %v2200 = vsel %vm1720, %v2099, 0
  %v2202 = vsel %vm1720, %v2103, 0
  %v2204 = vsel %vm1720, %v2107, 0
  %v2206 = vsel %vm1720, %v2111, 0
  %v2208 = vsel %vm1720, %v2115, 0
  %v2210 = vsel %vm1720, %v2119, 0
  %v2212 = vsel %vm1720, %v2123, 0
  %v2214 = vsel %vm1720, %v2127, 0
  %v2216 = vsel %vm1720, %v2131, 0
  %v2218 = vsel %vm1720, %v2135, 0
  %v2220 = vsel %vm1720, %v2139, 0
  %v2222 = vsel %vm1720, %v2143, 0
  %v2225 = vsel %vm1720, %v2162, 0
  %v2228 = vsel %vm1750, %v2196, 0
  %v2231 = vsel %vm1750, %v2197, 0
  %2233 = vmatprep.subr.mxu0 %v2165
  %2234 = vmatpush1.msra.mxu0 %v2164
  %2235 = vmatprep.subr.mxu0 %v2167
  %2236 = vmatpush1.msra.mxu0 %v2166
  %2237 = vmatprep.subr.mxu0 %v2169
  %2238 = vmatpush1.msra.mxu0 %v2168
  %2239 = vmatprep.subr.mxu0 %v2171
  %2240 = vmatpush1.msra.mxu0 %v2170
  %2241 = vmatprep.subr.mxu0 %v2173
  %2242 = vmatpush1.msra.mxu0 %v2172
  %2243 = vmatprep.subr.mxu0 %v2175
  %2244 = vmatpush1.msra.mxu0 %v2174
  %2245 = vmatprep.subr.mxu0 %v2177
  %2246 = vmatpush1.msra.mxu0 %v2176
  %2247 = vmatprep.subr.mxu0 %v2179
  %2248 = vmatpush1.msra.mxu0 %v2178
  %2249 = vmatprep.subr.mxu0 %v2181
  %2250 = vmatpush1.msra.mxu0 %v2180
  %2251 = vmatprep.subr.mxu0 %v2183
  %2252 = vmatpush1.msra.mxu0 %v2182
  %2253 = vmatprep.subr.mxu0 %v2185
  %2254 = vmatpush1.msra.mxu0 %v2184
  %2255 = vmatprep.subr.mxu0 %v2187
  %2256 = vmatpush1.msra.mxu0 %v2186
  %2257 = vmatprep.subr.mxu0 %v2189
  %2258 = vmatpush1.msra.mxu0 %v2188
  %2259 = vmatprep.subr.mxu0 %v2191
  %2260 = vmatpush1.msra.mxu0 %v2190
  %2261 = vmatprep.subr.mxu0 %v2193
  %2262 = vmatpush1.msra.mxu0 %v2192
  %2263 = vmatprep.subr.mxu0 %v2195
  %2264 = vmatpush1.msra.mxu0 %v2194
  %2265 = vmatprep.subr.mxu0 %v2231
  %2266 = vmatpush1.msra.mxu0 %v2228
  %2267 = vmatprep.subr.mxu0 0.0
  %2268 = vmatpush1.msra.mxu0 0.0
  %2269 = vmatprep.subr.mxu0 0.0
  %2270 = vmatpush1.msra.mxu0 0.0
  %2271 = vmatprep.subr.mxu0 0.0
  %2272 = vmatpush1.msra.mxu0 0.0
  %2273 = vmatprep.subr.mxu0 0.0
  %2274 = vmatpush1.msra.mxu0 0.0
  %2275 = vmatprep.subr.mxu0 0.0
  %2276 = vmatpush1.msra.mxu0 0.0
  %2277 = vmatprep.subr.mxu0 0.0
  %2278 = vmatpush1.msra.mxu0 0.0
  %2279 = vmatprep.subr.mxu0 0.0
  %2280 = vmatpush1.msra.mxu0 0.0
  %2281 = vmatprep.subr.mxu0 0.0
  %2282 = vmatpush1.msra.mxu0 0.0
  %2283 = vmatprep.subr.mxu0 0.0
  %2284 = vmatpush1.msra.mxu0 0.0
  %2285 = vmatprep.subr.mxu0 0.0
  %2286 = vmatpush1.msra.mxu0 0.0
  %2287 = vmatprep.subr.mxu0 0.0
  %2288 = vmatpush1.msra.mxu0 0.0
  %2289 = vmatprep.subr.mxu0 0.0
  %2290 = vmatpush1.msra.mxu0 0.0
  %2291 = vmatprep.subr.mxu0 0.0
  %2292 = vmatpush1.msra.mxu0 0.0
  %2293 = vmatprep.subr.mxu0 0.0
  %2294 = vmatpush1.msra.mxu0 0.0
  %2295 = vmatprep.subr.mxu0 0.0
  %2296 = vmatpush1.msra.mxu0 0.0
  %2297 = vmatprep.mubr.f32.mxu0 %v2198
  %2298 = vmatmul.mubr.f32.gmra.mrb[0].mxu0 %v2092
  %v2299 = vpop.f32.mrb[0].mxu0
  %v2300 = vadd.f32 0.0, %v2299
  %v2301 = vpop.f32.mrb[0].mxu0
  %v2302 = vadd.f32 0.0, %v2301
  %2303 = vmatprep.mubr.f32.mxu0 %v2200
  %2304 = vmatmul.mubr.f32.gmra.mrb[0].mxu0 %v2097
  %v2305 = vpop.f32.mrb[0].mxu0
  %v2306 = vadd.f32 0.0, %v2305
  %v2307 = vpop.f32.mrb[0].mxu0
  %v2308 = vadd.f32 0.0, %v2307
  %2309 = vmatprep.mubr.f32.mxu0 %v2202
  %2310 = vmatmul.mubr.f32.gmra.mrb[0].mxu0 %v2101
  %v2311 = vpop.f32.mrb[0].mxu0
  %v2312 = vadd.f32 0.0, %v2311
  %v2313 = vpop.f32.mrb[0].mxu0
  %v2314 = vadd.f32 0.0, %v2313
  %2315 = vmatprep.mubr.f32.mxu0 %v2204
  %2316 = vmatmul.mubr.f32.gmra.mrb[0].mxu0 %v2105
  %v2317 = vpop.f32.mrb[0].mxu0
  %v2318 = vadd.f32 0.0, %v2317
  %v2319 = vpop.f32.mrb[0].mxu0
  %v2320 = vadd.f32 0.0, %v2319
  %2321 = vmatprep.mubr.f32.mxu0 %v2206
  %2322 = vmatmul.mubr.f32.gmra.mrb[0].mxu0 %v2109
  %v2323 = vpop.f32.mrb[0].mxu0
  %v2324 = vadd.f32 0.0, %v2323
  %v2325 = vpop.f32.mrb[0].mxu0
  %v2326 = vadd.f32 0.0, %v2325
  %2327 = vmatprep.mubr.f32.mxu0 %v2208
  %2328 = vmatmul.mubr.f32.gmra.mrb[0].mxu0 %v2113
  %v2329 = vpop.f32.mrb[0].mxu0
  %v2330 = vadd.f32 0.0, %v2329
  %v2331 = vpop.f32.mrb[0].mxu0
  %v2332 = vadd.f32 0.0, %v2331
  %2333 = vmatprep.mubr.f32.mxu0 %v2210
  %2334 = vmatmul.mubr.f32.gmra.mrb[0].mxu0 %v2117
  %v2335 = vpop.f32.mrb[0].mxu0
  %v2336 = vadd.f32 0.0, %v2335
  %v2337 = vpop.f32.mrb[0].mxu0
  %v2338 = vadd.f32 0.0, %v2337
  %2339 = vmatprep.mubr.f32.mxu0 %v2212
  %2340 = vmatmul.mubr.f32.gmra.mrb[0].mxu0 %v2121
  %v2341 = vpop.f32.mrb[0].mxu0
  %v2342 = vadd.f32 0.0, %v2341
  %v2343 = vpop.f32.mrb[0].mxu0
  %v2344 = vadd.f32 0.0, %v2343
  %2345 = vmatprep.mubr.f32.mxu0 %v2214
  %2346 = vmatmul.mubr.f32.gmra.mrb[0].mxu0 %v2125
  %v2347 = vpop.f32.mrb[0].mxu0
  %v2348 = vadd.f32 0.0, %v2347
  %v2349 = vpop.f32.mrb[0].mxu0
  %v2350 = vadd.f32 0.0, %v2349
  %2351 = vmatprep.mubr.f32.mxu0 %v2216
  %2352 = vmatmul.mubr.f32.gmra.mrb[0].mxu0 %v2129
  %v2353 = vpop.f32.mrb[0].mxu0
  %v2354 = vadd.f32 0.0, %v2353
  %v2355 = vpop.f32.mrb[0].mxu0
  %v2356 = vadd.f32 0.0, %v2355
  %2357 = vmatprep.mubr.f32.mxu0 %v2218
  %2358 = vmatmul.mubr.f32.gmra.mrb[0].mxu0 %v2133
  %v2359 = vpop.f32.mrb[0].mxu0
  %v2360 = vadd.f32 0.0, %v2359
  %v2361 = vpop.f32.mrb[0].mxu0
  %v2362 = vadd.f32 0.0, %v2361
  %2363 = vmatprep.mubr.f32.mxu0 %v2220
  %2364 = vmatmul.mubr.f32.gmra.mrb[0].mxu0 %v2137
  %v2365 = vpop.f32.mrb[0].mxu0
  %v2366 = vadd.f32 0.0, %v2365
  %v2367 = vpop.f32.mrb[0].mxu0
  %v2368 = vadd.f32 0.0, %v2367
  %2369 = vmatprep.mubr.f32.mxu0 %v2222
  %2370 = vmatmul.mubr.f32.gmra.mrb[0].mxu0 %v2141
  %v2371 = vpop.f32.mrb[0].mxu0
  %v2372 = vadd.f32 0.0, %v2371
  %v2373 = vpop.f32.mrb[0].mxu0
  %v2374 = vadd.f32 0.0, %v2373
  %2375 = vmatprep.mubr.f32.mxu0 %v2225
  %2376 = vmatmul.mubr.f32.gmra.mrb[0].mxu0 %v2161
  %v2377 = vpop.f32.mrb[0].mxu0
  %v2378 = vadd.f32 0.0, %v2377
  %v2379 = vpop.f32.mrb[0].mxu0
  %v2380 = vadd.f32 0.0, %v2379
  %2381 = vdwg.mxu0
  %v2382 = vadd.f32 %v2007, %v2300
  %v2383 = vadd.f32 %v2009, %v2302
  %v2384 = vadd.f32 %v2013, %v2306
  %v2385 = vadd.f32 %v2015, %v2308
  %v2386 = vadd.f32 %v2019, %v2312
  %v2387 = vadd.f32 %v2021, %v2314
  %v2388 = vadd.f32 %v2025, %v2318
  %v2389 = vadd.f32 %v2027, %v2320
  %v2390 = vadd.f32 %v2031, %v2324
  %v2391 = vadd.f32 %v2033, %v2326
  %v2392 = vadd.f32 %v2037, %v2330
  %v2393 = vadd.f32 %v2039, %v2332
  %v2394 = vadd.f32 %v2043, %v2336
  %v2395 = vadd.f32 %v2045, %v2338
  %v2396 = vadd.f32 %v2049, %v2342
  %v2397 = vadd.f32 %v2051, %v2344
  %v2398 = vadd.f32 %v2055, %v2348
  %v2399 = vadd.f32 %v2057, %v2350
  %v2400 = vadd.f32 %v2061, %v2354
  %v2401 = vadd.f32 %v2063, %v2356
  %v2402 = vadd.f32 %v2067, %v2360
  %v2403 = vadd.f32 %v2069, %v2362
  %v2404 = vadd.f32 %v2073, %v2366
  %v2405 = vadd.f32 %v2075, %v2368
  %v2406 = vadd.f32 %v2079, %v2372
  %v2407 = vadd.f32 %v2081, %v2374
  %v2408 = vadd.f32 %v2085, %v2378
  %v2409 = vadd.f32 %v2087, %v2380
  %vm2410 = vcmask 1044480
  %v2411 = vrot.slane %v1522, 3
  %v2412 = vrot.slane %v1524, 3
  %v2413 = vsel %vm2410, %v2411, %v2412
  %v2414 = vrot.slane %v1523, 3
  %v2415 = vrot.slane %v1525, 3
  %v2416 = vsel %vm2410, %v2414, %v2415
  %v2417 = vrot.slane %v1526, 3
  %v2418 = vsel %vm2410, %v2412, %v2417
  %v2419 = vrot.slane %v1527, 3
  %v2420 = vsel %vm2410, %v2415, %v2419
  %v2421 = vrot.slane %v1528, 3
  %v2422 = vsel %vm2410, %v2417, %v2421
  %v2423 = vrot.slane %v1529, 3
  %v2424 = vsel %vm2410, %v2419, %v2423
  %v2425 = vrot.slane %v1530, 3
  %v2426 = vsel %vm2410, %v2421, %v2425
  %v2427 = vrot.slane %v1531, 3
  %v2428 = vsel %vm2410, %v2423, %v2427
  %v2429 = vrot.slane %v1532, 3
  %v2430 = vsel %vm2410, %v2425, %v2429
  %v2431 = vrot.slane %v1533, 3
  %v2432 = vsel %vm2410, %v2427, %v2431
  %v2433 = vrot.slane %v1534, 3
  %v2434 = vsel %vm2410, %v2429, %v2433
  %v2435 = vrot.slane %v1535, 3
  %v2436 = vsel %vm2410, %v2431, %v2435
  %v2437 = vrot.slane %v1536, 3
  %v2438 = vsel %vm2410, %v2433, %v2437
  %v2439 = vrot.slane %v1537, 3
  %v2440 = vsel %vm2410, %v2435, %v2439
  %v2441 = vrot.slane %v1538, 3
  %v2442 = vsel %vm2410, %v2437, %v2441
  %v2443 = vrot.slane %v1539, 3
  %v2444 = vsel %vm2410, %v2439, %v2443
  %v2445 = vrot.slane %v1540, 3
  %v2446 = vsel %vm2410, %v2441, %v2445
  %v2447 = vrot.slane %v1541, 3
  %v2448 = vsel %vm2410, %v2443, %v2447
  %v2449 = vrot.slane %v1542, 3
  %v2450 = vsel %vm2410, %v2445, %v2449
  %v2451 = vrot.slane %v1543, 3
  %v2452 = vsel %vm2410, %v2447, %v2451
  %v2453 = vrot.slane %v1544, 3
  %v2454 = vsel %vm2410, %v2449, %v2453
  %v2455 = vrot.slane %v1545, 3
  %v2456 = vsel %vm2410, %v2451, %v2455
  %v2457 = vrot.slane %v1546, 3
  %v2458 = vsel %vm2410, %v2453, %v2457
  %v2459 = vrot.slane %v1547, 3
  %v2460 = vsel %vm2410, %v2455, %v2459
  %v2461 = vrot.slane %v1548, 3
  %v2462 = vsel %vm2410, %v2457, %v2461
  %v2463 = vrot.slane %v1549, 3
  %v2464 = vsel %vm2410, %v2459, %v2463
  %v2482 = vsel %vm2410, %v2461, %v2411
  %v2483 = vsel %vm2410, %v2463, %v2414
  %s2484 = scalar_lea.vmem %s3, 816
  %v2485 = vld [vmem:[%s2484] sm:$0xff]
  %v2486 = vld [vmem:[%s2484 + $0x8] sm:$0xff]
  %v2487 = vld [vmem:[%s2484 + $0x10] sm:$0xff]
  %v2488 = vld [vmem:[%s2484 + $0x18] sm:$0xff]
  %v2489 = vld [vmem:[%s2484 + $0x20] sm:$0xff]
  %v2490 = vld [vmem:[%s2484 + $0x28] sm:$0xff]
  %v2491 = vld [vmem:[%s2484 + $0x30] sm:$0xff]
  %v2492 = vld [vmem:[%s2484 + $0x38] sm:$0xff]
  %v2493 = vld [vmem:[%s2484 + $0x40] sm:$0xff]
  %v2494 = vld [vmem:[%s2484 + $0x48] sm:$0xff]
  %v2495 = vld [vmem:[%s2484 + $0x50] sm:$0xff]
  %v2496 = vld [vmem:[%s2484 + $0x58] sm:$0xff]
  %v2497 = vld [vmem:[%s2484 + $0x60] sm:$0xff]
  %v2498 = vld [vmem:[%s2484 + $0x68] sm:$0xff]
  %v2499 = vld [vmem:[%s2484 + $0x70] sm:$0xff]
  %v2500 = vld [vmem:[%s2484 + $0x78] sm:$0xff]
  %v2501 = vld [vmem:[%s2484 + $0x80] sm:$0xff]
  %v2502 = vld [vmem:[%s2484 + $0x88] sm:$0xff]
  %v2503 = vld [vmem:[%s2484 + $0x90] sm:$0xff]
  %v2504 = vld [vmem:[%s2484 + $0x98] sm:$0xff]
  %v2505 = vld [vmem:[%s2484 + $0xa0] sm:$0xff]
  %v2506 = vld [vmem:[%s2484 + $0xa8] sm:$0xff]
  %v2507 = vld [vmem:[%s2484 + $0xb0] sm:$0xff]
  %v2508 = vld [vmem:[%s2484 + $0xb8] sm:$0xff]
  %v2509 = vld [vmem:[%s2484 + $0xc0] sm:$0xff]
  %v2510 = vld [vmem:[%s2484 + $0xc8] sm:$0xff]
  %v2511 = vld [vmem:[%s2484 + $0xd0] sm:$0xff]
  %v2512 = vld [vmem:[%s2484 + $0xd8] sm:$0xff]
  %v2513 = vld [vmem:[%s2484 + $0xe0] sm:$0xff]
  %v2514 = vld [vmem:[%s2484 + $0xe8] sm:$0xff]
  %v2515 = vld [vmem:[%s2484 + $0xf0] sm:$0xff]
  %v2516 = vld [vmem:[%s2484 + $0xf8] sm:$0xff]
  %v2517 = vld [vmem:[%s2484 + $0x100] sm:$0x3]
  %v2518 = vld [vmem:[%s2484 + $0x108] sm:$0x3]
  %v2519 = vsel %vm1720, %v2416, 0
  %v2521 = vsel %vm1720, %v2420, 0
  %v2523 = vsel %vm1720, %v2424, 0
  %v2525 = vsel %vm1720, %v2428, 0
  %v2527 = vsel %vm1720, %v2432, 0
  %v2529 = vsel %vm1720, %v2436, 0
  %v2531 = vsel %vm1720, %v2440, 0
  %v2533 = vsel %vm1720, %v2444, 0
  %v2535 = vsel %vm1720, %v2448, 0
  %v2537 = vsel %vm1720, %v2452, 0
  %v2539 = vsel %vm1720, %v2456, 0
  %v2541 = vsel %vm1720, %v2460, 0
  %v2543 = vsel %vm1720, %v2464, 0
  %v2546 = vsel %vm1720, %v2483, 0
  %v2549 = vsel %vm1750, %v2517, 0
  %v2552 = vsel %vm1750, %v2518, 0
  %2554 = vmatprep.subr.mxu0 %v2486
  %2555 = vmatpush1.msra.mxu0 %v2485
  %2556 = vmatprep.subr.mxu0 %v2488
  %2557 = vmatpush1.msra.mxu0 %v2487
  %2558 = vmatprep.subr.mxu0 %v2490
  %2559 = vmatpush1.msra.mxu0 %v2489
  %2560 = vmatprep.subr.mxu0 %v2492
  %2561 = vmatpush1.msra.mxu0 %v2491
  %2562 = vmatprep.subr.mxu0 %v2494
  %2563 = vmatpush1.msra.mxu0 %v2493
  %2564 = vmatprep.subr.mxu0 %v2496
  %2565 = vmatpush1.msra.mxu0 %v2495
  %2566 = vmatprep.subr.mxu0 %v2498
  %2567 = vmatpush1.msra.mxu0 %v2497
  %2568 = vmatprep.subr.mxu0 %v2500
  %2569 = vmatpush1.msra.mxu0 %v2499
  %2570 = vmatprep.subr.mxu0 %v2502
  %2571 = vmatpush1.msra.mxu0 %v2501
  %2572 = vmatprep.subr.mxu0 %v2504
  %2573 = vmatpush1.msra.mxu0 %v2503
  %2574 = vmatprep.subr.mxu0 %v2506
  %2575 = vmatpush1.msra.mxu0 %v2505
  %2576 = vmatprep.subr.mxu0 %v2508
  %2577 = vmatpush1.msra.mxu0 %v2507
  %2578 = vmatprep.subr.mxu0 %v2510
  %2579 = vmatpush1.msra.mxu0 %v2509
  %2580 = vmatprep.subr.mxu0 %v2512
  %2581 = vmatpush1.msra.mxu0 %v2511
  %2582 = vmatprep.subr.mxu0 %v2514
  %2583 = vmatpush1.msra.mxu0 %v2513
  %2584 = vmatprep.subr.mxu0 %v2516
  %2585 = vmatpush1.msra.mxu0 %v2515
  %2586 = vmatprep.subr.mxu0 %v2552
  %2587 = vmatpush1.msra.mxu0 %v2549
  %2588 = vmatprep.subr.mxu0 0.0
  %2589 = vmatpush1.msra.mxu0 0.0
  %2590 = vmatprep.subr.mxu0 0.0
  %2591 = vmatpush1.msra.mxu0 0.0
  %2592 = vmatprep.subr.mxu0 0.0
  %2593 = vmatpush1.msra.mxu0 0.0
  %2594 = vmatprep.subr.mxu0 0.0
  %2595 = vmatpush1.msra.mxu0 0.0
  %2596 = vmatprep.subr.mxu0 0.0
  %2597 = vmatpush1.msra.mxu0 0.0
  %2598 = vmatprep.subr.mxu0 0.0
  %2599 = vmatpush1.msra.mxu0 0.0
  %2600 = vmatprep.subr.mxu0 0.0
  %2601 = vmatpush1.msra.mxu0 0.0
  %2602 = vmatprep.subr.mxu0 0.0
  %2603 = vmatpush1.msra.mxu0 0.0
  %2604 = vmatprep.subr.mxu0 0.0
  %2605 = vmatpush1.msra.mxu0 0.0
  %2606 = vmatprep.subr.mxu0 0.0
  %2607 = vmatpush1.msra.mxu0 0.0
  %2608 = vmatprep.subr.mxu0 0.0
  %2609 = vmatpush1.msra.mxu0 0.0
  %2610 = vmatprep.subr.mxu0 0.0
  %2611 = vmatpush1.msra.mxu0 0.0
  %2612 = vmatprep.subr.mxu0 0.0
  %2613 = vmatpush1.msra.mxu0 0.0
  %2614 = vmatprep.subr.mxu0 0.0
  %2615 = vmatpush1.msra.mxu0 0.0
  %2616 = vmatprep.subr.mxu0 0.0
  %2617 = vmatpush1.msra.mxu0 0.0
  %2618 = vmatprep.mubr.f32.mxu0 %v2519
  %2619 = vmatmul.mubr.f32.gmra.mrb[0].mxu0 %v2413
  %v2620 = vpop.f32.mrb[0].mxu0
  %v2621 = vadd.f32 0.0, %v2620
  %v2622 = vpop.f32.mrb[0].mxu0
  %v2623 = vadd.f32 0.0, %v2622
  %2624 = vmatprep.mubr.f32.mxu0 %v2521
  %2625 = vmatmul.mubr.f32.gmra.mrb[0].mxu0 %v2418
  %v2626 = vpop.f32.mrb[0].mxu0
  %v2627 = vadd.f32 0.0, %v2626
  %v2628 = vpop.f32.mrb[0].mxu0
  %v2629 = vadd.f32 0.0, %v2628
  %2630 = vmatprep.mubr.f32.mxu0 %v2523
  %2631 = vmatmul.mubr.f32.gmra.mrb[0].mxu0 %v2422
  %v2632 = vpop.f32.mrb[0].mxu0
  %v2633 = vadd.f32 0.0, %v2632
  %v2634 = vpop.f32.mrb[0].mxu0
  %v2635 = vadd.f32 0.0, %v2634
  %2636 = vmatprep.mubr.f32.mxu0 %v2525
  %2637 = vmatmul.mubr.f32.gmra.mrb[0].mxu0 %v2426
  %v2638 = vpop.f32.mrb[0].mxu0
  %v2639 = vadd.f32 0.0, %v2638
  %v2640 = vpop.f32.mrb[0].mxu0
  %v2641 = vadd.f32 0.0, %v2640
  %2642 = vmatprep.mubr.f32.mxu0 %v2527
  %2643 = vmatmul.mubr.f32.gmra.mrb[0].mxu0 %v2430
  %v2644 = vpop.f32.mrb[0].mxu0
  %v2645 = vadd.f32 0.0, %v2644
  %v2646 = vpop.f32.mrb[0].mxu0
  %v2647 = vadd.f32 0.0, %v2646
  %2648 = vmatprep.mubr.f32.mxu0 %v2529
  %2649 = vmatmul.mubr.f32.gmra.mrb[0].mxu0 %v2434
  %v2650 = vpop.f32.mrb[0].mxu0
  %v2651 = vadd.f32 0.0, %v2650
  %v2652 = vpop.f32.mrb[0].mxu0
  %v2653 = vadd.f32 0.0, %v2652
  %2654 = vmatprep.mubr.f32.mxu0 %v2531
  %2655 = vmatmul.mubr.f32.gmra.mrb[0].mxu0 %v2438
  %v2656 = vpop.f32.mrb[0].mxu0
  %v2657 = vadd.f32 0.0, %v2656
  %v2658 = vpop.f32.mrb[0].mxu0
  %v2659 = vadd.f32 0.0, %v2658
  %2660 = vmatprep.mubr.f32.mxu0 %v2533
  %2661 = vmatmul.mubr.f32.gmra.mrb[0].mxu0 %v2442
  %v2662 = vpop.f32.mrb[0].mxu0
  %v2663 = vadd.f32 0.0, %v2662
  %v2664 = vpop.f32.mrb[0].mxu0
  %v2665 = vadd.f32 0.0, %v2664
  %2666 = vmatprep.mubr.f32.mxu0 %v2535
  %2667 = vmatmul.mubr.f32.gmra.mrb[0].mxu0 %v2446
  %v2668 = vpop.f32.mrb[0].mxu0
  %v2669 = vadd.f32 0.0, %v2668
  %v2670 = vpop.f32.mrb[0].mxu0
  %v2671 = vadd.f32 0.0, %v2670
  %2672 = vmatprep.mubr.f32.mxu0 %v2537
  %2673 = vmatmul.mubr.f32.gmra.mrb[0].mxu0 %v2450
  %v2674 = vpop.f32.mrb[0].mxu0
  %v2675 = vadd.f32 0.0, %v2674
  %v2676 = vpop.f32.mrb[0].mxu0
  %v2677 = vadd.f32 0.0, %v2676
  %2678 = vmatprep.mubr.f32.mxu0 %v2539
  %2679 = vmatmul.mubr.f32.gmra.mrb[0].mxu0 %v2454
  %v2680 = vpop.f32.mrb[0].mxu0
  %v2681 = vadd.f32 0.0, %v2680
  %v2682 = vpop.f32.mrb[0].mxu0
  %v2683 = vadd.f32 0.0, %v2682
  %2684 = vmatprep.mubr.f32.mxu0 %v2541
  %2685 = vmatmul.mubr.f32.gmra.mrb[0].mxu0 %v2458
  %v2686 = vpop.f32.mrb[0].mxu0
  %v2687 = vadd.f32 0.0, %v2686
  %v2688 = vpop.f32.mrb[0].mxu0
  %v2689 = vadd.f32 0.0, %v2688
  %2690 = vmatprep.mubr.f32.mxu0 %v2543
  %2691 = vmatmul.mubr.f32.gmra.mrb[0].mxu0 %v2462
  %v2692 = vpop.f32.mrb[0].mxu0
  %v2693 = vadd.f32 0.0, %v2692
  %v2694 = vpop.f32.mrb[0].mxu0
  %v2695 = vadd.f32 0.0, %v2694
  %2696 = vmatprep.mubr.f32.mxu0 %v2546
  %2697 = vmatmul.mubr.f32.gmra.mrb[0].mxu0 %v2482
  %v2698 = vpop.f32.mrb[0].mxu0
  %v2699 = vadd.f32 0.0, %v2698
  %v2700 = vpop.f32.mrb[0].mxu0
  %v2701 = vadd.f32 0.0, %v2700
  %2702 = vdwg.mxu0
  %v2703 = vadd.f32 %v2382, %v2621
  %v2704 = vadd.f32 %v2383, %v2623
  %v2705 = vadd.f32 %v2384, %v2627
  %v2706 = vadd.f32 %v2385, %v2629
  %v2707 = vadd.f32 %v2386, %v2633
  %v2708 = vadd.f32 %v2387, %v2635
  %v2709 = vadd.f32 %v2388, %v2639
  %v2710 = vadd.f32 %v2389, %v2641
  %v2711 = vadd.f32 %v2390, %v2645
  %v2712 = vadd.f32 %v2391, %v2647
  %v2713 = vadd.f32 %v2392, %v2651
  %v2714 = vadd.f32 %v2393, %v2653
  %v2715 = vadd.f32 %v2394, %v2657
  %v2716 = vadd.f32 %v2395, %v2659
  %v2717 = vadd.f32 %v2396, %v2663
  %v2718 = vadd.f32 %v2397, %v2665
  %v2719 = vadd.f32 %v2398, %v2669
  %v2720 = vadd.f32 %v2399, %v2671
  %v2721 = vadd.f32 %v2400, %v2675
  %v2722 = vadd.f32 %v2401, %v2677
  %v2723 = vadd.f32 %v2402, %v2681
  %v2724 = vadd.f32 %v2403, %v2683
  %v2725 = vadd.f32 %v2404, %v2687
  %v2726 = vadd.f32 %v2405, %v2689
  %v2727 = vadd.f32 %v2406, %v2693
  %v2728 = vadd.f32 %v2407, %v2695
  %v2729 = vadd.f32 %v2408, %v2699
  %v2730 = vadd.f32 %v2409, %v2701
  %vm2731 = vcmask 1043456
  %v2732 = vrot.slane %v1522, 4
  %v2733 = vrot.slane %v1524, 4
  %v2734 = vsel %vm2731, %v2732, %v2733
  %v2735 = vrot.slane %v1523, 4
  %v2736 = vrot.slane %v1525, 4
  %v2737 = vsel %vm2731, %v2735, %v2736
  %v2738 = vrot.slane %v1526, 4
  %v2739 = vsel %vm2731, %v2733, %v2738
  %v2740 = vrot.slane %v1527, 4
  %v2741 = vsel %vm2731, %v2736, %v2740
  %v2742 = vrot.slane %v1528, 4
  %v2743 = vsel %vm2731, %v2738, %v2742
  %v2744 = vrot.slane %v1529, 4
  %v2745 = vsel %vm2731, %v2740, %v2744
  %v2746 = vrot.slane %v1530, 4
  %v2747 = vsel %vm2731, %v2742, %v2746
  %v2748 = vrot.slane %v1531, 4
  %v2749 = vsel %vm2731, %v2744, %v2748
  %v2750 = vrot.slane %v1532, 4
  %v2751 = vsel %vm2731, %v2746, %v2750
  %v2752 = vrot.slane %v1533, 4
  %v2753 = vsel %vm2731, %v2748, %v2752
  %v2754 = vrot.slane %v1534, 4
  %v2755 = vsel %vm2731, %v2750, %v2754
  %v2756 = vrot.slane %v1535, 4
  %v2757 = vsel %vm2731, %v2752, %v2756
  %v2758 = vrot.slane %v1536, 4
  %v2759 = vsel %vm2731, %v2754, %v2758
  %v2760 = vrot.slane %v1537, 4
  %v2761 = vsel %vm2731, %v2756, %v2760
  %v2762 = vrot.slane %v1538, 4
  %v2763 = vsel %vm2731, %v2758, %v2762
  %v2764 = vrot.slane %v1539, 4
  %v2765 = vsel %vm2731, %v2760, %v2764
  %v2766 = vrot.slane %v1540, 4
  %v2767 = vsel %vm2731, %v2762, %v2766
  %v2768 = vrot.slane %v1541, 4
  %v2769 = vsel %vm2731, %v2764, %v2768
  %v2770 = vrot.slane %v1542, 4
  %v2771 = vsel %vm2731, %v2766, %v2770
  %v2772 = vrot.slane %v1543, 4
  %v2773 = vsel %vm2731, %v2768, %v2772
  %v2774 = vrot.slane %v1544, 4
  %v2775 = vsel %vm2731, %v2770, %v2774
  %v2776 = vrot.slane %v1545, 4
  %v2777 = vsel %vm2731, %v2772, %v2776
  %v2778 = vrot.slane %v1546, 4
  %v2779 = vsel %vm2731, %v2774, %v2778
  %v2780 = vrot.slane %v1547, 4
  %v2781 = vsel %vm2731, %v2776, %v2780
  %v2782 = vrot.slane %v1548, 4
  %v2783 = vsel %vm2731, %v2778, %v2782
  %v2784 = vrot.slane %v1549, 4
  %v2785 = vsel %vm2731, %v2780, %v2784
  %v2803 = vsel %vm2731, %v2782, %v2732
  %v2804 = vsel %vm2731, %v2784, %v2735
  %s2805 = scalar_lea.vmem %s3, 1088
  %v2806 = vld [vmem:[%s2805] sm:$0xff]
  %v2807 = vld [vmem:[%s2805 + $0x8] sm:$0xff]
  %v2808 = vld [vmem:[%s2805 + $0x10] sm:$0xff]
  %v2809 = vld [vmem:[%s2805 + $0x18] sm:$0xff]
  %v2810 = vld [vmem:[%s2805 + $0x20] sm:$0xff]
  %v2811 = vld [vmem:[%s2805 + $0x28] sm:$0xff]
  %v2812 = vld [vmem:[%s2805 + $0x30] sm:$0xff]
  %v2813 = vld [vmem:[%s2805 + $0x38] sm:$0xff]
  %v2814 = vld [vmem:[%s2805 + $0x40] sm:$0xff]
  %v2815 = vld [vmem:[%s2805 + $0x48] sm:$0xff]
  %v2816 = vld [vmem:[%s2805 + $0x50] sm:$0xff]
  %v2817 = vld [vmem:[%s2805 + $0x58] sm:$0xff]
  %v2818 = vld [vmem:[%s2805 + $0x60] sm:$0xff]
  %v2819 = vld [vmem:[%s2805 + $0x68] sm:$0xff]
  %v2820 = vld [vmem:[%s2805 + $0x70] sm:$0xff]
  %v2821 = vld [vmem:[%s2805 + $0x78] sm:$0xff]
  %v2822 = vld [vmem:[%s2805 + $0x80] sm:$0xff]
  %v2823 = vld [vmem:[%s2805 + $0x88] sm:$0xff]
  %v2824 = vld [vmem:[%s2805 + $0x90] sm:$0xff]
  %v2825 = vld [vmem:[%s2805 + $0x98] sm:$0xff]
  %v2826 = vld [vmem:[%s2805 + $0xa0] sm:$0xff]
  %v2827 = vld [vmem:[%s2805 + $0xa8] sm:$0xff]
  %v2828 = vld [vmem:[%s2805 + $0xb0] sm:$0xff]
  %v2829 = vld [vmem:[%s2805 + $0xb8] sm:$0xff]
  %v2830 = vld [vmem:[%s2805 + $0xc0] sm:$0xff]
  %v2831 = vld [vmem:[%s2805 + $0xc8] sm:$0xff]
  %v2832 = vld [vmem:[%s2805 + $0xd0] sm:$0xff]
  %v2833 = vld [vmem:[%s2805 + $0xd8] sm:$0xff]
  %v2834 = vld [vmem:[%s2805 + $0xe0] sm:$0xff]
  %v2835 = vld [vmem:[%s2805 + $0xe8] sm:$0xff]
  %v2836 = vld [vmem:[%s2805 + $0xf0] sm:$0xff]
  %v2837 = vld [vmem:[%s2805 + $0xf8] sm:$0xff]
  %v2838 = vld [vmem:[%s2805 + $0x100] sm:$0x3]
  %v2839 = vld [vmem:[%s2805 + $0x108] sm:$0x3]
  %v2840 = vsel %vm1720, %v2737, 0
  %v2842 = vsel %vm1720, %v2741, 0
  %v2844 = vsel %vm1720, %v2745, 0
  %v2846 = vsel %vm1720, %v2749, 0
  %v2848 = vsel %vm1720, %v2753, 0
  %v2850 = vsel %vm1720, %v2757, 0
  %v2852 = vsel %vm1720, %v2761, 0
  %v2854 = vsel %vm1720, %v2765, 0
  %v2856 = vsel %vm1720, %v2769, 0
  %v2858 = vsel %vm1720, %v2773, 0
  %v2860 = vsel %vm1720, %v2777, 0
  %v2862 = vsel %vm1720, %v2781, 0
  %v2864 = vsel %vm1720, %v2785, 0
  %v2867 = vsel %vm1720, %v2804, 0
  %v2870 = vsel %vm1750, %v2838, 0
  %v2873 = vsel %vm1750, %v2839, 0
  %2875 = vmatprep.subr.mxu0 %v2807
  %2876 = vmatpush1.msra.mxu0 %v2806
  %2877 = vmatprep.subr.mxu0 %v2809
  %2878 = vmatpush1.msra.mxu0 %v2808
  %2879 = vmatprep.subr.mxu0 %v2811
  %2880 = vmatpush1.msra.mxu0 %v2810
  %2881 = vmatprep.subr.mxu0 %v2813
  %2882 = vmatpush1.msra.mxu0 %v2812
  %2883 = vmatprep.subr.mxu0 %v2815
  %2884 = vmatpush1.msra.mxu0 %v2814
  %2885 = vmatprep.subr.mxu0 %v2817
  %2886 = vmatpush1.msra.mxu0 %v2816
  %2887 = vmatprep.subr.mxu0 %v2819
  %2888 = vmatpush1.msra.mxu0 %v2818
  %2889 = vmatprep.subr.mxu0 %v2821
  %2890 = vmatpush1.msra.mxu0 %v2820
  %2891 = vmatprep.subr.mxu0 %v2823
  %2892 = vmatpush1.msra.mxu0 %v2822
  %2893 = vmatprep.subr.mxu0 %v2825
  %2894 = vmatpush1.msra.mxu0 %v2824
  %2895 = vmatprep.subr.mxu0 %v2827
  %2896 = vmatpush1.msra.mxu0 %v2826
  %2897 = vmatprep.subr.mxu0 %v2829
  %2898 = vmatpush1.msra.mxu0 %v2828
  %2899 = vmatprep.subr.mxu0 %v2831
  %2900 = vmatpush1.msra.mxu0 %v2830
  %2901 = vmatprep.subr.mxu0 %v2833
  %2902 = vmatpush1.msra.mxu0 %v2832
  %2903 = vmatprep.subr.mxu0 %v2835
  %2904 = vmatpush1.msra.mxu0 %v2834
  %2905 = vmatprep.subr.mxu0 %v2837
  %2906 = vmatpush1.msra.mxu0 %v2836
  %2907 = vmatprep.subr.mxu0 %v2873
  %2908 = vmatpush1.msra.mxu0 %v2870
  %2909 = vmatprep.subr.mxu0 0.0
  %2910 = vmatpush1.msra.mxu0 0.0
  %2911 = vmatprep.subr.mxu0 0.0
  %2912 = vmatpush1.msra.mxu0 0.0
  %2913 = vmatprep.subr.mxu0 0.0
  %2914 = vmatpush1.msra.mxu0 0.0
  %2915 = vmatprep.subr.mxu0 0.0
  %2916 = vmatpush1.msra.mxu0 0.0
  %2917 = vmatprep.subr.mxu0 0.0
  %2918 = vmatpush1.msra.mxu0 0.0
  %2919 = vmatprep.subr.mxu0 0.0
  %2920 = vmatpush1.msra.mxu0 0.0
  %2921 = vmatprep.subr.mxu0 0.0
  %2922 = vmatpush1.msra.mxu0 0.0
  %2923 = vmatprep.subr.mxu0 0.0
  %2924 = vmatpush1.msra.mxu0 0.0
  %2925 = vmatprep.subr.mxu0 0.0
  %2926 = vmatpush1.msra.mxu0 0.0
  %2927 = vmatprep.subr.mxu0 0.0
  %2928 = vmatpush1.msra.mxu0 0.0
  %2929 = vmatprep.subr.mxu0 0.0
  %2930 = vmatpush1.msra.mxu0 0.0
  %2931 = vmatprep.subr.mxu0 0.0
  %2932 = vmatpush1.msra.mxu0 0.0
  %2933 = vmatprep.subr.mxu0 0.0
  %2934 = vmatpush1.msra.mxu0 0.0
  %2935 = vmatprep.subr.mxu0 0.0
  %2936 = vmatpush1.msra.mxu0 0.0
  %2937 = vmatprep.subr.mxu0 0.0
  %2938 = vmatpush1.msra.mxu0 0.0
  %2939 = vmatprep.mubr.f32.mxu0 %v2840
  %2940 = vmatmul.mubr.f32.gmra.mrb[0].mxu0 %v2734
  %v2941 = vpop.f32.mrb[0].mxu0
  %v2942 = vadd.f32 0.0, %v2941
  %v2943 = vpop.f32.mrb[0].mxu0
  %v2944 = vadd.f32 0.0, %v2943
  %2945 = vmatprep.mubr.f32.mxu0 %v2842
  %2946 = vmatmul.mubr.f32.gmra.mrb[0].mxu0 %v2739
  %v2947 = vpop.f32.mrb[0].mxu0
  %v2948 = vadd.f32 0.0, %v2947
  %v2949 = vpop.f32.mrb[0].mxu0
  %v2950 = vadd.f32 0.0, %v2949
  %2951 = vmatprep.mubr.f32.mxu0 %v2844
  %2952 = vmatmul.mubr.f32.gmra.mrb[0].mxu0 %v2743
  %v2953 = vpop.f32.mrb[0].mxu0
  %v2954 = vadd.f32 0.0, %v2953
  %v2955 = vpop.f32.mrb[0].mxu0
  %v2956 = vadd.f32 0.0, %v2955
  %2957 = vmatprep.mubr.f32.mxu0 %v2846
  %2958 = vmatmul.mubr.f32.gmra.mrb[0].mxu0 %v2747
  %v2959 = vpop.f32.mrb[0].mxu0
  %v2960 = vadd.f32 0.0, %v2959
  %v2961 = vpop.f32.mrb[0].mxu0
  %v2962 = vadd.f32 0.0, %v2961
  %2963 = vmatprep.mubr.f32.mxu0 %v2848
  %2964 = vmatmul.mubr.f32.gmra.mrb[0].mxu0 %v2751
  %v2965 = vpop.f32.mrb[0].mxu0
  %v2966 = vadd.f32 0.0, %v2965
  %v2967 = vpop.f32.mrb[0].mxu0
  %v2968 = vadd.f32 0.0, %v2967
  %2969 = vmatprep.mubr.f32.mxu0 %v2850
  %2970 = vmatmul.mubr.f32.gmra.mrb[0].mxu0 %v2755
  %v2971 = vpop.f32.mrb[0].mxu0
  %v2972 = vadd.f32 0.0, %v2971
  %v2973 = vpop.f32.mrb[0].mxu0
  %v2974 = vadd.f32 0.0, %v2973
  %2975 = vmatprep.mubr.f32.mxu0 %v2852
  %2976 = vmatmul.mubr.f32.gmra.mrb[0].mxu0 %v2759
  %v2977 = vpop.f32.mrb[0].mxu0
  %v2978 = vadd.f32 0.0, %v2977
  %v2979 = vpop.f32.mrb[0].mxu0
  %v2980 = vadd.f32 0.0, %v2979
  %2981 = vmatprep.mubr.f32.mxu0 %v2854
  %2982 = vmatmul.mubr.f32.gmra.mrb[0].mxu0 %v2763
  %v2983 = vpop.f32.mrb[0].mxu0
  %v2984 = vadd.f32 0.0, %v2983
  %v2985 = vpop.f32.mrb[0].mxu0
  %v2986 = vadd.f32 0.0, %v2985
  %2987 = vmatprep.mubr.f32.mxu0 %v2856
  %2988 = vmatmul.mubr.f32.gmra.mrb[0].mxu0 %v2767
  %v2989 = vpop.f32.mrb[0].mxu0
  %v2990 = vadd.f32 0.0, %v2989
  %v2991 = vpop.f32.mrb[0].mxu0
  %v2992 = vadd.f32 0.0, %v2991
  %2993 = vmatprep.mubr.f32.mxu0 %v2858
  %2994 = vmatmul.mubr.f32.gmra.mrb[0].mxu0 %v2771
  %v2995 = vpop.f32.mrb[0].mxu0
  %v2996 = vadd.f32 0.0, %v2995
  %v2997 = vpop.f32.mrb[0].mxu0
  %v2998 = vadd.f32 0.0, %v2997
  %2999 = vmatprep.mubr.f32.mxu0 %v2860
  %3000 = vmatmul.mubr.f32.gmra.mrb[0].mxu0 %v2775
  %v3001 = vpop.f32.mrb[0].mxu0
  %v3002 = vadd.f32 0.0, %v3001
  %v3003 = vpop.f32.mrb[0].mxu0
  %v3004 = vadd.f32 0.0, %v3003
  %3005 = vmatprep.mubr.f32.mxu0 %v2862
  %3006 = vmatmul.mubr.f32.gmra.mrb[0].mxu0 %v2779
  %v3007 = vpop.f32.mrb[0].mxu0
  %v3008 = vadd.f32 0.0, %v3007
  %v3009 = vpop.f32.mrb[0].mxu0
  %v3010 = vadd.f32 0.0, %v3009
  %3011 = vmatprep.mubr.f32.mxu0 %v2864
  %3012 = vmatmul.mubr.f32.gmra.mrb[0].mxu0 %v2783
  %v3013 = vpop.f32.mrb[0].mxu0
  %v3014 = vadd.f32 0.0, %v3013
  %v3015 = vpop.f32.mrb[0].mxu0
  %v3016 = vadd.f32 0.0, %v3015
  %3017 = vmatprep.mubr.f32.mxu0 %v2867
  %3018 = vmatmul.mubr.f32.gmra.mrb[0].mxu0 %v2803
  %v3019 = vpop.f32.mrb[0].mxu0
  %v3020 = vadd.f32 0.0, %v3019
  %v3021 = vpop.f32.mrb[0].mxu0
  %v3022 = vadd.f32 0.0, %v3021
  %3023 = vdwg.mxu0
  %v3024 = vadd.f32 %v2703, %v2942
  %v3025 = vadd.f32 %v2704, %v2944
  %v3026 = vadd.f32 %v2705, %v2948
  %v3027 = vadd.f32 %v2706, %v2950
  %v3028 = vadd.f32 %v2707, %v2954
  %v3029 = vadd.f32 %v2708, %v2956
  %v3030 = vadd.f32 %v2709, %v2960
  %v3031 = vadd.f32 %v2710, %v2962
  %v3032 = vadd.f32 %v2711, %v2966
  %v3033 = vadd.f32 %v2712, %v2968
  %v3034 = vadd.f32 %v2713, %v2972
  %v3035 = vadd.f32 %v2714, %v2974
  %v3036 = vadd.f32 %v2715, %v2978
  %v3037 = vadd.f32 %v2716, %v2980
  %v3038 = vadd.f32 %v2717, %v2984
  %v3039 = vadd.f32 %v2718, %v2986
  %v3040 = vadd.f32 %v2719, %v2990
  %v3041 = vadd.f32 %v2720, %v2992
  %v3042 = vadd.f32 %v2721, %v2996
  %v3043 = vadd.f32 %v2722, %v2998
  %v3044 = vadd.f32 %v2723, %v3002
  %v3045 = vadd.f32 %v2724, %v3004
  %v3046 = vadd.f32 %v2725, %v3008
  %v3047 = vadd.f32 %v2726, %v3010
  %v3048 = vadd.f32 %v2727, %v3014
  %v3049 = vadd.f32 %v2728, %v3016
  %v3050 = vadd.f32 %v2729, %v3020
  %v3051 = vadd.f32 %v2730, %v3022
  %3080 = vrot.lane.b32.xlu0 %v3024, 48
  %v3081 = vpop.permute.xlu0 %3080
  %3082 = vrot.lane.b32.xlu0 %v3025, 48
  %v3083 = vpop.permute.xlu0 %3082
  %3084 = vrot.lane.b32.xlu0 %v3026, 48
  %v3085 = vpop.permute.xlu0 %3084
  %3086 = vrot.lane.b32.xlu0 %v3027, 48
  %v3087 = vpop.permute.xlu0 %3086
  %3088 = vrot.lane.b32.xlu0 %v3028, 48
  %v3089 = vpop.permute.xlu0 %3088
  %3090 = vrot.lane.b32.xlu0 %v3029, 48
  %v3091 = vpop.permute.xlu0 %3090
  %3092 = vrot.lane.b32.xlu0 %v3030, 48
  %v3093 = vpop.permute.xlu0 %3092
  %3094 = vrot.lane.b32.xlu0 %v3031, 48
  %v3095 = vpop.permute.xlu0 %3094
  %3096 = vrot.lane.b32.xlu0 %v3032, 48
  %v3097 = vpop.permute.xlu0 %3096
  %3098 = vrot.lane.b32.xlu0 %v3033, 48
  %v3099 = vpop.permute.xlu0 %3098
  %3100 = vrot.lane.b32.xlu0 %v3034, 48
  %v3101 = vpop.permute.xlu0 %3100
  %3102 = vrot.lane.b32.xlu0 %v3035, 48
  %v3103 = vpop.permute.xlu0 %3102
  %3104 = vrot.lane.b32.xlu0 %v3036, 48
  %v3105 = vpop.permute.xlu0 %3104
  %3106 = vrot.lane.b32.xlu0 %v3037, 48
  %v3107 = vpop.permute.xlu0 %3106
  %3108 = vrot.lane.b32.xlu0 %v3038, 48
  %v3109 = vpop.permute.xlu0 %3108
  %3110 = vrot.lane.b32.xlu0 %v3039, 48
  %v3111 = vpop.permute.xlu0 %3110
  %3112 = vrot.lane.b32.xlu0 %v3040, 48
  %v3113 = vpop.permute.xlu0 %3112
  %3114 = vrot.lane.b32.xlu0 %v3041, 48
  %v3115 = vpop.permute.xlu0 %3114
  %3116 = vrot.lane.b32.xlu0 %v3042, 48
  %v3117 = vpop.permute.xlu0 %3116
  %3118 = vrot.lane.b32.xlu0 %v3043, 48
  %v3119 = vpop.permute.xlu0 %3118
  %3120 = vrot.lane.b32.xlu0 %v3044, 48
  %v3121 = vpop.permute.xlu0 %3120
  %3122 = vrot.lane.b32.xlu0 %v3045, 48
  %v3123 = vpop.permute.xlu0 %3122
  %3124 = vrot.lane.b32.xlu0 %v3046, 48
  %v3125 = vpop.permute.xlu0 %3124
  %3126 = vrot.lane.b32.xlu0 %v3047, 48
  %v3127 = vpop.permute.xlu0 %3126
  %3128 = vrot.lane.b32.xlu0 %v3048, 48
  %v3129 = vpop.permute.xlu0 %3128
  %3130 = vrot.lane.b32.xlu0 %v3049, 48
  %v3131 = vpop.permute.xlu0 %3130
  %3132 = vrot.lane.b32.xlu0 %v3050, 48
  %v3133 = vpop.permute.xlu0 %3132
  %3134 = vrot.lane.b32.xlu0 %v3051, 48
  %v3135 = vpop.permute.xlu0 %3134
  %vm3136 = vcmask 392192
  %v3137 = vsel %vm3136, %v3081, %v3083
  %v3138 = vsel %vm3136, %v3085, %v3087
  %v3139 = vsel %vm3136, %v3089, %v3091
  %v3140 = vsel %vm3136, %v3093, %v3095
  %v3141 = vsel %vm3136, %v3097, %v3099
  %v3142 = vsel %vm3136, %v3101, %v3103
  %v3143 = vsel %vm3136, %v3105, %v3107
  %v3144 = vsel %vm3136, %v3109, %v3111
  %v3145 = vsel %vm3136, %v3113, %v3115
  %v3146 = vsel %vm3136, %v3117, %v3119
  %v3147 = vsel %vm3136, %v3121, %v3123
  %v3148 = vsel %vm3136, %v3125, %v3127
  %v3149 = vsel %vm3136, %v3129, %v3131
  %v3150 = vsel %vm3136, %v3133, %v3135
  %v3165 = vmax.f32 %v3024, %v3137
  %v3166 = vmax.f32 %v3026, %v3138
  %v3167 = vmax.f32 %v3028, %v3139
  %v3168 = vmax.f32 %v3030, %v3140
  %v3169 = vmax.f32 %v3032, %v3141
  %v3170 = vmax.f32 %v3034, %v3142
  %v3171 = vmax.f32 %v3036, %v3143
  %v3172 = vmax.f32 %v3038, %v3144
  %v3173 = vmax.f32 %v3040, %v3145
  %v3174 = vmax.f32 %v3042, %v3146
  %v3175 = vmax.f32 %v3044, %v3147
  %v3176 = vmax.f32 %v3046, %v3148
  %v3177 = vmax.f32 %v3048, %v3149
  %v3178 = vmax.f32 %v3050, %v3150
  %v3193 = vrot.slane %v3165, 1
  %v3194 = vrot.slane %v3166, 1
  %v3195 = vsel %vm97, %v3193, %v3194
  %v3196 = vrot.slane %v3167, 1
  %v3197 = vsel %vm97, %v3194, %v3196
  %v3198 = vrot.slane %v3168, 1
  %v3199 = vsel %vm97, %v3196, %v3198
  %v3200 = vrot.slane %v3169, 1
  %v3201 = vsel %vm97, %v3198, %v3200
  %v3202 = vrot.slane %v3170, 1
  %v3203 = vsel %vm97, %v3200, %v3202
  %v3204 = vrot.slane %v3171, 1
  %v3205 = vsel %vm97, %v3202, %v3204
  %v3206 = vrot.slane %v3172, 1
  %v3207 = vsel %vm97, %v3204, %v3206
  %v3208 = vrot.slane %v3173, 1
  %v3209 = vsel %vm97, %v3206, %v3208
  %v3210 = vrot.slane %v3174, 1
  %v3211 = vsel %vm97, %v3208, %v3210
  %v3212 = vrot.slane %v3175, 1
  %v3213 = vsel %vm97, %v3210, %v3212
  %v3214 = vrot.slane %v3176, 1
  %v3215 = vsel %vm97, %v3212, %v3214
  %v3216 = vrot.slane %v3177, 1
  %v3217 = vsel %vm97, %v3214, %v3216
  %v3218 = vrot.slane %v3178, 1
  %v3219 = vsel %vm97, %v3216, %v3218
  %v3235 = vsel %vm97, %v3218, %v3193
  %v3236 = vmax.f32 %v3165, %v3195
  %v3237 = vmax.f32 %v3166, %v3197
  %v3238 = vmax.f32 %v3167, %v3199
  %v3239 = vmax.f32 %v3168, %v3201
  %v3240 = vmax.f32 %v3169, %v3203
  %v3241 = vmax.f32 %v3170, %v3205
  %v3242 = vmax.f32 %v3171, %v3207
  %v3243 = vmax.f32 %v3172, %v3209
  %v3244 = vmax.f32 %v3173, %v3211
  %v3245 = vmax.f32 %v3174, %v3213
  %v3246 = vmax.f32 %v3175, %v3215
  %v3247 = vmax.f32 %v3176, %v3217
  %v3248 = vmax.f32 %v3177, %v3219
  %v3249 = vmax.f32 %v3178, %v3235
  %v3250 = vld [vmem:[%s4] sm:$0x1]
  %v3252 = vlaneseq
  %v3253 = vshrl.u32 %v3252, 7
  %v3254 = vsub.s32 0, %v3253
  %v3255 = vrot.slane %v3250, %v3254
  %v3257 = vadd.f32 %v3236, %v3255
  %v3258 = vadd.f32 %v3237, %v3255
  %v3259 = vadd.f32 %v3238, %v3255
  %v3260 = vadd.f32 %v3239, %v3255
  %v3261 = vadd.f32 %v3240, %v3255
  %v3262 = vadd.f32 %v3241, %v3255
  %v3263 = vadd.f32 %v3242, %v3255
  %v3264 = vadd.f32 %v3243, %v3255
  %v3265 = vadd.f32 %v3244, %v3255
  %v3266 = vadd.f32 %v3245, %v3255
  %v3267 = vadd.f32 %v3246, %v3255
  %v3268 = vadd.f32 %v3247, %v3255
  %v3269 = vadd.f32 %v3248, %v3255
  %v3270 = vadd.f32 %v3249, %v3255
  %v3271 = vmax.f32 %v3257, 0.0
  %v3272 = vmax.f32 %v3258, 0.0
  %v3273 = vmax.f32 %v3259, 0.0
  %v3274 = vmax.f32 %v3260, 0.0
  %v3275 = vmax.f32 %v3261, 0.0
  %v3276 = vmax.f32 %v3262, 0.0
  %v3277 = vmax.f32 %v3263, 0.0
  %v3278 = vmax.f32 %v3264, 0.0
  %v3279 = vmax.f32 %v3265, 0.0
  %v3280 = vmax.f32 %v3266, 0.0
  %v3281 = vmax.f32 %v3267, 0.0
  %v3282 = vmax.f32 %v3268, 0.0
  %v3283 = vmax.f32 %v3269, 0.0
  %v3284 = vmax.f32 %v3270, 0.0
  %v3299 = vcombine.high %v3271, %v3271
  %v3301 = vunpack.c.l.s4 1983009808
  %v3302 = vunpack.c.0.s8 %v3301
  %v3303 = vlaneseq
  %v3304 = vshrl.u32 %v3303, 7
  %v3305 = vsub.s32 %v3302, %v3304
  %v3306 = vrot.slane %v3271, %v3305
  %v3308 = vunpack.c.l.s4 1983009808
  %v3309 = vunpack.c.0.s8 %v3308
  %v3310 = vlaneseq
  %v3311 = vshrl.u32 %v3310, 7
  %v3312 = vsub.s32 %v3309, %v3311
  %v3313 = vrot.slane %v3299, %v3312
  %v3314 = vcombine.high %v3306, %v3306
  %v3315 = vcombine.high %v3313, %v3313
  %v3316 = vcombine.high %v3272, %v3272
  %v3318 = vunpack.c.l.s4 1983009808
  %v3319 = vunpack.c.0.s8 %v3318
  %v3320 = vlaneseq
  %v3321 = vshrl.u32 %v3320, 7
  %v3322 = vsub.s32 %v3319, %v3321
  %v3323 = vrot.slane %v3316, %v3322
  %v3324 = vcombine.high %v3323, %v3323
  %v3325 = vcombine.high %v3273, %v3273
  %v3327 = vunpack.c.l.s4 1983009808
  %v3328 = vunpack.c.0.s8 %v3327
  %v3329 = vlaneseq
  %v3330 = vshrl.u32 %v3329, 7
  %v3331 = vsub.s32 %v3328, %v3330
  %v3332 = vrot.slane %v3273, %v3331
  %v3334 = vunpack.c.l.s4 1983009808
  %v3335 = vunpack.c.0.s8 %v3334
  %v3336 = vlaneseq
  %v3337 = vshrl.u32 %v3336, 7
  %v3338 = vsub.s32 %v3335, %v3337
  %v3339 = vrot.slane %v3325, %v3338
  %v3340 = vcombine.high %v3332, %v3332
  %v3341 = vcombine.high %v3274, %v3274
  %v3343 = vunpack.c.l.s4 1983009808
  %v3344 = vunpack.c.0.s8 %v3343
  %v3345 = vlaneseq
  %v3346 = vshrl.u32 %v3345, 7
  %v3347 = vsub.s32 %v3344, %v3346
  %v3348 = vrot.slane %v3341, %v3347
  %v3349 = vcombine.high %v3348, %v3348
  %v3351 = vunpack.c.l.s4 1983009808
  %v3352 = vunpack.c.0.s8 %v3351
  %v3353 = vlaneseq
  %v3354 = vshrl.u32 %v3353, 7
  %v3355 = vsub.s32 %v3352, %v3354
  %v3356 = vrot.slane %v3275, %v3355
  %v3357 = vcombine.high %v3356, %v3356
  %v3358 = vcombine.high %v3276, %v3276
  %v3360 = vunpack.c.l.s4 1983009808
  %v3361 = vunpack.c.0.s8 %v3360
  %v3362 = vlaneseq
  %v3363 = vshrl.u32 %v3362, 7
  %v3364 = vsub.s32 %v3361, %v3363
  %v3365 = vrot.slane %v3276, %v3364
  %v3367 = vunpack.c.l.s4 1983009808
  %v3368 = vunpack.c.0.s8 %v3367
  %v3369 = vlaneseq
  %v3370 = vshrl.u32 %v3369, 7
  %v3371 = vsub.s32 %v3368, %v3370
  %v3372 = vrot.slane %v3358, %v3371
  %v3373 = vcombine.high %v3365, %v3365
  %v3374 = vcombine.high %v3372, %v3372
  %v3376 = vunpack.c.l.s4 1983009808
  %v3377 = vunpack.c.0.s8 %v3376
  %v3378 = vlaneseq
  %v3379 = vshrl.u32 %v3378, 7
  %v3380 = vsub.s32 %v3377, %v3379
  %v3381 = vrot.slane %v3277, %v3380
  %v3382 = vcombine.high %v3278, %v3278
  %v3384 = vunpack.c.l.s4 1983009808
  %v3385 = vunpack.c.0.s8 %v3384
  %v3386 = vlaneseq
  %v3387 = vshrl.u32 %v3386, 7
  %v3388 = vsub.s32 %v3385, %v3387
  %v3389 = vrot.slane %v3278, %v3388
  %v3391 = vunpack.c.l.s4 1983009808
  %v3392 = vunpack.c.0.s8 %v3391
  %v3393 = vlaneseq
  %v3394 = vshrl.u32 %v3393, 7
  %v3395 = vsub.s32 %v3392, %v3394
  %v3396 = vrot.slane %v3382, %v3395
  %v3397 = vcombine.high %v3389, %v3389
  %v3398 = vcombine.high %v3396, %v3396
  %v3399 = vcombine.high %v3279, %v3279
  %v3401 = vunpack.c.l.s4 1983009808
  %v3402 = vunpack.c.0.s8 %v3401
  %v3403 = vlaneseq
  %v3404 = vshrl.u32 %v3403, 7
  %v3405 = vsub.s32 %v3402, %v3404
  %v3406 = vrot.slane %v3399, %v3405
  %v3407 = vcombine.high %v3406, %v3406
  %v3408 = vcombine.high %v3280, %v3280
  %v3410 = vunpack.c.l.s4 1983009808
  %v3411 = vunpack.c.0.s8 %v3410
  %v3412 = vlaneseq
  %v3413 = vshrl.u32 %v3412, 7
  %v3414 = vsub.s32 %v3411, %v3413
  %v3415 = vrot.slane %v3280, %v3414
  %v3417 = vunpack.c.l.s4 1983009808
  %v3418 = vunpack.c.0.s8 %v3417
  %v3419 = vlaneseq
  %v3420 = vshrl.u32 %v3419, 7
  %v3421 = vsub.s32 %v3418, %v3420
  %v3422 = vrot.slane %v3408, %v3421
  %v3423 = vcombine.high %v3415, %v3415
  %v3424 = vcombine.high %v3281, %v3281
  %v3426 = vunpack.c.l.s4 1983009808
  %v3427 = vunpack.c.0.s8 %v3426
  %v3428 = vlaneseq
  %v3429 = vshrl.u32 %v3428, 7
  %v3430 = vsub.s32 %v3427, %v3429
  %v3431 = vrot.slane %v3424, %v3430
  %v3432 = vcombine.high %v3431, %v3431
  %v3434 = vunpack.c.l.s4 1983009808
  %v3435 = vunpack.c.0.s8 %v3434
  %v3436 = vlaneseq
  %v3437 = vshrl.u32 %v3436, 7
  %v3438 = vsub.s32 %v3435, %v3437
  %v3439 = vrot.slane %v3282, %v3438
  %v3440 = vcombine.high %v3439, %v3439
  %v3441 = vcombine.high %v3283, %v3283
  %v3443 = vunpack.c.l.s4 1983009808
  %v3444 = vunpack.c.0.s8 %v3443
  %v3445 = vlaneseq
  %v3446 = vshrl.u32 %v3445, 7
  %v3447 = vsub.s32 %v3444, %v3446
  %v3448 = vrot.slane %v3283, %v3447
  %v3450 = vunpack.c.l.s4 1983009808
  %v3451 = vunpack.c.0.s8 %v3450
  %v3452 = vlaneseq
  %v3453 = vshrl.u32 %v3452, 7
  %v3454 = vsub.s32 %v3451, %v3453
  %v3455 = vrot.slane %v3441, %v3454
  %v3456 = vcombine.high %v3448, %v3448
  %v3457 = vcombine.high %v3455, %v3455
  %v3459 = vunpack.c.l.s4 1983009808
  %v3460 = vunpack.c.0.s8 %v3459
  %v3461 = vlaneseq
  %v3462 = vshrl.u32 %v3461, 7
  %v3463 = vsub.s32 %v3460, %v3462
  %v3464 = vrot.slane %v3284, %v3463
  %v3465 = vld [vmem:[%s5] sm:$0xff]
  %v3466 = vld [vmem:[%s5 + $0x8] sm:$0xff]
  %v3467 = vld [vmem:[%s5 + $0x10] sm:$0xff]
  %v3468 = vld [vmem:[%s5 + $0x18] sm:$0xff]
  %v3469 = vld [vmem:[%s5 + $0x20] sm:$0xff]
  %v3470 = vld [vmem:[%s5 + $0x28] sm:$0xff]
  %v3471 = vld [vmem:[%s5 + $0x30] sm:$0xff]
  %v3472 = vld [vmem:[%s5 + $0x38] sm:$0xff]
  %v3473 = vld [vmem:[%s5 + $0x40] sm:$0xff]
  %v3474 = vld [vmem:[%s5 + $0x48] sm:$0xff]
  %s3475 = scalar_lea.vmem %s5, 80
  %v3476 = vld [vmem:[%s3475] sm:$0xff]
  %v3477 = vld [vmem:[%s3475 + $0x8] sm:$0xff]
  %v3478 = vld [vmem:[%s3475 + $0x10] sm:$0xff]
  %v3479 = vld [vmem:[%s3475 + $0x18] sm:$0xff]
  %v3480 = vld [vmem:[%s3475 + $0x20] sm:$0xff]
  %v3481 = vld [vmem:[%s3475 + $0x28] sm:$0xff]
  %v3482 = vld [vmem:[%s3475 + $0x30] sm:$0xff]
  %v3483 = vld [vmem:[%s3475 + $0x38] sm:$0xff]
  %v3484 = vld [vmem:[%s3475 + $0x40] sm:$0xff]
  %v3485 = vld [vmem:[%s3475 + $0x48] sm:$0xff]
  %v3486 = vlaneseq
  %v3487 = vshrl.u32 %v3486, 7
  %v3488 = vsub.s32 0, %v3487
  %v3489 = vrot.slane %v3314, %v3488
  %v3490 = vlaneseq
  %v3491 = vshrl.u32 %v3490, 7
  %v3492 = vsub.s32 0, %v3491
  %v3493 = vrot.slane %v3332, %v3492
  %v3494 = vlaneseq
  %v3495 = vshrl.u32 %v3494, 7
  %v3496 = vsub.s32 0, %v3495
  %v3497 = vrot.slane %v3349, %v3496
  %v3498 = vlaneseq
  %v3499 = vshrl.u32 %v3498, 7
  %v3500 = vsub.s32 0, %v3499
  %v3501 = vrot.slane %v3372, %v3500
  %v3502 = vlaneseq
  %v3503 = vshrl.u32 %v3502, 7
  %v3504 = vsub.s32 0, %v3503
  %v3505 = vrot.slane %v3397, %v3504
  %v3506 = vlaneseq
  %v3507 = vshrl.u32 %v3506, 7
  %v3508 = vsub.s32 0, %v3507
  %v3509 = vrot.slane %v3415, %v3508
  %v3510 = vlaneseq
  %v3511 = vshrl.u32 %v3510, 7
  %v3512 = vsub.s32 0, %v3511
  %v3513 = vrot.slane %v3432, %v3512
  %v3514 = vlaneseq
  %v3515 = vshrl.u32 %v3514, 7
  %v3516 = vsub.s32 0, %v3515
  %v3517 = vrot.slane %v3455, %v3516
  %vm3518 = vcmask 1041409
  %v3519 = vsel %vm3518, %v3493, %v3489
  %vm3520 = vcmask 1042434
  %v3521 = vsel %vm3520, %v3497, %v3519
  %vm3522 = vcmask 1043459
  %v3523 = vsel %vm3522, %v3501, %v3521
  %vm3524 = vcmask 1044484
  %v3525 = vsel %vm3524, %v3505, %v3523
  %vm3526 = vcmask 1045509
  %v3527 = vsel %vm3526, %v3509, %v3525
  %vm3528 = vcmask 1046534
  %v3529 = vsel %vm3528, %v3513, %v3527
  %vm3530 = vcmask 1047559
  %v3531 = vsel %vm3530, %v3517, %v3529
  %vm3532 = vcmask 654336
  %v3533 = vsel %vm3532, %v3531, 0
  %3535 = vmatprep.subr.mxu0 0.0
  %3536 = vmatpush1.msra.mxu0 %v3476
  %3537 = vmatprep.subr.mxu0 0.0
  %3538 = vmatpush1.msra.mxu0 %v3477
  %3539 = vmatprep.subr.mxu0 0.0
  %3540 = vmatpush1.msra.mxu0 %v3478
  %3541 = vmatprep.subr.mxu0 0.0
  %3542 = vmatpush1.msra.mxu0 %v3479
  %3543 = vmatprep.subr.mxu0 0.0
  %3544 = vmatpush1.msra.mxu0 %v3480
  %3545 = vmatprep.subr.mxu0 0.0
  %3546 = vmatpush1.msra.mxu0 %v3481
  %3547 = vmatprep.subr.mxu0 0.0
  %3548 = vmatpush1.msra.mxu0 %v3482
  %3549 = vmatprep.subr.mxu0 0.0
  %3550 = vmatpush1.msra.mxu0 %v3483
  %3551 = vmatprep.subr.mxu0 0.0
  %3552 = vmatpush1.msra.mxu0 %v3484
  %3553 = vmatprep.subr.mxu0 0.0
  %3554 = vmatpush1.msra.mxu0 %v3485
  %3555 = vmatprep.subr.mxu0 0.0
  %3556 = vmatpush1.msra.mxu0 0.0
  %3557 = vmatprep.subr.mxu0 0.0
  %3558 = vmatpush1.msra.mxu0 0.0
  %3559 = vmatprep.subr.mxu0 0.0
  %3560 = vmatpush1.msra.mxu0 0.0
  %3561 = vmatprep.subr.mxu0 0.0
  %3562 = vmatpush1.msra.mxu0 0.0
  %3563 = vmatprep.subr.mxu0 0.0
  %3564 = vmatpush1.msra.mxu0 0.0
  %3565 = vmatprep.subr.mxu0 0.0
  %3566 = vmatpush1.msra.mxu0 0.0
  %3567 = vmatprep.subr.mxu0 0.0
  %3568 = vmatpush1.msra.mxu0 0.0
  %3569 = vmatprep.subr.mxu0 0.0
  %3570 = vmatpush1.msra.mxu0 0.0
  %3571 = vmatprep.subr.mxu0 0.0
  %3572 = vmatpush1.msra.mxu0 0.0
  %3573 = vmatprep.subr.mxu0 0.0
  %3574 = vmatpush1.msra.mxu0 0.0
  %3575 = vmatprep.subr.mxu0 0.0
  %3576 = vmatpush1.msra.mxu0 0.0
  %3577 = vmatprep.subr.mxu0 0.0
  %3578 = vmatpush1.msra.mxu0 0.0
  %3579 = vmatprep.subr.mxu0 0.0
  %3580 = vmatpush1.msra.mxu0 0.0
  %3581 = vmatprep.subr.mxu0 0.0
  %3582 = vmatpush1.msra.mxu0 0.0
  %3583 = vmatprep.subr.mxu0 0.0
  %3584 = vmatpush1.msra.mxu0 0.0
  %3585 = vmatprep.subr.mxu0 0.0
  %3586 = vmatpush1.msra.mxu0 0.0
  %3587 = vmatprep.subr.mxu0 0.0
  %3588 = vmatpush1.msra.mxu0 0.0
  %3589 = vmatprep.subr.mxu0 0.0
  %3590 = vmatpush1.msra.mxu0 0.0
  %3591 = vmatprep.subr.mxu0 0.0
  %3592 = vmatpush1.msra.mxu0 0.0
  %3593 = vmatprep.subr.mxu0 0.0
  %3594 = vmatpush1.msra.mxu0 0.0
  %3595 = vmatprep.subr.mxu0 0.0
  %3596 = vmatpush1.msra.mxu0 0.0
  %3597 = vmatprep.subr.mxu0 0.0
  %3598 = vmatpush1.msra.mxu0 0.0
  %3599 = vmatprep.mubr.f32.mxu0 0.0
  %3600 = vmatmul.mubr.f32.gmra.mrb[0].mxu0 %v3533
  %v3601 = vpop.f32.mrb[0].mxu0
  %v3602 = vadd.f32 0.0, %v3601
  %v3603 = vpop.f32.mrb[0].mxu0
  %3604 = vdwg.mxu0
  %v3605 = vlaneseq
  %v3606 = vshrl.u32 %v3605, 7
  %v3607 = vsub.s32 0, %v3606
  %v3608 = vrot.slane %v3306, %v3607
  %v3609 = vlaneseq
  %v3610 = vshrl.u32 %v3609, 7
  %v3611 = vsub.s32 0, %v3610
  %v3612 = vrot.slane %v3324, %v3611
  %v3613 = vlaneseq
  %v3614 = vshrl.u32 %v3613, 7
  %v3615 = vsub.s32 0, %v3614
  %v3616 = vrot.slane %v3348, %v3615
  %v3617 = vlaneseq
  %v3618 = vshrl.u32 %v3617, 7
  %v3619 = vsub.s32 0, %v3618
  %v3620 = vrot.slane %v3373, %v3619
  %v3621 = vlaneseq
  %v3622 = vshrl.u32 %v3621, 7
  %v3623 = vsub.s32 0, %v3622
  %v3624 = vrot.slane %v3389, %v3623
  %v3625 = vlaneseq
  %v3626 = vshrl.u32 %v3625, 7
  %v3627 = vsub.s32 0, %v3626
  %v3628 = vrot.slane %v3407, %v3627
  %v3629 = vlaneseq
  %v3630 = vshrl.u32 %v3629, 7
  %v3631 = vsub.s32 0, %v3630
  %v3632 = vrot.slane %v3431, %v3631
  %v3633 = vlaneseq
  %v3634 = vshrl.u32 %v3633, 7
  %v3635 = vsub.s32 0, %v3634
  %v3636 = vrot.slane %v3456, %v3635
  %v3637 = vsel %vm3518, %v3612, %v3608
  %v3638 = vsel %vm3520, %v3616, %v3637
  %v3639 = vsel %vm3522, %v3620, %v3638
  %v3640 = vsel %vm3524, %v3624, %v3639
  %v3641 = vsel %vm3526, %v3628, %v3640
  %v3642 = vsel %vm3528, %v3632, %v3641
  %v3643 = vsel %vm3530, %v3636, %v3642
  %v3644 = vsel %vm3532, %v3643, 0
  %3646 = vmatprep.subr.mxu0 0.0
  %3647 = vmatpush1.msra.mxu0 %v3465
  %3648 = vmatprep.subr.mxu0 0.0
  %3649 = vmatpush1.msra.mxu0 %v3466
  %3650 = vmatprep.subr.mxu0 0.0
  %3651 = vmatpush1.msra.mxu0 %v3467
  %3652 = vmatprep.subr.mxu0 0.0
  %3653 = vmatpush1.msra.mxu0 %v3468
  %3654 = vmatprep.subr.mxu0 0.0
  %3655 = vmatpush1.msra.mxu0 %v3469
  %3656 = vmatprep.subr.mxu0 0.0
  %3657 = vmatpush1.msra.mxu0 %v3470
  %3658 = vmatprep.subr.mxu0 0.0
  %3659 = vmatpush1.msra.mxu0 %v3471
  %3660 = vmatprep.subr.mxu0 0.0
  %3661 = vmatpush1.msra.mxu0 %v3472
  %3662 = vmatprep.subr.mxu0 0.0
  %3663 = vmatpush1.msra.mxu0 %v3473
  %3664 = vmatprep.subr.mxu0 0.0
  %3665 = vmatpush1.msra.mxu0 %v3474
  %3666 = vmatprep.subr.mxu0 0.0
  %3667 = vmatpush1.msra.mxu0 0.0
  %3668 = vmatprep.subr.mxu0 0.0
  %3669 = vmatpush1.msra.mxu0 0.0
  %3670 = vmatprep.subr.mxu0 0.0
  %3671 = vmatpush1.msra.mxu0 0.0
  %3672 = vmatprep.subr.mxu0 0.0
  %3673 = vmatpush1.msra.mxu0 0.0
  %3674 = vmatprep.subr.mxu0 0.0
  %3675 = vmatpush1.msra.mxu0 0.0
  %3676 = vmatprep.subr.mxu0 0.0
  %3677 = vmatpush1.msra.mxu0 0.0
  %3678 = vmatprep.subr.mxu0 0.0
  %3679 = vmatpush1.msra.mxu0 0.0
  %3680 = vmatprep.subr.mxu0 0.0
  %3681 = vmatpush1.msra.mxu0 0.0
  %3682 = vmatprep.subr.mxu0 0.0
  %3683 = vmatpush1.msra.mxu0 0.0
  %3684 = vmatprep.subr.mxu0 0.0
  %3685 = vmatpush1.msra.mxu0 0.0
  %3686 = vmatprep.subr.mxu0 0.0
  %3687 = vmatpush1.msra.mxu0 0.0
  %3688 = vmatprep.subr.mxu0 0.0
  %3689 = vmatpush1.msra.mxu0 0.0
  %3690 = vmatprep.subr.mxu0 0.0
  %3691 = vmatpush1.msra.mxu0 0.0
  %3692 = vmatprep.subr.mxu0 0.0
  %3693 = vmatpush1.msra.mxu0 0.0
  %3694 = vmatprep.subr.mxu0 0.0
  %3695 = vmatpush1.msra.mxu0 0.0
  %3696 = vmatprep.subr.mxu0 0.0
  %3697 = vmatpush1.msra.mxu0 0.0
  %3698 = vmatprep.subr.mxu0 0.0
  %3699 = vmatpush1.msra.mxu0 0.0
  %3700 = vmatprep.subr.mxu0 0.0
  %3701 = vmatpush1.msra.mxu0 0.0
  %3702 = vmatprep.subr.mxu0 0.0
  %3703 = vmatpush1.msra.mxu0 0.0
  %3704 = vmatprep.subr.mxu0 0.0
  %3705 = vmatpush1.msra.mxu0 0.0
  %3706 = vmatprep.subr.mxu0 0.0
  %3707 = vmatpush1.msra.mxu0 0.0
  %3708 = vmatprep.subr.mxu0 0.0
  %3709 = vmatpush1.msra.mxu0 0.0
  %3710 = vmatprep.mubr.f32.mxu0 0.0
  %3711 = vmatmul.mubr.f32.gmra.mrb[0].mxu0 %v3644
  %v3712 = vpop.f32.mrb[0].mxu0
  %v3713 = vadd.f32 %v3602, %v3712
  %v3714 = vpop.f32.mrb[0].mxu0
  %3715 = vdwg.mxu0
  %s3716 = scalar_lea.vmem %s5, 160
  %v3717 = vld [vmem:[%s3716] sm:$0xff]
  %v3718 = vld [vmem:[%s3716 + $0x8] sm:$0xff]
  %v3719 = vld [vmem:[%s3716 + $0x10] sm:$0xff]
  %v3720 = vld [vmem:[%s3716 + $0x18] sm:$0xff]
  %v3721 = vld [vmem:[%s3716 + $0x20] sm:$0xff]
  %v3722 = vld [vmem:[%s3716 + $0x28] sm:$0xff]
  %v3723 = vld [vmem:[%s3716 + $0x30] sm:$0xff]
  %v3724 = vld [vmem:[%s3716 + $0x38] sm:$0xff]
  %v3725 = vld [vmem:[%s3716 + $0x40] sm:$0xff]
  %v3726 = vld [vmem:[%s3716 + $0x48] sm:$0xff]
  %v3727 = vlaneseq
  %v3728 = vshrl.u32 %v3727, 7
  %v3729 = vsub.s32 0, %v3728
  %v3730 = vrot.slane %v3313, %v3729
  %v3731 = vlaneseq
  %v3732 = vshrl.u32 %v3731, 7
  %v3733 = vsub.s32 0, %v3732
  %v3734 = vrot.slane %v3340, %v3733
  %v3735 = vlaneseq
  %v3736 = vshrl.u32 %v3735, 7
  %v3737 = vsub.s32 0, %v3736
  %v3738 = vrot.slane %v3356, %v3737
  %v3739 = vlaneseq
  %v3740 = vshrl.u32 %v3739, 7
  %v3741 = vsub.s32 0, %v3740
  %v3742 = vrot.slane %v3374, %v3741
  %v3743 = vlaneseq
  %v3744 = vshrl.u32 %v3743, 7
  %v3745 = vsub.s32 0, %v3744
  %v3746 = vrot.slane %v3396, %v3745
  %v3747 = vlaneseq
  %v3748 = vshrl.u32 %v3747, 7
  %v3749 = vsub.s32 0, %v3748
  %v3750 = vrot.slane %v3423, %v3749
  %v3751 = vlaneseq
  %v3752 = vshrl.u32 %v3751, 7
  %v3753 = vsub.s32 0, %v3752
  %v3754 = vrot.slane %v3439, %v3753
  %v3755 = vlaneseq
  %v3756 = vshrl.u32 %v3755, 7
  %v3757 = vsub.s32 0, %v3756
  %v3758 = vrot.slane %v3457, %v3757
  %v3759 = vsel %vm3518, %v3734, %v3730
  %v3760 = vsel %vm3520, %v3738, %v3759
  %v3761 = vsel %vm3522, %v3742, %v3760
  %v3762 = vsel %vm3524, %v3746, %v3761
  %v3763 = vsel %vm3526, %v3750, %v3762
  %v3764 = vsel %vm3528, %v3754, %v3763
  %v3765 = vsel %vm3530, %v3758, %v3764
  %v3766 = vsel %vm3532, %v3765, 0
  %3768 = vmatprep.subr.mxu0 0.0
  %3769 = vmatpush1.msra.mxu0 %v3717
  %3770 = vmatprep.subr.mxu0 0.0
  %3771 = vmatpush1.msra.mxu0 %v3718
  %3772 = vmatprep.subr.mxu0 0.0
  %3773 = vmatpush1.msra.mxu0 %v3719
  %3774 = vmatprep.subr.mxu0 0.0
  %3775 = vmatpush1.msra.mxu0 %v3720
  %3776 = vmatprep.subr.mxu0 0.0
  %3777 = vmatpush1.msra.mxu0 %v3721
  %3778 = vmatprep.subr.mxu0 0.0
  %3779 = vmatpush1.msra.mxu0 %v3722
  %3780 = vmatprep.subr.mxu0 0.0
  %3781 = vmatpush1.msra.mxu0 %v3723
  %3782 = vmatprep.subr.mxu0 0.0
  %3783 = vmatpush1.msra.mxu0 %v3724
  %3784 = vmatprep.subr.mxu0 0.0
  %3785 = vmatpush1.msra.mxu0 %v3725
  %3786 = vmatprep.subr.mxu0 0.0
  %3787 = vmatpush1.msra.mxu0 %v3726
  %3788 = vmatprep.subr.mxu0 0.0
  %3789 = vmatpush1.msra.mxu0 0.0
  %3790 = vmatprep.subr.mxu0 0.0
  %3791 = vmatpush1.msra.mxu0 0.0
  %3792 = vmatprep.subr.mxu0 0.0
  %3793 = vmatpush1.msra.mxu0 0.0
  %3794 = vmatprep.subr.mxu0 0.0
  %3795 = vmatpush1.msra.mxu0 0.0
  %3796 = vmatprep.subr.mxu0 0.0
  %3797 = vmatpush1.msra.mxu0 0.0
  %3798 = vmatprep.subr.mxu0 0.0
  %3799 = vmatpush1.msra.mxu0 0.0
  %3800 = vmatprep.subr.mxu0 0.0
  %3801 = vmatpush1.msra.mxu0 0.0
  %3802 = vmatprep.subr.mxu0 0.0
  %3803 = vmatpush1.msra.mxu0 0.0
  %3804 = vmatprep.subr.mxu0 0.0
  %3805 = vmatpush1.msra.mxu0 0.0
  %3806 = vmatprep.subr.mxu0 0.0
  %3807 = vmatpush1.msra.mxu0 0.0
  %3808 = vmatprep.subr.mxu0 0.0
  %3809 = vmatpush1.msra.mxu0 0.0
  %3810 = vmatprep.subr.mxu0 0.0
  %3811 = vmatpush1.msra.mxu0 0.0
  %3812 = vmatprep.subr.mxu0 0.0
  %3813 = vmatpush1.msra.mxu0 0.0
  %3814 = vmatprep.subr.mxu0 0.0
  %3815 = vmatpush1.msra.mxu0 0.0
  %3816 = vmatprep.subr.mxu0 0.0
  %3817 = vmatpush1.msra.mxu0 0.0
  %3818 = vmatprep.subr.mxu0 0.0
  %3819 = vmatpush1.msra.mxu0 0.0
  %3820 = vmatprep.subr.mxu0 0.0
  %3821 = vmatpush1.msra.mxu0 0.0
  %3822 = vmatprep.subr.mxu0 0.0
  %3823 = vmatpush1.msra.mxu0 0.0
  %3824 = vmatprep.subr.mxu0 0.0
  %3825 = vmatpush1.msra.mxu0 0.0
  %3826 = vmatprep.subr.mxu0 0.0
  %3827 = vmatpush1.msra.mxu0 0.0
  %3828 = vmatprep.subr.mxu0 0.0
  %3829 = vmatpush1.msra.mxu0 0.0
  %3830 = vmatprep.subr.mxu0 0.0
  %3831 = vmatpush1.msra.mxu0 0.0
  %3832 = vmatprep.mubr.f32.mxu0 0.0
  %3833 = vmatmul.mubr.f32.gmra.mrb[0].mxu0 %v3766
  %v3834 = vpop.f32.mrb[0].mxu0
  %v3835 = vadd.f32 0.0, %v3834
  %v3836 = vpop.f32.mrb[0].mxu0
  %3837 = vdwg.mxu0
  %v3838 = vadd.f32 %v3713, %v3835
  %s3839 = scalar_lea.vmem %s5, 240
  %v3840 = vld [vmem:[%s3839] sm:$0xff]
  %v3841 = vld [vmem:[%s3839 + $0x8] sm:$0xff]
  %v3842 = vld [vmem:[%s3839 + $0x10] sm:$0xff]
  %v3843 = vld [vmem:[%s3839 + $0x18] sm:$0xff]
  %v3844 = vld [vmem:[%s3839 + $0x20] sm:$0xff]
  %v3845 = vld [vmem:[%s3839 + $0x28] sm:$0xff]
  %v3846 = vld [vmem:[%s3839 + $0x30] sm:$0xff]
  %v3847 = vld [vmem:[%s3839 + $0x38] sm:$0xff]
  %v3848 = vld [vmem:[%s3839 + $0x40] sm:$0xff]
  %v3849 = vld [vmem:[%s3839 + $0x48] sm:$0xff]
  %v3850 = vlaneseq
  %v3851 = vshrl.u32 %v3850, 7
  %v3852 = vsub.s32 0, %v3851
  %v3853 = vrot.slane %v3315, %v3852
  %v3854 = vlaneseq
  %v3855 = vshrl.u32 %v3854, 7
  %v3856 = vsub.s32 0, %v3855
  %v3857 = vrot.slane %v3339, %v3856
  %v3858 = vlaneseq
  %v3859 = vshrl.u32 %v3858, 7
  %v3860 = vsub.s32 0, %v3859
  %v3861 = vrot.slane %v3357, %v3860
  %v3862 = vlaneseq
  %v3863 = vshrl.u32 %v3862, 7
  %v3864 = vsub.s32 0, %v3863
  %v3865 = vrot.slane %v3381, %v3864
  %v3866 = vlaneseq
  %v3867 = vshrl.u32 %v3866, 7
  %v3868 = vsub.s32 0, %v3867
  %v3869 = vrot.slane %v3398, %v3868
  %v3870 = vlaneseq
  %v3871 = vshrl.u32 %v3870, 7
  %v3872 = vsub.s32 0, %v3871
  %v3873 = vrot.slane %v3422, %v3872
  %v3874 = vlaneseq
  %v3875 = vshrl.u32 %v3874, 7
  %v3876 = vsub.s32 0, %v3875
  %v3877 = vrot.slane %v3440, %v3876
  %v3878 = vlaneseq
  %v3879 = vshrl.u32 %v3878, 7
  %v3880 = vsub.s32 0, %v3879
  %v3881 = vrot.slane %v3464, %v3880
  %v3882 = vsel %vm3518, %v3857, %v3853
  %v3883 = vsel %vm3520, %v3861, %v3882
  %v3884 = vsel %vm3522, %v3865, %v3883
  %v3885 = vsel %vm3524, %v3869, %v3884
  %v3886 = vsel %vm3526, %v3873, %v3885
  %v3887 = vsel %vm3528, %v3877, %v3886
  %v3888 = vsel %vm3530, %v3881, %v3887
  %v3889 = vsel %vm3532, %v3888, 0
  %3891 = vmatprep.subr.mxu0 0.0
  %3892 = vmatpush1.msra.mxu0 %v3840
  %3893 = vmatprep.subr.mxu0 0.0
  %3894 = vmatpush1.msra.mxu0 %v3841
  %3895 = vmatprep.subr.mxu0 0.0
  %3896 = vmatpush1.msra.mxu0 %v3842
  %3897 = vmatprep.subr.mxu0 0.0
  %3898 = vmatpush1.msra.mxu0 %v3843
  %3899 = vmatprep.subr.mxu0 0.0
  %3900 = vmatpush1.msra.mxu0 %v3844
  %3901 = vmatprep.subr.mxu0 0.0
  %3902 = vmatpush1.msra.mxu0 %v3845
  %3903 = vmatprep.subr.mxu0 0.0
  %3904 = vmatpush1.msra.mxu0 %v3846
  %3905 = vmatprep.subr.mxu0 0.0
  %3906 = vmatpush1.msra.mxu0 %v3847
  %3907 = vmatprep.subr.mxu0 0.0
  %3908 = vmatpush1.msra.mxu0 %v3848
  %3909 = vmatprep.subr.mxu0 0.0
  %3910 = vmatpush1.msra.mxu0 %v3849
  %3911 = vmatprep.subr.mxu0 0.0
  %3912 = vmatpush1.msra.mxu0 0.0
  %3913 = vmatprep.subr.mxu0 0.0
  %3914 = vmatpush1.msra.mxu0 0.0
  %3915 = vmatprep.subr.mxu0 0.0
  %3916 = vmatpush1.msra.mxu0 0.0
  %3917 = vmatprep.subr.mxu0 0.0
  %3918 = vmatpush1.msra.mxu0 0.0
  %3919 = vmatprep.subr.mxu0 0.0
  %3920 = vmatpush1.msra.mxu0 0.0
  %3921 = vmatprep.subr.mxu0 0.0
  %3922 = vmatpush1.msra.mxu0 0.0
  %3923 = vmatprep.subr.mxu0 0.0
  %3924 = vmatpush1.msra.mxu0 0.0
  %3925 = vmatprep.subr.mxu0 0.0
  %3926 = vmatpush1.msra.mxu0 0.0
  %3927 = vmatprep.subr.mxu0 0.0
  %3928 = vmatpush1.msra.mxu0 0.0
  %3929 = vmatprep.subr.mxu0 0.0
  %3930 = vmatpush1.msra.mxu0 0.0
  %3931 = vmatprep.subr.mxu0 0.0
  %3932 = vmatpush1.msra.mxu0 0.0
  %3933 = vmatprep.subr.mxu0 0.0
  %3934 = vmatpush1.msra.mxu0 0.0
  %3935 = vmatprep.subr.mxu0 0.0
  %3936 = vmatpush1.msra.mxu0 0.0
  %3937 = vmatprep.subr.mxu0 0.0
  %3938 = vmatpush1.msra.mxu0 0.0
  %3939 = vmatprep.subr.mxu0 0.0
  %3940 = vmatpush1.msra.mxu0 0.0
  %3941 = vmatprep.subr.mxu0 0.0
  %3942 = vmatpush1.msra.mxu0 0.0
  %3943 = vmatprep.subr.mxu0 0.0
  %3944 = vmatpush1.msra.mxu0 0.0
  %3945 = vmatprep.subr.mxu0 0.0
  %3946 = vmatpush1.msra.mxu0 0.0
  %3947 = vmatprep.subr.mxu0 0.0
  %3948 = vmatpush1.msra.mxu0 0.0
  %3949 = vmatprep.subr.mxu0 0.0
  %3950 = vmatpush1.msra.mxu0 0.0
  %3951 = vmatprep.subr.mxu0 0.0
  %3952 = vmatpush1.msra.mxu0 0.0
  %3953 = vmatprep.subr.mxu0 0.0
  %3954 = vmatpush1.msra.mxu0 0.0
  %3955 = vmatprep.mubr.f32.mxu0 0.0
  %3956 = vmatmul.mubr.f32.gmra.mrb[0].mxu0 %v3889
  %v3957 = vpop.f32.mrb[0].mxu0
  %v3958 = vadd.f32 0.0, %v3957
  %v3959 = vpop.f32.mrb[0].mxu0
  %3960 = vdwg.mxu0
  %v3961 = vadd.f32 %v3838, %v3958
  %v3962 = vld [vmem:[%s6] sm:$0x1]
  %v3964 = vlaneseq
  %v3965 = vshrl.u32 %v3964, 7
  %v3966 = vsub.s32 0, %v3965
  %v3967 = vrot.slane %v3962, %v3966
  %v3969 = vadd.f32 %v3961, %v3967
  %v3970 = vmax.f32 %v3969, 0.0
  %vm3971 = vcmask 408576
  %3972 = vst.msk [vmem:[%s9] sm:$0xff] %vm3971, %v3970
  %v3973 = vld [vmem:[%s7] sm:$0xff]
  %v3974 = vld [vmem:[%s7 + $0x8] sm:$0xff]
  %v3975 = vld [vmem:[%s7 + $0x10] sm:$0xff]
  %v3976 = vld [vmem:[%s7 + $0x18] sm:$0xff]
  %v3977 = vld [vmem:[%s7 + $0x20] sm:$0xff]
  %v3978 = vld [vmem:[%s7 + $0x28] sm:$0xff]
  %v3979 = vld [vmem:[%s7 + $0x30] sm:$0x3]
  %v3980 = vld [vmem:[%s8] sm:$0x1]
  %v3982 = vlaneseq
  %v3983 = vshrl.u32 %v3982, 7
  %v3984 = vsub.s32 0, %v3983
  %v3985 = vrot.slane %v3980, %v3984
  %v3988 = vsel %vm3971, %v3970, 0
  %v3991 = vsel %vm1750, %v3979, 0
  %3993 = vmatprep.subr.mxu0 0.0
  %3994 = vmatpush1.msra.mxu0 %v3973
  %3995 = vmatprep.subr.mxu0 0.0
  %3996 = vmatpush1.msra.mxu0 %v3974
  %3997 = vmatprep.subr.mxu0 0.0
  %3998 = vmatpush1.msra.mxu0 %v3975
  %3999 = vmatprep.subr.mxu0 0.0
  %4000 = vmatpush1.msra.mxu0 %v3976
  %4001 = vmatprep.subr.mxu0 0.0
  %4002 = vmatpush1.msra.mxu0 %v3977
  %4003 = vmatprep.subr.mxu0 0.0
  %4004 = vmatpush1.msra.mxu0 %v3978
  %4005 = vmatprep.subr.mxu0 0.0
  %4006 = vmatpush1.msra.mxu0 %v3991
  %4007 = vmatprep.subr.mxu0 0.0
  %4008 = vmatpush1.msra.mxu0 0.0
  %4009 = vmatprep.subr.mxu0 0.0
  %4010 = vmatpush1.msra.mxu0 0.0
  %4011 = vmatprep.subr.mxu0 0.0
  %4012 = vmatpush1.msra.mxu0 0.0
  %4013 = vmatprep.subr.mxu0 0.0
  %4014 = vmatpush1.msra.mxu0 0.0
  %4015 = vmatprep.subr.mxu0 0.0
  %4016 = vmatpush1.msra.mxu0 0.0
  %4017 = vmatprep.subr.mxu0 0.0
  %4018 = vmatpush1.msra.mxu0 0.0
  %4019 = vmatprep.subr.mxu0 0.0
  %4020 = vmatpush1.msra.mxu0 0.0
  %4021 = vmatprep.subr.mxu0 0.0
  %4022 = vmatpush1.msra.mxu0 0.0
  %4023 = vmatprep.subr.mxu0 0.0
  %4024 = vmatpush1.msra.mxu0 0.0
  %4025 = vmatprep.subr.mxu0 0.0
  %4026 = vmatpush1.msra.mxu0 0.0
  %4027 = vmatprep.subr.mxu0 0.0
  %4028 = vmatpush1.msra.mxu0 0.0
  %4029 = vmatprep.subr.mxu0 0.0
  %4030 = vmatpush1.msra.mxu0 0.0
  %4031 = vmatprep.subr.mxu0 0.0
  %4032 = vmatpush1.msra.mxu0 0.0
  %4033 = vmatprep.subr.mxu0 0.0
  %4034 = vmatpush1.msra.mxu0 0.0
  %4035 = vmatprep.subr.mxu0 0.0
  %4036 = vmatpush1.msra.mxu0 0.0
  %4037 = vmatprep.subr.mxu0 0.0
  %4038 = vmatpush1.msra.mxu0 0.0
  %4039 = vmatprep.subr.mxu0 0.0
  %4040 = vmatpush1.msra.mxu0 0.0
  %4041 = vmatprep.subr.mxu0 0.0
  %4042 = vmatpush1.msra.mxu0 0.0
  %4043 = vmatprep.subr.mxu0 0.0
  %4044 = vmatpush1.msra.mxu0 0.0
  %4045 = vmatprep.subr.mxu0 0.0
  %4046 = vmatpush1.msra.mxu0 0.0
  %4047 = vmatprep.subr.mxu0 0.0
  %4048 = vmatpush1.msra.mxu0 0.0
  %4049 = vmatprep.subr.mxu0 0.0
  %4050 = vmatpush1.msra.mxu0 0.0
  %4051 = vmatprep.subr.mxu0 0.0
  %4052 = vmatpush1.msra.mxu0 0.0
  %4053 = vmatprep.subr.mxu0 0.0
  %4054 = vmatpush1.msra.mxu0 0.0
  %4055 = vmatprep.subr.mxu0 0.0
  %4056 = vmatpush1.msra.mxu0 0.0
  %4057 = vmatprep.mubr.f32.mxu0 0.0
  %4058 = vmatmul.mubr.f32.gmra.mrb[0].mxu0 %v3988
  %v4059 = vpop.f32.mrb[0].mxu0
  %v4060 = vadd.f32 %v3985, %v4059
  %v4061 = vpop.f32.mrb[0].mxu0
  %4062 = vdwg.mxu0
  %vm4063 = vcmask 506880
  %v4064 = vsel %vm4063, %v4060, -inf
  %4065 = vmax.xlane.f32.xlu0 %v4064
  %v4066 = vpop.xlane.xlu0 %4065
  %v4067 = vsub.f32 %v4060, %v4066
  %v4068 = vmul.f32 %v4067, 1.442695
  %v4069 = vpow.pop %v4068
  %v4070 = vsel %vm4063, %v4069, 0.0
  %4071 = vadd.xlane.f32.xlu0 %v4070
  %v4072 = vpop.xlane.xlu0 %4071
  %v4073 = vlog2.pop %v4072
  %v4074 = vmul.f32 %v4073, 0.6931472
  %v4075 = vadd.f32 %v4066, %v4074
  %v4076 = vsub.f32 %v4060, %v4075
  %4077 = vst.msk [vmem:[%s10] sm:$0xff] %vm4063, %v4076
  // Predicated region
  $region38: #{cnn_femnist_forward.1} parent=0 // pred_check
    _
  $region39: #{cnn_femnist_forward.1} parent=0 // pred_check_branch
    %4079 = sbr.rel (0) target = $region41
  $region40: #{cnn_femnist_forward.1} parent=0 // pred_region
    _
  $region41: #{cnn_femnist_forward.1} parent=0 // pred_fallthru
    _
  // Predicated region
  $region42: #{cnn_femnist_forward.1} parent=0 // pred_check
    _
  $region43: #{cnn_femnist_forward.1} parent=0 // pred_check_branch
    %4081 = sbr.rel (0) target = $region45
  $region44: #{cnn_femnist_forward.1} parent=0 // pred_region
    _
  $region45: #{cnn_femnist_forward.1} parent=0 // pred_fallthru
    _
  // Predicated region
  $region46: #{cnn_femnist_forward.1} parent=0 // pred_check
    _
  $region47: #{cnn_femnist_forward.1} parent=0 // pred_check_branch
    %4083 = sbr.rel (0) target = $region49
  $region48: #{cnn_femnist_forward.1} parent=0 // pred_region
    _
  $region49: #{cnn_femnist_forward.1} parent=0 // pred_fallthru
    _
  // Predicated region
  $region50: #{cnn_femnist_forward.1} parent=0 // pred_check
    _
  $region51: #{cnn_femnist_forward.1} parent=0 // pred_check_branch
    %4085 = sbr.rel (0) target = $region53
  $region52: #{cnn_femnist_forward.1} parent=0 // pred_region
    _
  $region53: #{cnn_femnist_forward.1} parent=0 // pred_fallthru
    _

</llo_original>
